<compile_context>
chip_gen: v6e
topology: v6e:2x2x1
jax: 0.10.0
libtpu: 0.0.40
codegen_flags: <defaults>
</compile_context>

<pallas_src>
import functools

import jax
import jax.numpy as jnp
from jax.experimental import pallas as pl
from jax.experimental.pallas import tpu as pltpu

# ---- config (cf.* in the original code) ------------------------------------
SEQ_LEN = 8      # cf.seq_len
PRED_LEN = 4     # cf.pred_len

# ---- small model hyper-params (scaled-down NormalLSTM) ---------------------
INPUT_SIZE = 32   # input_size (207 in the original)
HIDDEN_DIM = 32   # hidden_dim (200 in the original)
NUM_LAYERS = 2    # num_layers (4 in the original)
BATCH = 2

BT = 8            # batch tile = one sublane group


def _round_up(x, m):
    return ((x + m - 1) // m) * m


def _make_kernel(num_layers, bt, seq_len, hp, fc_out_pad):
    """Builds the Pallas kernel body (closed over static shapes)."""
    T = seq_len
    Hp = hp

    def kernel(*refs):
        idx = 0
        x_ref = refs[idx]; idx += 1                       # (T*bt, D_in)
        layer_refs = []
        for _ in range(num_layers):
            layer_refs.append((refs[idx], refs[idx + 1], refs[idx + 2]))
            idx += 3                                      # w_ih_T, w_hh_T, b
        fc_w_ref = refs[idx]; fc_b_ref = refs[idx + 1]; idx += 2
        out_ref = refs[idx]; idx += 1                     # (bt, fc_out_pad)
        hseq_ref = refs[idx]                              # VMEM (T*bt, Hp)

        # fc bias broadcast hoisted once (fused-fc accumulator init).
        y = jnp.broadcast_to(fc_b_ref[...], (bt, fc_out_pad))

        for l, (w_ih_ref, w_hh_ref, b_ref) in enumerate(layer_refs):
            is_last = (l == num_layers - 1)
            # layer input in (T*bt, feat) layout: row index = t*bt + b.
            layer_in = x_ref[...] if l == 0 else hseq_ref[...]

            # Hoisted input projection: one matmul for ALL timesteps, bias
            # folded in here (single broadcast per layer).
            x_proj = (jnp.dot(layer_in, w_ih_ref[...],
                              preferred_element_type=jnp.float32)
                      + b_ref[...])                       # (T*bt, 4*Hp)

            w_hh = w_hh_ref[...]                          # (Hp, 4*Hp)
            h = jnp.zeros((bt, Hp), jnp.float32)
            c = jnp.zeros((bt, Hp), jnp.float32)

            # Only h @ W_hh + nonlinearities remain on the serial chain.
            # TODO(synk): at full size keep w_hh MXU-resident
            # (pltpu.matmul_push_rhs/matmul_acc_lhs) and use lax.fori_loop.
            for t in range(T):
                gates = (x_proj[t * bt:(t + 1) * bt, :]
                         + jnp.dot(h, w_hh,
                                   preferred_element_type=jnp.float32))
                # Single EUP pass: gate order [i, f, o, g], g columns were
                # pre-scaled by 2, so tanh(x) = 2*sigmoid(2x) - 1 rides the
                # same sigmoid; the affine fix-up is a free VALU op.
                sig = jax.nn.sigmoid(gates)               # (bt, 4*Hp)
                i_g = sig[:, 0 * Hp:1 * Hp]
                f_g = sig[:, 1 * Hp:2 * Hp]
                o_g = sig[:, 2 * Hp:3 * Hp]
                g_g = 2.0 * sig[:, 3 * Hp:4 * Hp] - 1.0
                c = f_g * c + i_g * g_g
                h = o_g * jnp.tanh(c)
                if is_last:
                    # fused fc: y = sum_t h_t @ fc_w_T[t*Hp:(t+1)*Hp] + fc_b
                    y = y + jnp.dot(h, fc_w_ref[t * Hp:(t + 1) * Hp, :],
                                    preferred_element_type=jnp.float32)
                else:
                    # stash h_t for the next layer's hoisted projection
                    # (sublane-aligned, lane-dense store).
                    hseq_ref[t * bt:(t + 1) * bt, :] = h

        out_ref[...] = y

    return kernel


def init_params(key, input_size, hidden_dim, num_layers, seq_len, pred_len):
    """Deterministic parameter init, matching PyTorch default init ranges.

    Stores the raw PyTorch-ordered weights (for the reference) and the
    kernel-ready weights: gate rows permuted [i,f,g,o] -> [i,f,o,g], g-gate
    rows pre-scaled by 2 (tanh-via-sigmoid), matrices transposed, each gate's
    column block zero-padded to a 128-lane-aligned block of width Hp, and
    b_ih + b_hh folded into a single (1, 4*Hp) bias.
    """
    H = hidden_dim
    Hp = _round_up(H, 128)
    fc_out = input_size * pred_len
    fc_out_pad = _round_up(fc_out, 128)

    # PyTorch gate row order is [i, f, g, o]; kernel wants [i, f, o, g].
    perm = jnp.concatenate([jnp.arange(0, H), jnp.arange(H, 2 * H),
                            jnp.arange(3 * H, 4 * H), jnp.arange(2 * H, 3 * H)])
    # x2 pre-scale on the g gate (last block after perm): tanh(x)=2*sig(2x)-1.
    g_scale = jnp.concatenate([jnp.ones((3 * H,), jnp.float32),
                               jnp.full((H,), 2.0, jnp.float32)])

    def pad_gate_cols(w_t, rows_pad):
        # w_t: (rows_real, 4H) -> (rows_pad, 4*Hp), gate k in cols [k*Hp, k*Hp+H)
        rows_real = w_t.shape[0]
        out = jnp.zeros((rows_pad, 4 * Hp), jnp.float32)
        for g in range(4):
            out = out.at[:rows_real, g * Hp:g * Hp + H].set(
                w_t[:, g * H:(g + 1) * H])
        return out

    params = {"layers": [], "layers_torch": []}
    k_lstm = 1.0 / jnp.sqrt(jnp.float32(H))
    keys = jax.random.split(key, num_layers * 4 + 2)
    ki = 0
    for l in range(num_layers):
        in_l = input_size if l == 0 else H
        in_pad = input_size if l == 0 else Hp
        w_ih = jax.random.uniform(keys[ki], (4 * H, in_l), jnp.float32,
                                  -k_lstm, k_lstm); ki += 1
        w_hh = jax.random.uniform(keys[ki], (4 * H, H), jnp.float32,
                                  -k_lstm, k_lstm); ki += 1
        b_ih = jax.random.uniform(keys[ki], (4 * H,), jnp.float32,
                                  -k_lstm, k_lstm); ki += 1
        b_hh = jax.random.uniform(keys[ki], (4 * H,), jnp.float32,
                                  -k_lstm, k_lstm); ki += 1
        params["layers_torch"].append({
            "w_ih": w_ih, "w_hh": w_hh, "b_ih": b_ih, "b_hh": b_hh,
        })
        w_ih_k = (w_ih[perm, :] * g_scale[:, None]).T      # (in_l, 4H)
        w_hh_k = (w_hh[perm, :] * g_scale[:, None]).T      # (H, 4H)
        b_k = (((b_ih + b_hh)[perm]) * g_scale)[None, :]   # (1, 4H)
        params["layers"].append({
            "w_ih_T": pad_gate_cols(w_ih_k, in_pad),       # (in_pad, 4Hp)
            "w_hh_T": pad_gate_cols(w_hh_k, Hp),           # (Hp, 4Hp)
            "b": pad_gate_cols(b_k, 1),                    # (1, 4Hp)
        })

    fc_in = H * seq_len
    k_fc = 1.0 / jnp.sqrt(jnp.float32(fc_in))
    fc_w = jax.random.uniform(keys[ki], (fc_out, fc_in), jnp.float32,
                              -k_fc, k_fc); ki += 1
    fc_b = jax.random.uniform(keys[ki], (fc_out,), jnp.float32,
                              -k_fc, k_fc); ki += 1
    params["fc_w"] = fc_w                            # (P*D_in, T*H)  (reference)
    params["fc_b_raw"] = fc_b                        # (P*D_in,)      (reference)
    # Kernel fc weight: rows re-blocked per timestep with Hp-aligned blocks,
    # output columns padded to fc_out_pad (lane-dense unmasked stores).
    fc_w_t = jnp.zeros((seq_len * Hp, fc_out_pad), jnp.float32)
    fc_w_T_raw = fc_w.T                              # (T*H, fc_out)
    for t in range(seq_len):
        fc_w_t = fc_w_t.at[t * Hp:t * Hp + H, :fc_out].set(
            fc_w_T_raw[t * H:(t + 1) * H, :])
    params["fc_w_T"] = fc_w_t                        # (T*Hp, fc_out_pad)
    params["fc_b"] = jnp.zeros((1, fc_out_pad), jnp.float32).at[0, :fc_out].set(fc_b)
    return params


@functools.partial(jax.jit, static_argnames=("seq_len", "pred_len",
                                             "hidden_dim", "input_size",
                                             "num_layers"))
def normal_lstm_forward(x, params, *, seq_len, pred_len, hidden_dim,
                        input_size, num_layers):
    B = x.shape[0]
    Hp = _round_up(hidden_dim, 128)
    fc_out = pred_len * input_size
    fc_out_pad = _round_up(fc_out, 128)

    # Pad batch to a multiple of the 8-row sublane group; each batch tile is
    # one grid step (marked "parallel" -> v7x TCs split the tiles).
    b_tiles = pl.cdiv(B, BT)
    bp = b_tiles * BT
    x_pad = jnp.zeros((bp, seq_len, input_size), jnp.float32).at[:B].set(x)
    # (B_tiles, BT, T, D) -> (B_tiles, T, BT, D) -> (B_tiles, T*BT, D):
    # inside a tile, row index = t*BT + b (leading-dim contiguous per step).
    x_flat = (x_pad.reshape(b_tiles, BT, seq_len, input_size)
                   .transpose(0, 2, 1, 3)
                   .reshape(b_tiles, seq_len * BT, input_size))

    kernel = _make_kernel(num_layers, BT, seq_len, Hp, fc_out_pad)

    args = [x_flat]
    in_specs = [pl.BlockSpec((None, seq_len * BT, input_size),
                             lambda i: (i, 0, 0))]
    for lp in params["layers"]:
        for name in ("w_ih_T", "w_hh_T", "b"):
            w = lp[name]
            args.append(w)
            in_specs.append(pl.BlockSpec(w.shape, lambda i: (0, 0)))
    args += [params["fc_w_T"], params["fc_b"]]
    in_specs += [pl.BlockSpec(params["fc_w_T"].shape, lambda i: (0, 0)),
                 pl.BlockSpec(params["fc_b"].shape, lambda i: (0, 0))]

    y = pl.pallas_call(
        kernel,
        out_shape=jax.ShapeDtypeStruct((b_tiles, BT, fc_out_pad), jnp.float32),
        grid=(b_tiles,),
        in_specs=in_specs,
        out_specs=pl.BlockSpec((None, BT, fc_out_pad), lambda i: (i, 0, 0)),
        scratch_shapes=[pltpu.VMEM((seq_len * BT, Hp), jnp.float32)],
        compiler_params=pltpu.CompilerParams(
            dimension_semantics=("parallel",)),
    )(*args)

    # Un-pad batch / output width and reshape in the wrapper.
    y = y.reshape(bp, fc_out_pad)[:B, :fc_out]
    return y.reshape(B, pred_len, input_size)


def _reference_forward(x, params, seq_len, pred_len, hidden_dim, input_size,
                       num_layers):
    """Pure-JAX reference using the RAW PyTorch-ordered weights [i,f,g,o].

    Independently checks the LSTM math and the init-time gate permutation,
    g-gate x2 pre-scale, lane padding, transpose and bias folding used by the
    kernel.
    """
    B = x.shape[0]
    H = hidden_dim
    seq = x
    for lp in params["layers_torch"]:
        w_ih, w_hh = lp["w_ih"], lp["w_hh"]
        b = lp["b_ih"] + lp["b_hh"]
        h = jnp.zeros((B, H), jnp.float32)
        c = jnp.zeros((B, H), jnp.float32)
        outs = []
        for t in range(seq_len):
            gates = seq[:, t, :] @ w_ih.T + h @ w_hh.T + b
            i_g = jax.nn.sigmoid(gates[:, 0 * H:1 * H])
            f_g = jax.nn.sigmoid(gates[:, 1 * H:2 * H])
            g_g = jnp.tanh(gates[:, 2 * H:3 * H])
            o_g = jax.nn.sigmoid(gates[:, 3 * H:4 * H])
            c = f_g * c + i_g * g_g
            h = o_g * jnp.tanh(c)
            outs.append(h)
        seq = jnp.stack(outs, axis=1)
    flat = seq.reshape(B, seq_len * H)
    y = flat @ params["fc_w"].T + params["fc_b_raw"]
    return y.reshape(B, pred_len, input_size)


if __name__ == "__main__":
    key = jax.random.PRNGKey(0)
    k_param, k_x = jax.random.split(key)

    params = init_params(k_param, INPUT_SIZE, HIDDEN_DIM, NUM_LAYERS,
                         SEQ_LEN, PRED_LEN)
    x = jax.random.normal(k_x, (BATCH, SEQ_LEN, INPUT_SIZE), jnp.float32)

    out = normal_lstm_forward(x, params, seq_len=SEQ_LEN, pred_len=PRED_LEN,
                              hidden_dim=HIDDEN_DIM, input_size=INPUT_SIZE,
                              num_layers=NUM_LAYERS)
    out = jax.block_until_ready(out)

    ref = _reference_forward(x, params, SEQ_LEN, PRED_LEN, HIDDEN_DIM,
                             INPUT_SIZE, NUM_LAYERS)
    assert out.shape == (BATCH, PRED_LEN, INPUT_SIZE)
    assert jnp.allclose(out, ref, atol=2e-4, rtol=2e-4)

    print("KERNEL_OK")
</pallas_src>

<mosaic_0001>
module attributes {stable_mosaic.version = 11 : i64} {
  func.func @kernel(%arg0: i32, %arg1: memref<1x64x32xf32, #tpu.memory_space<vmem>>, %arg2: memref<32x512xf32, #tpu.memory_space<vmem>>, %arg3: memref<128x512xf32, #tpu.memory_space<vmem>>, %arg4: memref<1x512xf32, #tpu.memory_space<vmem>>, %arg5: memref<128x512xf32, #tpu.memory_space<vmem>>, %arg6: memref<128x512xf32, #tpu.memory_space<vmem>>, %arg7: memref<1x512xf32, #tpu.memory_space<vmem>>, %arg8: memref<1024x128xf32, #tpu.memory_space<vmem>>, %arg9: memref<1x128xf32, #tpu.memory_space<vmem>>, %arg10: memref<1x8x128xf32, #tpu.memory_space<vmem>>, %arg11: memref<64x128xf32, #tpu.memory_space<vmem>>) attributes {dimension_semantics = [#tpu.dimension_semantics<parallel>], iteration_bounds = array<i64: 1>, scalar_prefetch = 0 : i64, scratch_operands = 1 : i64, tpu.core_type = #tpu.core_type<tc>, window_params = [{transform_indices = @transform_0, window_bounds = array<i64: 1, 64, 32>}, {pipeline_mode = #tpu.pipeline_mode<synchronous>, transform_indices = @transform_1, window_bounds = array<i64: 32, 512>}, {pipeline_mode = #tpu.pipeline_mode<synchronous>, transform_indices = @transform_2, window_bounds = array<i64: 128, 512>}, {pipeline_mode = #tpu.pipeline_mode<synchronous>, transform_indices = @transform_3, window_bounds = array<i64: 1, 512>}, {pipeline_mode = #tpu.pipeline_mode<synchronous>, transform_indices = @transform_4, window_bounds = array<i64: 128, 512>}, {pipeline_mode = #tpu.pipeline_mode<synchronous>, transform_indices = @transform_5, window_bounds = array<i64: 128, 512>}, {pipeline_mode = #tpu.pipeline_mode<synchronous>, transform_indices = @transform_6, window_bounds = array<i64: 1, 512>}, {pipeline_mode = #tpu.pipeline_mode<synchronous>, transform_indices = @transform_7, window_bounds = array<i64: 1024, 128>}, {pipeline_mode = #tpu.pipeline_mode<synchronous>, transform_indices = @transform_8, window_bounds = array<i64: 1, 128>}, {transform_indices = @transform_9, window_bounds = array<i64: 1, 8, 128>}]} {
    %c0 = arith.constant 0 : index
    %c0_0 = arith.constant 0 : index
    %0 = vector.load %arg9[%c0, %c0_0] : memref<1x128xf32, #tpu.memory_space<vmem>>, vector<1x128xf32>
    %1 = vector.shape_cast %0 : vector<1x128xf32> to vector<1x128xf32>
    %2 = vector.broadcast %1 : vector<1x128xf32> to vector<8x128xf32>
    %c0_1 = arith.constant 0 : index
    %c0_2 = arith.constant 0 : index
    %c0_3 = arith.constant 0 : index
    %3 = vector.load %arg1[%c0_1, %c0_2, %c0_3] : memref<1x64x32xf32, #tpu.memory_space<vmem>>, vector<1x64x32xf32>
    %4 = vector.shape_cast %3 : vector<1x64x32xf32> to vector<64x32xf32>
    %c0_4 = arith.constant 0 : index
    %c0_5 = arith.constant 0 : index
    %5 = vector.load %arg2[%c0_4, %c0_5] : memref<32x512xf32, #tpu.memory_space<vmem>>, vector<32x512xf32>
    %cst = arith.constant dense<0.000000e+00> : vector<64x512xf32>
    %6 = tpu.matmul %4, %5, %cst {dimension_numbers = #tpu.dot_dimension_numbers<[1], [0], [0], [1], [0, 0, 1, 1], [], []>} : vector<64x32xf32>, vector<32x512xf32>, vector<64x512xf32> -> vector<64x512xf32>
    %c0_6 = arith.constant 0 : index
    %c0_7 = arith.constant 0 : index
    %7 = vector.load %arg4[%c0_6, %c0_7] : memref<1x512xf32, #tpu.memory_space<vmem>>, vector<1x512xf32>
    %8 = vector.broadcast %7 : vector<1x512xf32> to vector<64x512xf32>
    %9 = arith.addf %6, %8 : vector<64x512xf32>
    %c0_8 = arith.constant 0 : index
    %c0_9 = arith.constant 0 : index
    %10 = vector.load %arg3[%c0_8, %c0_9] : memref<128x512xf32, #tpu.memory_space<vmem>>, vector<128x512xf32>
    %cst_10 = arith.constant 0.000000e+00 : f32
    %11 = vector.broadcast %cst_10 : f32 to vector<8x128xf32>
    %cst_11 = arith.constant 0.000000e+00 : f32
    %12 = vector.broadcast %cst_11 : f32 to vector<8x128xf32>
    %13 = vector.extract_strided_slice %9 {offsets = [0, 0], sizes = [8, 512], strides = [1, 1]} : vector<64x512xf32> to vector<8x512xf32>
    %cst_12 = arith.constant dense<0.000000e+00> : vector<8x512xf32>
    %14 = tpu.matmul %11, %10, %cst_12 {dimension_numbers = #tpu.dot_dimension_numbers<[1], [0], [0], [1], [0, 0, 1, 1], [], []>} : vector<8x128xf32>, vector<128x512xf32>, vector<8x512xf32> -> vector<8x512xf32>
    %15 = arith.addf %13, %14 : vector<8x512xf32>
    %16 = arith.negf %15 : vector<8x512xf32>
    %17 = math.exp %16 : vector<8x512xf32>
    %cst_13 = arith.constant 1.000000e+00 : f32
    %18 = vector.broadcast %cst_13 : f32 to vector<8x512xf32>
    %19 = arith.addf %18, %17 : vector<8x512xf32>
    %20 = arith.divf %18, %19 : vector<8x512xf32>
    %21 = vector.extract_strided_slice %20 {offsets = [0, 0], sizes = [8, 128], strides = [1, 1]} : vector<8x512xf32> to vector<8x128xf32>
    %22 = vector.extract_strided_slice %20 {offsets = [0, 128], sizes = [8, 128], strides = [1, 1]} : vector<8x512xf32> to vector<8x128xf32>
    %23 = vector.extract_strided_slice %20 {offsets = [0, 256], sizes = [8, 128], strides = [1, 1]} : vector<8x512xf32> to vector<8x128xf32>
    %24 = vector.extract_strided_slice %20 {offsets = [0, 384], sizes = [8, 128], strides = [1, 1]} : vector<8x512xf32> to vector<8x128xf32>
    %cst_14 = arith.constant 2.000000e+00 : f32
    %25 = vector.broadcast %cst_14 : f32 to vector<8x128xf32>
    %26 = arith.mulf %25, %24 : vector<8x128xf32>
    %cst_15 = arith.constant 1.000000e+00 : f32
    %27 = vector.broadcast %cst_15 : f32 to vector<8x128xf32>
    %28 = arith.subf %26, %27 : vector<8x128xf32>
    %29 = arith.mulf %22, %12 : vector<8x128xf32>
    %30 = arith.mulf %21, %28 : vector<8x128xf32>
    %31 = arith.addf %29, %30 : vector<8x128xf32>
    %32 = math.tanh %31 : vector<8x128xf32>
    %33 = arith.mulf %23, %32 : vector<8x128xf32>
    %c0_16 = arith.constant 0 : index
    %c0_17 = arith.constant 0 : index
    %34 = vector.load %arg11[%c0_16, %c0_17] : memref<64x128xf32, #tpu.memory_space<vmem>>, vector<8x128xf32>
    tpu.vector_store %arg11[%c0_16, %c0_17], %33 {strides = array<i32>} : memref<64x128xf32, #tpu.memory_space<vmem>>, vector<8x128xf32>,
    %35 = vector.extract_strided_slice %9 {offsets = [8, 0], sizes = [8, 512], strides = [1, 1]} : vector<64x512xf32> to vector<8x512xf32>
    %cst_18 = arith.constant dense<0.000000e+00> : vector<8x512xf32>
    %36 = tpu.matmul %33, %10, %cst_18 {dimension_numbers = #tpu.dot_dimension_numbers<[1], [0], [0], [1], [0, 0, 1, 1], [], []>} : vector<8x128xf32>, vector<128x512xf32>, vector<8x512xf32> -> vector<8x512xf32>
    %37 = arith.addf %35, %36 : vector<8x512xf32>
    %38 = arith.negf %37 : vector<8x512xf32>
    %39 = math.exp %38 : vector<8x512xf32>
    %cst_19 = arith.constant 1.000000e+00 : f32
    %40 = vector.broadcast %cst_19 : f32 to vector<8x512xf32>
    %41 = arith.addf %40, %39 : vector<8x512xf32>
    %42 = arith.divf %40, %41 : vector<8x512xf32>
    %43 = vector.extract_strided_slice %42 {offsets = [0, 0], sizes = [8, 128], strides = [1, 1]} : vector<8x512xf32> to vector<8x128xf32>
    %44 = vector.extract_strided_slice %42 {offsets = [0, 128], sizes = [8, 128], strides = [1, 1]} : vector<8x512xf32> to vector<8x128xf32>
    %45 = vector.extract_strided_slice %42 {offsets = [0, 256], sizes = [8, 128], strides = [1, 1]} : vector<8x512xf32> to vector<8x128xf32>
    %46 = vector.extract_strided_slice %42 {offsets = [0, 384], sizes = [8, 128], strides = [1, 1]} : vector<8x512xf32> to vector<8x128xf32>
    %cst_20 = arith.constant 2.000000e+00 : f32
    %47 = vector.broadcast %cst_20 : f32 to vector<8x128xf32>
    %48 = arith.mulf %47, %46 : vector<8x128xf32>
    %cst_21 = arith.constant 1.000000e+00 : f32
    %49 = vector.broadcast %cst_21 : f32 to vector<8x128xf32>
    %50 = arith.subf %48, %49 : vector<8x128xf32>
    %51 = arith.mulf %44, %31 : vector<8x128xf32>
    %52 = arith.mulf %43, %50 : vector<8x128xf32>
    %53 = arith.addf %51, %52 : vector<8x128xf32>
    %54 = math.tanh %53 : vector<8x128xf32>
    %55 = arith.mulf %45, %54 : vector<8x128xf32>
    %c8 = arith.constant 8 : index
    %c0_22 = arith.constant 0 : index
    %56 = vector.load %arg11[%c8, %c0_22] : memref<64x128xf32, #tpu.memory_space<vmem>>, vector<8x128xf32>
    tpu.vector_store %arg11[%c8, %c0_22], %55 {strides = array<i32>} : memref<64x128xf32, #tpu.memory_space<vmem>>, vector<8x128xf32>,
    %57 = vector.extract_strided_slice %9 {offsets = [16, 0], sizes = [8, 512], strides = [1, 1]} : vector<64x512xf32> to vector<8x512xf32>
    %cst_23 = arith.constant dense<0.000000e+00> : vector<8x512xf32>
    %58 = tpu.matmul %55, %10, %cst_23 {dimension_numbers = #tpu.dot_dimension_numbers<[1], [0], [0], [1], [0, 0, 1, 1], [], []>} : vector<8x128xf32>, vector<128x512xf32>, vector<8x512xf32> -> vector<8x512xf32>
    %59 = arith.addf %57, %58 : vector<8x512xf32>
    %60 = arith.negf %59 : vector<8x512xf32>
    %61 = math.exp %60 : vector<8x512xf32>
    %cst_24 = arith.constant 1.000000e+00 : f32
    %62 = vector.broadcast %cst_24 : f32 to vector<8x512xf32>
    %63 = arith.addf %62, %61 : vector<8x512xf32>
    %64 = arith.divf %62, %63 : vector<8x512xf32>
    %65 = vector.extract_strided_slice %64 {offsets = [0, 0], sizes = [8, 128], strides = [1, 1]} : vector<8x512xf32> to vector<8x128xf32>
    %66 = vector.extract_strided_slice %64 {offsets = [0, 128], sizes = [8, 128], strides = [1, 1]} : vector<8x512xf32> to vector<8x128xf32>
    %67 = vector.extract_strided_slice %64 {offsets = [0, 256], sizes = [8, 128], strides = [1, 1]} : vector<8x512xf32> to vector<8x128xf32>
    %68 = vector.extract_strided_slice %64 {offsets = [0, 384], sizes = [8, 128], strides = [1, 1]} : vector<8x512xf32> to vector<8x128xf32>
    %cst_25 = arith.constant 2.000000e+00 : f32
    %69 = vector.broadcast %cst_25 : f32 to vector<8x128xf32>
    %70 = arith.mulf %69, %68 : vector<8x128xf32>
    %cst_26 = arith.constant 1.000000e+00 : f32
    %71 = vector.broadcast %cst_26 : f32 to vector<8x128xf32>
    %72 = arith.subf %70, %71 : vector<8x128xf32>
    %73 = arith.mulf %66, %53 : vector<8x128xf32>
    %74 = arith.mulf %65, %72 : vector<8x128xf32>
    %75 = arith.addf %73, %74 : vector<8x128xf32>
    %76 = math.tanh %75 : vector<8x128xf32>
    %77 = arith.mulf %67, %76 : vector<8x128xf32>
    %c16 = arith.constant 16 : index
    %c0_27 = arith.constant 0 : index
    %78 = vector.load %arg11[%c16, %c0_27] : memref<64x128xf32, #tpu.memory_space<vmem>>, vector<8x128xf32>
    tpu.vector_store %arg11[%c16, %c0_27], %77 {strides = array<i32>} : memref<64x128xf32, #tpu.memory_space<vmem>>, vector<8x128xf32>,
    %79 = vector.extract_strided_slice %9 {offsets = [24, 0], sizes = [8, 512], strides = [1, 1]} : vector<64x512xf32> to vector<8x512xf32>
    %cst_28 = arith.constant dense<0.000000e+00> : vector<8x512xf32>
    %80 = tpu.matmul %77, %10, %cst_28 {dimension_numbers = #tpu.dot_dimension_numbers<[1], [0], [0], [1], [0, 0, 1, 1], [], []>} : vector<8x128xf32>, vector<128x512xf32>, vector<8x512xf32> -> vector<8x512xf32>
    %81 = arith.addf %79, %80 : vector<8x512xf32>
    %82 = arith.negf %81 : vector<8x512xf32>
    %83 = math.exp %82 : vector<8x512xf32>
    %cst_29 = arith.constant 1.000000e+00 : f32
    %84 = vector.broadcast %cst_29 : f32 to vector<8x512xf32>
    %85 = arith.addf %84, %83 : vector<8x512xf32>
    %86 = arith.divf %84, %85 : vector<8x512xf32>
    %87 = vector.extract_strided_slice %86 {offsets = [0, 0], sizes = [8, 128], strides = [1, 1]} : vector<8x512xf32> to vector<8x128xf32>
    %88 = vector.extract_strided_slice %86 {offsets = [0, 128], sizes = [8, 128], strides = [1, 1]} : vector<8x512xf32> to vector<8x128xf32>
    %89 = vector.extract_strided_slice %86 {offsets = [0, 256], sizes = [8, 128], strides = [1, 1]} : vector<8x512xf32> to vector<8x128xf32>
    %90 = vector.extract_strided_slice %86 {offsets = [0, 384], sizes = [8, 128], strides = [1, 1]} : vector<8x512xf32> to vector<8x128xf32>
    %cst_30 = arith.constant 2.000000e+00 : f32
    %91 = vector.broadcast %cst_30 : f32 to vector<8x128xf32>
    %92 = arith.mulf %91, %90 : vector<8x128xf32>
    %cst_31 = arith.constant 1.000000e+00 : f32
    %93 = vector.broadcast %cst_31 : f32 to vector<8x128xf32>
    %94 = arith.subf %92, %93 : vector<8x128xf32>
    %95 = arith.mulf %88, %75 : vector<8x128xf32>
    %96 = arith.mulf %87, %94 : vector<8x128xf32>
    %97 = arith.addf %95, %96 : vector<8x128xf32>
    %98 = math.tanh %97 : vector<8x128xf32>
    %99 = arith.mulf %89, %98 : vector<8x128xf32>
    %c24 = arith.constant 24 : index
    %c0_32 = arith.constant 0 : index
    %100 = vector.load %arg11[%c24, %c0_32] : memref<64x128xf32, #tpu.memory_space<vmem>>, vector<8x128xf32>
    tpu.vector_store %arg11[%c24, %c0_32], %99 {strides = array<i32>} : memref<64x128xf32, #tpu.memory_space<vmem>>, vector<8x128xf32>,
    %101 = vector.extract_strided_slice %9 {offsets = [32, 0], sizes = [8, 512], strides = [1, 1]} : vector<64x512xf32> to vector<8x512xf32>
    %cst_33 = arith.constant dense<0.000000e+00> : vector<8x512xf32>
    %102 = tpu.matmul %99, %10, %cst_33 {dimension_numbers = #tpu.dot_dimension_numbers<[1], [0], [0], [1], [0, 0, 1, 1], [], []>} : vector<8x128xf32>, vector<128x512xf32>, vector<8x512xf32> -> vector<8x512xf32>
    %103 = arith.addf %101, %102 : vector<8x512xf32>
    %104 = arith.negf %103 : vector<8x512xf32>
    %105 = math.exp %104 : vector<8x512xf32>
    %cst_34 = arith.constant 1.000000e+00 : f32
    %106 = vector.broadcast %cst_34 : f32 to vector<8x512xf32>
    %107 = arith.addf %106, %105 : vector<8x512xf32>
    %108 = arith.divf %106, %107 : vector<8x512xf32>
    %109 = vector.extract_strided_slice %108 {offsets = [0, 0], sizes = [8, 128], strides = [1, 1]} : vector<8x512xf32> to vector<8x128xf32>
    %110 = vector.extract_strided_slice %108 {offsets = [0, 128], sizes = [8, 128], strides = [1, 1]} : vector<8x512xf32> to vector<8x128xf32>
    %111 = vector.extract_strided_slice %108 {offsets = [0, 256], sizes = [8, 128], strides = [1, 1]} : vector<8x512xf32> to vector<8x128xf32>
    %112 = vector.extract_strided_slice %108 {offsets = [0, 384], sizes = [8, 128], strides = [1, 1]} : vector<8x512xf32> to vector<8x128xf32>
    %cst_35 = arith.constant 2.000000e+00 : f32
    %113 = vector.broadcast %cst_35 : f32 to vector<8x128xf32>
    %114 = arith.mulf %113, %112 : vector<8x128xf32>
    %cst_36 = arith.constant 1.000000e+00 : f32
    %115 = vector.broadcast %cst_36 : f32 to vector<8x128xf32>
    %116 = arith.subf %114, %115 : vector<8x128xf32>
    %117 = arith.mulf %110, %97 : vector<8x128xf32>
    %118 = arith.mulf %109, %116 : vector<8x128xf32>
    %119 = arith.addf %117, %118 : vector<8x128xf32>
    %120 = math.tanh %119 : vector<8x128xf32>
    %121 = arith.mulf %111, %120 : vector<8x128xf32>
    %c32 = arith.constant 32 : index
    %c0_37 = arith.constant 0 : index
    %122 = vector.load %arg11[%c32, %c0_37] : memref<64x128xf32, #tpu.memory_space<vmem>>, vector<8x128xf32>
    tpu.vector_store %arg11[%c32, %c0_37], %121 {strides = array<i32>} : memref<64x128xf32, #tpu.memory_space<vmem>>, vector<8x128xf32>,
    %123 = vector.extract_strided_slice %9 {offsets = [40, 0], sizes = [8, 512], strides = [1, 1]} : vector<64x512xf32> to vector<8x512xf32>
    %cst_38 = arith.constant dense<0.000000e+00> : vector<8x512xf32>
    %124 = tpu.matmul %121, %10, %cst_38 {dimension_numbers = #tpu.dot_dimension_numbers<[1], [0], [0], [1], [0, 0, 1, 1], [], []>} : vector<8x128xf32>, vector<128x512xf32>, vector<8x512xf32> -> vector<8x512xf32>
    %125 = arith.addf %123, %124 : vector<8x512xf32>
    %126 = arith.negf %125 : vector<8x512xf32>
    %127 = math.exp %126 : vector<8x512xf32>
    %cst_39 = arith.constant 1.000000e+00 : f32
    %128 = vector.broadcast %cst_39 : f32 to vector<8x512xf32>
    %129 = arith.addf %128, %127 : vector<8x512xf32>
    %130 = arith.divf %128, %129 : vector<8x512xf32>
    %131 = vector.extract_strided_slice %130 {offsets = [0, 0], sizes = [8, 128], strides = [1, 1]} : vector<8x512xf32> to vector<8x128xf32>
    %132 = vector.extract_strided_slice %130 {offsets = [0, 128], sizes = [8, 128], strides = [1, 1]} : vector<8x512xf32> to vector<8x128xf32>
    %133 = vector.extract_strided_slice %130 {offsets = [0, 256], sizes = [8, 128], strides = [1, 1]} : vector<8x512xf32> to vector<8x128xf32>
    %134 = vector.extract_strided_slice %130 {offsets = [0, 384], sizes = [8, 128], strides = [1, 1]} : vector<8x512xf32> to vector<8x128xf32>
    %cst_40 = arith.constant 2.000000e+00 : f32
    %135 = vector.broadcast %cst_40 : f32 to vector<8x128xf32>
    %136 = arith.mulf %135, %134 : vector<8x128xf32>
    %cst_41 = arith.constant 1.000000e+00 : f32
    %137 = vector.broadcast %cst_41 : f32 to vector<8x128xf32>
    %138 = arith.subf %136, %137 : vector<8x128xf32>
    %139 = arith.mulf %132, %119 : vector<8x128xf32>
    %140 = arith.mulf %131, %138 : vector<8x128xf32>
    %141 = arith.addf %139, %140 : vector<8x128xf32>
    %142 = math.tanh %141 : vector<8x128xf32>
    %143 = arith.mulf %133, %142 : vector<8x128xf32>
    %c40 = arith.constant 40 : index
    %c0_42 = arith.constant 0 : index
    %144 = vector.load %arg11[%c40, %c0_42] : memref<64x128xf32, #tpu.memory_space<vmem>>, vector<8x128xf32>
    tpu.vector_store %arg11[%c40, %c0_42], %143 {strides = array<i32>} : memref<64x128xf32, #tpu.memory_space<vmem>>, vector<8x128xf32>,
    %145 = vector.extract_strided_slice %9 {offsets = [48, 0], sizes = [8, 512], strides = [1, 1]} : vector<64x512xf32> to vector<8x512xf32>
    %cst_43 = arith.constant dense<0.000000e+00> : vector<8x512xf32>
    %146 = tpu.matmul %143, %10, %cst_43 {dimension_numbers = #tpu.dot_dimension_numbers<[1], [0], [0], [1], [0, 0, 1, 1], [], []>} : vector<8x128xf32>, vector<128x512xf32>, vector<8x512xf32> -> vector<8x512xf32>
    %147 = arith.addf %145, %146 : vector<8x512xf32>
    %148 = arith.negf %147 : vector<8x512xf32>
    %149 = math.exp %148 : vector<8x512xf32>
    %cst_44 = arith.constant 1.000000e+00 : f32
    %150 = vector.broadcast %cst_44 : f32 to vector<8x512xf32>
    %151 = arith.addf %150, %149 : vector<8x512xf32>
    %152 = arith.divf %150, %151 : vector<8x512xf32>
    %153 = vector.extract_strided_slice %152 {offsets = [0, 0], sizes = [8, 128], strides = [1, 1]} : vector<8x512xf32> to vector<8x128xf32>
    %154 = vector.extract_strided_slice %152 {offsets = [0, 128], sizes = [8, 128], strides = [1, 1]} : vector<8x512xf32> to vector<8x128xf32>
    %155 = vector.extract_strided_slice %152 {offsets = [0, 256], sizes = [8, 128], strides = [1, 1]} : vector<8x512xf32> to vector<8x128xf32>
    %156 = vector.extract_strided_slice %152 {offsets = [0, 384], sizes = [8, 128], strides = [1, 1]} : vector<8x512xf32> to vector<8x128xf32>
    %cst_45 = arith.constant 2.000000e+00 : f32
    %157 = vector.broadcast %cst_45 : f32 to vector<8x128xf32>
    %158 = arith.mulf %157, %156 : vector<8x128xf32>
    %cst_46 = arith.constant 1.000000e+00 : f32
    %159 = vector.broadcast %cst_46 : f32 to vector<8x128xf32>
    %160 = arith.subf %158, %159 : vector<8x128xf32>
    %161 = arith.mulf %154, %141 : vector<8x128xf32>
    %162 = arith.mulf %153, %160 : vector<8x128xf32>
    %163 = arith.addf %161, %162 : vector<8x128xf32>
    %164 = math.tanh %163 : vector<8x128xf32>
    %165 = arith.mulf %155, %164 : vector<8x128xf32>
    %c48 = arith.constant 48 : index
    %c0_47 = arith.constant 0 : index
    %166 = vector.load %arg11[%c48, %c0_47] : memref<64x128xf32, #tpu.memory_space<vmem>>, vector<8x128xf32>
    tpu.vector_store %arg11[%c48, %c0_47], %165 {strides = array<i32>} : memref<64x128xf32, #tpu.memory_space<vmem>>, vector<8x128xf32>,
    %167 = vector.extract_strided_slice %9 {offsets = [56, 0], sizes = [8, 512], strides = [1, 1]} : vector<64x512xf32> to vector<8x512xf32>
    %cst_48 = arith.constant dense<0.000000e+00> : vector<8x512xf32>
    %168 = tpu.matmul %165, %10, %cst_48 {dimension_numbers = #tpu.dot_dimension_numbers<[1], [0], [0], [1], [0, 0, 1, 1], [], []>} : vector<8x128xf32>, vector<128x512xf32>, vector<8x512xf32> -> vector<8x512xf32>
    %169 = arith.addf %167, %168 : vector<8x512xf32>
    %170 = arith.negf %169 : vector<8x512xf32>
    %171 = math.exp %170 : vector<8x512xf32>
    %cst_49 = arith.constant 1.000000e+00 : f32
    %172 = vector.broadcast %cst_49 : f32 to vector<8x512xf32>
    %173 = arith.addf %172, %171 : vector<8x512xf32>
    %174 = arith.divf %172, %173 : vector<8x512xf32>
    %175 = vector.extract_strided_slice %174 {offsets = [0, 0], sizes = [8, 128], strides = [1, 1]} : vector<8x512xf32> to vector<8x128xf32>
    %176 = vector.extract_strided_slice %174 {offsets = [0, 128], sizes = [8, 128], strides = [1, 1]} : vector<8x512xf32> to vector<8x128xf32>
    %177 = vector.extract_strided_slice %174 {offsets = [0, 256], sizes = [8, 128], strides = [1, 1]} : vector<8x512xf32> to vector<8x128xf32>
    %178 = vector.extract_strided_slice %174 {offsets = [0, 384], sizes = [8, 128], strides = [1, 1]} : vector<8x512xf32> to vector<8x128xf32>
    %cst_50 = arith.constant 2.000000e+00 : f32
    %179 = vector.broadcast %cst_50 : f32 to vector<8x128xf32>
    %180 = arith.mulf %179, %178 : vector<8x128xf32>
    %cst_51 = arith.constant 1.000000e+00 : f32
    %181 = vector.broadcast %cst_51 : f32 to vector<8x128xf32>
    %182 = arith.subf %180, %181 : vector<8x128xf32>
    %183 = arith.mulf %176, %163 : vector<8x128xf32>
    %184 = arith.mulf %175, %182 : vector<8x128xf32>
    %185 = arith.addf %183, %184 : vector<8x128xf32>
    %186 = math.tanh %185 : vector<8x128xf32>
    %187 = arith.mulf %177, %186 : vector<8x128xf32>
    %c56 = arith.constant 56 : index
    %c0_52 = arith.constant 0 : index
    %188 = vector.load %arg11[%c56, %c0_52] : memref<64x128xf32, #tpu.memory_space<vmem>>, vector<8x128xf32>
    tpu.vector_store %arg11[%c56, %c0_52], %187 {strides = array<i32>} : memref<64x128xf32, #tpu.memory_space<vmem>>, vector<8x128xf32>,
    %c0_53 = arith.constant 0 : index
    %c0_54 = arith.constant 0 : index
    %189 = vector.load %arg11[%c0_53, %c0_54] : memref<64x128xf32, #tpu.memory_space<vmem>>, vector<64x128xf32>
    %c0_55 = arith.constant 0 : index
    %c0_56 = arith.constant 0 : index
    %190 = vector.load %arg5[%c0_55, %c0_56] : memref<128x512xf32, #tpu.memory_space<vmem>>, vector<128x512xf32>
    %cst_57 = arith.constant dense<0.000000e+00> : vector<64x512xf32>
    %191 = tpu.matmul %189, %190, %cst_57 {dimension_numbers = #tpu.dot_dimension_numbers<[1], [0], [0], [1], [0, 0, 1, 1], [], []>} : vector<64x128xf32>, vector<128x512xf32>, vector<64x512xf32> -> vector<64x512xf32>
    %c0_58 = arith.constant 0 : index
    %c0_59 = arith.constant 0 : index
    %192 = vector.load %arg7[%c0_58, %c0_59] : memref<1x512xf32, #tpu.memory_space<vmem>>, vector<1x512xf32>
    %193 = vector.broadcast %192 : vector<1x512xf32> to vector<64x512xf32>
    %194 = arith.addf %191, %193 : vector<64x512xf32>
    %c0_60 = arith.constant 0 : index
    %c0_61 = arith.constant 0 : index
    %195 = vector.load %arg6[%c0_60, %c0_61] : memref<128x512xf32, #tpu.memory_space<vmem>>, vector<128x512xf32>
    %cst_62 = arith.constant 0.000000e+00 : f32
    %196 = vector.broadcast %cst_62 : f32 to vector<8x128xf32>
    %cst_63 = arith.constant 0.000000e+00 : f32
    %197 = vector.broadcast %cst_63 : f32 to vector<8x128xf32>
    %198 = vector.extract_strided_slice %194 {offsets = [0, 0], sizes = [8, 512], strides = [1, 1]} : vector<64x512xf32> to vector<8x512xf32>
    %cst_64 = arith.constant dense<0.000000e+00> : vector<8x512xf32>
    %199 = tpu.matmul %196, %195, %cst_64 {dimension_numbers = #tpu.dot_dimension_numbers<[1], [0], [0], [1], [0, 0, 1, 1], [], []>} : vector<8x128xf32>, vector<128x512xf32>, vector<8x512xf32> -> vector<8x512xf32>
    %200 = arith.addf %198, %199 : vector<8x512xf32>
    %201 = arith.negf %200 : vector<8x512xf32>
    %202 = math.exp %201 : vector<8x512xf32>
    %cst_65 = arith.constant 1.000000e+00 : f32
    %203 = vector.broadcast %cst_65 : f32 to vector<8x512xf32>
    %204 = arith.addf %203, %202 : vector<8x512xf32>
    %205 = arith.divf %203, %204 : vector<8x512xf32>
    %206 = vector.extract_strided_slice %205 {offsets = [0, 0], sizes = [8, 128], strides = [1, 1]} : vector<8x512xf32> to vector<8x128xf32>
    %207 = vector.extract_strided_slice %205 {offsets = [0, 128], sizes = [8, 128], strides = [1, 1]} : vector<8x512xf32> to vector<8x128xf32>
    %208 = vector.extract_strided_slice %205 {offsets = [0, 256], sizes = [8, 128], strides = [1, 1]} : vector<8x512xf32> to vector<8x128xf32>
    %209 = vector.extract_strided_slice %205 {offsets = [0, 384], sizes = [8, 128], strides = [1, 1]} : vector<8x512xf32> to vector<8x128xf32>
    %cst_66 = arith.constant 2.000000e+00 : f32
    %210 = vector.broadcast %cst_66 : f32 to vector<8x128xf32>
    %211 = arith.mulf %210, %209 : vector<8x128xf32>
    %cst_67 = arith.constant 1.000000e+00 : f32
    %212 = vector.broadcast %cst_67 : f32 to vector<8x128xf32>
    %213 = arith.subf %211, %212 : vector<8x128xf32>
    %214 = arith.mulf %207, %197 : vector<8x128xf32>
    %215 = arith.mulf %206, %213 : vector<8x128xf32>
    %216 = arith.addf %214, %215 : vector<8x128xf32>
    %217 = math.tanh %216 : vector<8x128xf32>
    %218 = arith.mulf %208, %217 : vector<8x128xf32>
    %c0_68 = arith.constant 0 : index
    %c0_69 = arith.constant 0 : index
    %219 = vector.load %arg8[%c0_68, %c0_69] : memref<1024x128xf32, #tpu.memory_space<vmem>>, vector<128x128xf32>
    %cst_70 = arith.constant dense<0.000000e+00> : vector<8x128xf32>
    %220 = tpu.matmul %218, %219, %cst_70 {dimension_numbers = #tpu.dot_dimension_numbers<[1], [0], [0], [1], [0, 0, 1, 1], [], []>} : vector<8x128xf32>, vector<128x128xf32>, vector<8x128xf32> -> vector<8x128xf32>
    %221 = arith.addf %2, %220 : vector<8x128xf32>
    %222 = vector.extract_strided_slice %194 {offsets = [8, 0], sizes = [8, 512], strides = [1, 1]} : vector<64x512xf32> to vector<8x512xf32>
    %cst_71 = arith.constant dense<0.000000e+00> : vector<8x512xf32>
    %223 = tpu.matmul %218, %195, %cst_71 {dimension_numbers = #tpu.dot_dimension_numbers<[1], [0], [0], [1], [0, 0, 1, 1], [], []>} : vector<8x128xf32>, vector<128x512xf32>, vector<8x512xf32> -> vector<8x512xf32>
    %224 = arith.addf %222, %223 : vector<8x512xf32>
    %225 = arith.negf %224 : vector<8x512xf32>
    %226 = math.exp %225 : vector<8x512xf32>
    %cst_72 = arith.constant 1.000000e+00 : f32
    %227 = vector.broadcast %cst_72 : f32 to vector<8x512xf32>
    %228 = arith.addf %227, %226 : vector<8x512xf32>
    %229 = arith.divf %227, %228 : vector<8x512xf32>
    %230 = vector.extract_strided_slice %229 {offsets = [0, 0], sizes = [8, 128], strides = [1, 1]} : vector<8x512xf32> to vector<8x128xf32>
    %231 = vector.extract_strided_slice %229 {offsets = [0, 128], sizes = [8, 128], strides = [1, 1]} : vector<8x512xf32> to vector<8x128xf32>
    %232 = vector.extract_strided_slice %229 {offsets = [0, 256], sizes = [8, 128], strides = [1, 1]} : vector<8x512xf32> to vector<8x128xf32>
    %233 = vector.extract_strided_slice %229 {offsets = [0, 384], sizes = [8, 128], strides = [1, 1]} : vector<8x512xf32> to vector<8x128xf32>
    %cst_73 = arith.constant 2.000000e+00 : f32
    %234 = vector.broadcast %cst_73 : f32 to vector<8x128xf32>
    %235 = arith.mulf %234, %233 : vector<8x128xf32>
    %cst_74 = arith.constant 1.000000e+00 : f32
    %236 = vector.broadcast %cst_74 : f32 to vector<8x128xf32>
    %237 = arith.subf %235, %236 : vector<8x128xf32>
    %238 = arith.mulf %231, %216 : vector<8x128xf32>
    %239 = arith.mulf %230, %237 : vector<8x128xf32>
    %240 = arith.addf %238, %239 : vector<8x128xf32>
    %241 = math.tanh %240 : vector<8x128xf32>
    %242 = arith.mulf %232, %241 : vector<8x128xf32>
    %c128 = arith.constant 128 : index
    %c0_75 = arith.constant 0 : index
    %243 = vector.load %arg8[%c128, %c0_75] : memref<1024x128xf32, #tpu.memory_space<vmem>>, vector<128x128xf32>
    %cst_76 = arith.constant dense<0.000000e+00> : vector<8x128xf32>
    %244 = tpu.matmul %242, %243, %cst_76 {dimension_numbers = #tpu.dot_dimension_numbers<[1], [0], [0], [1], [0, 0, 1, 1], [], []>} : vector<8x128xf32>, vector<128x128xf32>, vector<8x128xf32> -> vector<8x128xf32>
    %245 = arith.addf %221, %244 : vector<8x128xf32>
    %246 = vector.extract_strided_slice %194 {offsets = [16, 0], sizes = [8, 512], strides = [1, 1]} : vector<64x512xf32> to vector<8x512xf32>
    %cst_77 = arith.constant dense<0.000000e+00> : vector<8x512xf32>
    %247 = tpu.matmul %242, %195, %cst_77 {dimension_numbers = #tpu.dot_dimension_numbers<[1], [0], [0], [1], [0, 0, 1, 1], [], []>} : vector<8x128xf32>, vector<128x512xf32>, vector<8x512xf32> -> vector<8x512xf32>
    %248 = arith.addf %246, %247 : vector<8x512xf32>
    %249 = arith.negf %248 : vector<8x512xf32>
    %250 = math.exp %249 : vector<8x512xf32>
    %cst_78 = arith.constant 1.000000e+00 : f32
    %251 = vector.broadcast %cst_78 : f32 to vector<8x512xf32>
    %252 = arith.addf %251, %250 : vector<8x512xf32>
    %253 = arith.divf %251, %252 : vector<8x512xf32>
    %254 = vector.extract_strided_slice %253 {offsets = [0, 0], sizes = [8, 128], strides = [1, 1]} : vector<8x512xf32> to vector<8x128xf32>
    %255 = vector.extract_strided_slice %253 {offsets = [0, 128], sizes = [8, 128], strides = [1, 1]} : vector<8x512xf32> to vector<8x128xf32>
    %256 = vector.extract_strided_slice %253 {offsets = [0, 256], sizes = [8, 128], strides = [1, 1]} : vector<8x512xf32> to vector<8x128xf32>
    %257 = vector.extract_strided_slice %253 {offsets = [0, 384], sizes = [8, 128], strides = [1, 1]} : vector<8x512xf32> to vector<8x128xf32>
    %cst_79 = arith.constant 2.000000e+00 : f32
    %258 = vector.broadcast %cst_79 : f32 to vector<8x128xf32>
    %259 = arith.mulf %258, %257 : vector<8x128xf32>
    %cst_80 = arith.constant 1.000000e+00 : f32
    %260 = vector.broadcast %cst_80 : f32 to vector<8x128xf32>
    %261 = arith.subf %259, %260 : vector<8x128xf32>
    %262 = arith.mulf %255, %240 : vector<8x128xf32>
    %263 = arith.mulf %254, %261 : vector<8x128xf32>
    %264 = arith.addf %262, %263 : vector<8x128xf32>
    %265 = math.tanh %264 : vector<8x128xf32>
    %266 = arith.mulf %256, %265 : vector<8x128xf32>
    %c256 = arith.constant 256 : index
    %c0_81 = arith.constant 0 : index
    %267 = vector.load %arg8[%c256, %c0_81] : memref<1024x128xf32, #tpu.memory_space<vmem>>, vector<128x128xf32>
    %cst_82 = arith.constant dense<0.000000e+00> : vector<8x128xf32>
    %268 = tpu.matmul %266, %267, %cst_82 {dimension_numbers = #tpu.dot_dimension_numbers<[1], [0], [0], [1], [0, 0, 1, 1], [], []>} : vector<8x128xf32>, vector<128x128xf32>, vector<8x128xf32> -> vector<8x128xf32>
    %269 = arith.addf %245, %268 : vector<8x128xf32>
    %270 = vector.extract_strided_slice %194 {offsets = [24, 0], sizes = [8, 512], strides = [1, 1]} : vector<64x512xf32> to vector<8x512xf32>
    %cst_83 = arith.constant dense<0.000000e+00> : vector<8x512xf32>
    %271 = tpu.matmul %266, %195, %cst_83 {dimension_numbers = #tpu.dot_dimension_numbers<[1], [0], [0], [1], [0, 0, 1, 1], [], []>} : vector<8x128xf32>, vector<128x512xf32>, vector<8x512xf32> -> vector<8x512xf32>
    %272 = arith.addf %270, %271 : vector<8x512xf32>
    %273 = arith.negf %272 : vector<8x512xf32>
    %274 = math.exp %273 : vector<8x512xf32>
    %cst_84 = arith.constant 1.000000e+00 : f32
    %275 = vector.broadcast %cst_84 : f32 to vector<8x512xf32>
    %276 = arith.addf %275, %274 : vector<8x512xf32>
    %277 = arith.divf %275, %276 : vector<8x512xf32>
    %278 = vector.extract_strided_slice %277 {offsets = [0, 0], sizes = [8, 128], strides = [1, 1]} : vector<8x512xf32> to vector<8x128xf32>
    %279 = vector.extract_strided_slice %277 {offsets = [0, 128], sizes = [8, 128], strides = [1, 1]} : vector<8x512xf32> to vector<8x128xf32>
    %280 = vector.extract_strided_slice %277 {offsets = [0, 256], sizes = [8, 128], strides = [1, 1]} : vector<8x512xf32> to vector<8x128xf32>
    %281 = vector.extract_strided_slice %277 {offsets = [0, 384], sizes = [8, 128], strides = [1, 1]} : vector<8x512xf32> to vector<8x128xf32>
    %cst_85 = arith.constant 2.000000e+00 : f32
    %282 = vector.broadcast %cst_85 : f32 to vector<8x128xf32>
    %283 = arith.mulf %282, %281 : vector<8x128xf32>
    %cst_86 = arith.constant 1.000000e+00 : f32
    %284 = vector.broadcast %cst_86 : f32 to vector<8x128xf32>
    %285 = arith.subf %283, %284 : vector<8x128xf32>
    %286 = arith.mulf %279, %264 : vector<8x128xf32>
    %287 = arith.mulf %278, %285 : vector<8x128xf32>
    %288 = arith.addf %286, %287 : vector<8x128xf32>
    %289 = math.tanh %288 : vector<8x128xf32>
    %290 = arith.mulf %280, %289 : vector<8x128xf32>
    %c384 = arith.constant 384 : index
    %c0_87 = arith.constant 0 : index
    %291 = vector.load %arg8[%c384, %c0_87] : memref<1024x128xf32, #tpu.memory_space<vmem>>, vector<128x128xf32>
    %cst_88 = arith.constant dense<0.000000e+00> : vector<8x128xf32>
    %292 = tpu.matmul %290, %291, %cst_88 {dimension_numbers = #tpu.dot_dimension_numbers<[1], [0], [0], [1], [0, 0, 1, 1], [], []>} : vector<8x128xf32>, vector<128x128xf32>, vector<8x128xf32> -> vector<8x128xf32>
    %293 = arith.addf %269, %292 : vector<8x128xf32>
    %294 = vector.extract_strided_slice %194 {offsets = [32, 0], sizes = [8, 512], strides = [1, 1]} : vector<64x512xf32> to vector<8x512xf32>
    %cst_89 = arith.constant dense<0.000000e+00> : vector<8x512xf32>
    %295 = tpu.matmul %290, %195, %cst_89 {dimension_numbers = #tpu.dot_dimension_numbers<[1], [0], [0], [1], [0, 0, 1, 1], [], []>} : vector<8x128xf32>, vector<128x512xf32>, vector<8x512xf32> -> vector<8x512xf32>
    %296 = arith.addf %294, %295 : vector<8x512xf32>
    %297 = arith.negf %296 : vector<8x512xf32>
    %298 = math.exp %297 : vector<8x512xf32>
    %cst_90 = arith.constant 1.000000e+00 : f32
    %299 = vector.broadcast %cst_90 : f32 to vector<8x512xf32>
    %300 = arith.addf %299, %298 : vector<8x512xf32>
    %301 = arith.divf %299, %300 : vector<8x512xf32>
    %302 = vector.extract_strided_slice %301 {offsets = [0, 0], sizes = [8, 128], strides = [1, 1]} : vector<8x512xf32> to vector<8x128xf32>
    %303 = vector.extract_strided_slice %301 {offsets = [0, 128], sizes = [8, 128], strides = [1, 1]} : vector<8x512xf32> to vector<8x128xf32>
    %304 = vector.extract_strided_slice %301 {offsets = [0, 256], sizes = [8, 128], strides = [1, 1]} : vector<8x512xf32> to vector<8x128xf32>
    %305 = vector.extract_strided_slice %301 {offsets = [0, 384], sizes = [8, 128], strides = [1, 1]} : vector<8x512xf32> to vector<8x128xf32>
    %cst_91 = arith.constant 2.000000e+00 : f32
    %306 = vector.broadcast %cst_91 : f32 to vector<8x128xf32>
    %307 = arith.mulf %306, %305 : vector<8x128xf32>
    %cst_92 = arith.constant 1.000000e+00 : f32
    %308 = vector.broadcast %cst_92 : f32 to vector<8x128xf32>
    %309 = arith.subf %307, %308 : vector<8x128xf32>
    %310 = arith.mulf %303, %288 : vector<8x128xf32>
    %311 = arith.mulf %302, %309 : vector<8x128xf32>
    %312 = arith.addf %310, %311 : vector<8x128xf32>
    %313 = math.tanh %312 : vector<8x128xf32>
    %314 = arith.mulf %304, %313 : vector<8x128xf32>
    %c512 = arith.constant 512 : index
    %c0_93 = arith.constant 0 : index
    %315 = vector.load %arg8[%c512, %c0_93] : memref<1024x128xf32, #tpu.memory_space<vmem>>, vector<128x128xf32>
    %cst_94 = arith.constant dense<0.000000e+00> : vector<8x128xf32>
    %316 = tpu.matmul %314, %315, %cst_94 {dimension_numbers = #tpu.dot_dimension_numbers<[1], [0], [0], [1], [0, 0, 1, 1], [], []>} : vector<8x128xf32>, vector<128x128xf32>, vector<8x128xf32> -> vector<8x128xf32>
    %317 = arith.addf %293, %316 : vector<8x128xf32>
    %318 = vector.extract_strided_slice %194 {offsets = [40, 0], sizes = [8, 512], strides = [1, 1]} : vector<64x512xf32> to vector<8x512xf32>
    %cst_95 = arith.constant dense<0.000000e+00> : vector<8x512xf32>
    %319 = tpu.matmul %314, %195, %cst_95 {dimension_numbers = #tpu.dot_dimension_numbers<[1], [0], [0], [1], [0, 0, 1, 1], [], []>} : vector<8x128xf32>, vector<128x512xf32>, vector<8x512xf32> -> vector<8x512xf32>
    %320 = arith.addf %318, %319 : vector<8x512xf32>
    %321 = arith.negf %320 : vector<8x512xf32>
    %322 = math.exp %321 : vector<8x512xf32>
    %cst_96 = arith.constant 1.000000e+00 : f32
    %323 = vector.broadcast %cst_96 : f32 to vector<8x512xf32>
    %324 = arith.addf %323, %322 : vector<8x512xf32>
    %325 = arith.divf %323, %324 : vector<8x512xf32>
    %326 = vector.extract_strided_slice %325 {offsets = [0, 0], sizes = [8, 128], strides = [1, 1]} : vector<8x512xf32> to vector<8x128xf32>
    %327 = vector.extract_strided_slice %325 {offsets = [0, 128], sizes = [8, 128], strides = [1, 1]} : vector<8x512xf32> to vector<8x128xf32>
    %328 = vector.extract_strided_slice %325 {offsets = [0, 256], sizes = [8, 128], strides = [1, 1]} : vector<8x512xf32> to vector<8x128xf32>
    %329 = vector.extract_strided_slice %325 {offsets = [0, 384], sizes = [8, 128], strides = [1, 1]} : vector<8x512xf32> to vector<8x128xf32>
    %cst_97 = arith.constant 2.000000e+00 : f32
    %330 = vector.broadcast %cst_97 : f32 to vector<8x128xf32>
    %331 = arith.mulf %330, %329 : vector<8x128xf32>
    %cst_98 = arith.constant 1.000000e+00 : f32
    %332 = vector.broadcast %cst_98 : f32 to vector<8x128xf32>
    %333 = arith.subf %331, %332 : vector<8x128xf32>
    %334 = arith.mulf %327, %312 : vector<8x128xf32>
    %335 = arith.mulf %326, %333 : vector<8x128xf32>
    %336 = arith.addf %334, %335 : vector<8x128xf32>
    %337 = math.tanh %336 : vector<8x128xf32>
    %338 = arith.mulf %328, %337 : vector<8x128xf32>
    %c640 = arith.constant 640 : index
    %c0_99 = arith.constant 0 : index
    %339 = vector.load %arg8[%c640, %c0_99] : memref<1024x128xf32, #tpu.memory_space<vmem>>, vector<128x128xf32>
    %cst_100 = arith.constant dense<0.000000e+00> : vector<8x128xf32>
    %340 = tpu.matmul %338, %339, %cst_100 {dimension_numbers = #tpu.dot_dimension_numbers<[1], [0], [0], [1], [0, 0, 1, 1], [], []>} : vector<8x128xf32>, vector<128x128xf32>, vector<8x128xf32> -> vector<8x128xf32>
    %341 = arith.addf %317, %340 : vector<8x128xf32>
    %342 = vector.extract_strided_slice %194 {offsets = [48, 0], sizes = [8, 512], strides = [1, 1]} : vector<64x512xf32> to vector<8x512xf32>
    %cst_101 = arith.constant dense<0.000000e+00> : vector<8x512xf32>
    %343 = tpu.matmul %338, %195, %cst_101 {dimension_numbers = #tpu.dot_dimension_numbers<[1], [0], [0], [1], [0, 0, 1, 1], [], []>} : vector<8x128xf32>, vector<128x512xf32>, vector<8x512xf32> -> vector<8x512xf32>
    %344 = arith.addf %342, %343 : vector<8x512xf32>
    %345 = arith.negf %344 : vector<8x512xf32>
    %346 = math.exp %345 : vector<8x512xf32>
    %cst_102 = arith.constant 1.000000e+00 : f32
    %347 = vector.broadcast %cst_102 : f32 to vector<8x512xf32>
    %348 = arith.addf %347, %346 : vector<8x512xf32>
    %349 = arith.divf %347, %348 : vector<8x512xf32>
    %350 = vector.extract_strided_slice %349 {offsets = [0, 0], sizes = [8, 128], strides = [1, 1]} : vector<8x512xf32> to vector<8x128xf32>
    %351 = vector.extract_strided_slice %349 {offsets = [0, 128], sizes = [8, 128], strides = [1, 1]} : vector<8x512xf32> to vector<8x128xf32>
    %352 = vector.extract_strided_slice %349 {offsets = [0, 256], sizes = [8, 128], strides = [1, 1]} : vector<8x512xf32> to vector<8x128xf32>
    %353 = vector.extract_strided_slice %349 {offsets = [0, 384], sizes = [8, 128], strides = [1, 1]} : vector<8x512xf32> to vector<8x128xf32>
    %cst_103 = arith.constant 2.000000e+00 : f32
    %354 = vector.broadcast %cst_103 : f32 to vector<8x128xf32>
    %355 = arith.mulf %354, %353 : vector<8x128xf32>
    %cst_104 = arith.constant 1.000000e+00 : f32
    %356 = vector.broadcast %cst_104 : f32 to vector<8x128xf32>
    %357 = arith.subf %355, %356 : vector<8x128xf32>
    %358 = arith.mulf %351, %336 : vector<8x128xf32>
    %359 = arith.mulf %350, %357 : vector<8x128xf32>
    %360 = arith.addf %358, %359 : vector<8x128xf32>
    %361 = math.tanh %360 : vector<8x128xf32>
    %362 = arith.mulf %352, %361 : vector<8x128xf32>
    %c768 = arith.constant 768 : index
    %c0_105 = arith.constant 0 : index
    %363 = vector.load %arg8[%c768, %c0_105] : memref<1024x128xf32, #tpu.memory_space<vmem>>, vector<128x128xf32>
    %cst_106 = arith.constant dense<0.000000e+00> : vector<8x128xf32>
    %364 = tpu.matmul %362, %363, %cst_106 {dimension_numbers = #tpu.dot_dimension_numbers<[1], [0], [0], [1], [0, 0, 1, 1], [], []>} : vector<8x128xf32>, vector<128x128xf32>, vector<8x128xf32> -> vector<8x128xf32>
    %365 = arith.addf %341, %364 : vector<8x128xf32>
    %366 = vector.extract_strided_slice %194 {offsets = [56, 0], sizes = [8, 512], strides = [1, 1]} : vector<64x512xf32> to vector<8x512xf32>
    %cst_107 = arith.constant dense<0.000000e+00> : vector<8x512xf32>
    %367 = tpu.matmul %362, %195, %cst_107 {dimension_numbers = #tpu.dot_dimension_numbers<[1], [0], [0], [1], [0, 0, 1, 1], [], []>} : vector<8x128xf32>, vector<128x512xf32>, vector<8x512xf32> -> vector<8x512xf32>
    %368 = arith.addf %366, %367 : vector<8x512xf32>
    %369 = arith.negf %368 : vector<8x512xf32>
    %370 = math.exp %369 : vector<8x512xf32>
    %cst_108 = arith.constant 1.000000e+00 : f32
    %371 = vector.broadcast %cst_108 : f32 to vector<8x512xf32>
    %372 = arith.addf %371, %370 : vector<8x512xf32>
    %373 = arith.divf %371, %372 : vector<8x512xf32>
    %374 = vector.extract_strided_slice %373 {offsets = [0, 0], sizes = [8, 128], strides = [1, 1]} : vector<8x512xf32> to vector<8x128xf32>
    %375 = vector.extract_strided_slice %373 {offsets = [0, 128], sizes = [8, 128], strides = [1, 1]} : vector<8x512xf32> to vector<8x128xf32>
    %376 = vector.extract_strided_slice %373 {offsets = [0, 256], sizes = [8, 128], strides = [1, 1]} : vector<8x512xf32> to vector<8x128xf32>
    %377 = vector.extract_strided_slice %373 {offsets = [0, 384], sizes = [8, 128], strides = [1, 1]} : vector<8x512xf32> to vector<8x128xf32>
    %cst_109 = arith.constant 2.000000e+00 : f32
    %378 = vector.broadcast %cst_109 : f32 to vector<8x128xf32>
    %379 = arith.mulf %378, %377 : vector<8x128xf32>
    %cst_110 = arith.constant 1.000000e+00 : f32
    %380 = vector.broadcast %cst_110 : f32 to vector<8x128xf32>
    %381 = arith.subf %379, %380 : vector<8x128xf32>
    %382 = arith.mulf %375, %360 : vector<8x128xf32>
    %383 = arith.mulf %374, %381 : vector<8x128xf32>
    %384 = arith.addf %382, %383 : vector<8x128xf32>
    %385 = math.tanh %384 : vector<8x128xf32>
    %386 = arith.mulf %376, %385 : vector<8x128xf32>
    %c896 = arith.constant 896 : index
    %c0_111 = arith.constant 0 : index
    %387 = vector.load %arg8[%c896, %c0_111] : memref<1024x128xf32, #tpu.memory_space<vmem>>, vector<128x128xf32>
    %cst_112 = arith.constant dense<0.000000e+00> : vector<8x128xf32>
    %388 = tpu.matmul %386, %387, %cst_112 {dimension_numbers = #tpu.dot_dimension_numbers<[1], [0], [0], [1], [0, 0, 1, 1], [], []>} : vector<8x128xf32>, vector<128x128xf32>, vector<8x128xf32> -> vector<8x128xf32>
    %389 = arith.addf %365, %388 : vector<8x128xf32>
    %c0_113 = arith.constant 0 : index
    %c0_114 = arith.constant 0 : index
    %c0_115 = arith.constant 0 : index
    %390 = vector.load %arg10[%c0_113, %c0_114, %c0_115] : memref<1x8x128xf32, #tpu.memory_space<vmem>>, vector<1x8x128xf32>
    %391 = vector.shape_cast %390 : vector<1x8x128xf32> to vector<8x128xf32>
    %392 = vector.shape_cast %389 : vector<8x128xf32> to vector<1x8x128xf32>
    tpu.vector_store %arg10[%c0_113, %c0_114, %c0_115], %392 {strides = array<i32>} : memref<1x8x128xf32, #tpu.memory_space<vmem>>, vector<1x8x128xf32>,
    return
  }
  func.func @transform_0(%arg0: i32) -> (i32, i32, i32) {
    %c0_i32 = arith.constant 0 : i32
    %c0_i32_0 = arith.constant 0 : i32
    %c0_i32_1 = arith.constant 0 : i32
    return %arg0, %c0_i32, %c0_i32_0 : i32, i32, i32
  }
  func.func @transform_1(%arg0: i32) -> (i32, i32) {
    %c0_i32 = arith.constant 0 : i32
    %c0_i32_0 = arith.constant 0 : i32
    %c0_i32_1 = arith.constant 0 : i32
    return %c0_i32, %c0_i32_0 : i32, i32
  }
  func.func @transform_2(%arg0: i32) -> (i32, i32) {
    %c0_i32 = arith.constant 0 : i32
    %c0_i32_0 = arith.constant 0 : i32
    %c0_i32_1 = arith.constant 0 : i32
    return %c0_i32, %c0_i32_0 : i32, i32
  }
  func.func @transform_3(%arg0: i32) -> (i32, i32) {
    %c0_i32 = arith.constant 0 : i32
    %c0_i32_0 = arith.constant 0 : i32
    %c0_i32_1 = arith.constant 0 : i32
    return %c0_i32, %c0_i32_0 : i32, i32
  }
  func.func @transform_4(%arg0: i32) -> (i32, i32) {
    %c0_i32 = arith.constant 0 : i32
    %c0_i32_0 = arith.constant 0 : i32
    %c0_i32_1 = arith.constant 0 : i32
    return %c0_i32, %c0_i32_0 : i32, i32
  }
  func.func @transform_5(%arg0: i32) -> (i32, i32) {
    %c0_i32 = arith.constant 0 : i32
    %c0_i32_0 = arith.constant 0 : i32
    %c0_i32_1 = arith.constant 0 : i32
    return %c0_i32, %c0_i32_0 : i32, i32
  }
  func.func @transform_6(%arg0: i32) -> (i32, i32) {
    %c0_i32 = arith.constant 0 : i32
    %c0_i32_0 = arith.constant 0 : i32
    %c0_i32_1 = arith.constant 0 : i32
    return %c0_i32, %c0_i32_0 : i32, i32
  }
  func.func @transform_7(%arg0: i32) -> (i32, i32) {
    %c0_i32 = arith.constant 0 : i32
    %c0_i32_0 = arith.constant 0 : i32
    %c0_i32_1 = arith.constant 0 : i32
    return %c0_i32, %c0_i32_0 : i32, i32
  }
  func.func @transform_8(%arg0: i32) -> (i32, i32) {
    %c0_i32 = arith.constant 0 : i32
    %c0_i32_0 = arith.constant 0 : i32
    %c0_i32_1 = arith.constant 0 : i32
    return %c0_i32, %c0_i32_0 : i32, i32
  }
  func.func @transform_9(%arg0: i32) -> (i32, i32, i32) {
    %c0_i32 = arith.constant 0 : i32
    %c0_i32_0 = arith.constant 0 : i32
    %c0_i32_1 = arith.constant 0 : i32
    return %arg0, %c0_i32, %c0_i32_0 : i32, i32, i32
  }
}

</mosaic_0001>

<llo_original>
// kernel: normal_lstm_forward.1
$region0: #{normal_lstm_forward.1}
  #allocation0 [shape = 'u32[]', space=smem, size = 0x4, offset = 0x4, fixed_abs, tag = 'smem constant byte address 0x4 - core index']
  #allocation1 [shape = 'u32[144,128]{1,0:T(1,128)}', space=vmem, size = 0x12000, scoped, tag = 'internal scratch']
  #allocation2 [shape = 'f32[64,128]{1,0:T(8,128)}', space=vmem, size = 0x8000, scoped, tag = 'scratch operand']
  %s0 = inlined_call_operand.vmem [shape: f32[1,64,32], index: 0, kind: input, shape index: {}]
  %s1 = inlined_call_operand.vmem [shape: f32[32,512], index: 1, kind: input, shape index: {}]
  %s2 = inlined_call_operand.hbm [shape: f32[128,512], index: 2, kind: input, shape index: {}]
  %s3 = inlined_call_operand.vmem [shape: f32[1,512], index: 3, kind: input, shape index: {}]
  %s4 = inlined_call_operand.hbm [shape: f32[128,512], index: 4, kind: input, shape index: {}]
  %s5 = inlined_call_operand.hbm [shape: f32[128,512], index: 5, kind: input, shape index: {}]
  %s6 = inlined_call_operand.vmem [shape: f32[1,512], index: 6, kind: input, shape index: {}]
  %s7 = inlined_call_operand.hbm [shape: f32[1024,128], index: 7, kind: input, shape index: {}]
  %s8 = inlined_call_operand.vmem [shape: f32[1,128], index: 8, kind: input, shape index: {}]
  %s9 = inlined_call_operand.vmem [shape: f32[1,8,128], index: 9, kind: output, shape index: {}]
  %s10 = sld [smem:[#allocation0]]
  $region62: #{normal_lstm_forward.1} parent=0
    _
  %s12 = ssub.s32 1, %s10
  %s13 = scalar_select 0, %s12, %s10
  $region1: #{normal_lstm_forward.1} parent=0
    #allocation3 [shape = 'u8[262144]{0}', space=vmem, size = 0x40000, scoped, tag = 'input window, operand 2, single buffered']
    #allocation4 [shape = 's32[1]{0}', space=sflag, size = 0x4, scoped, tag = 'scoped memory for normal_lstm_forward.1']
    #allocation5 [shape = 'u8[262144]{0}', space=vmem, size = 0x40000, scoped, tag = 'input window, operand 4, single buffered']
    #allocation6 [shape = 's32[1]{0}', space=sflag, size = 0x4, scoped, tag = 'scoped memory for normal_lstm_forward.1']
    #allocation7 [shape = 'u8[262144]{0}', space=vmem, size = 0x40000, scoped, tag = 'input window, operand 5, single buffered']
    #allocation8 [shape = 'u8[524288]{0}', space=vmem, size = 0x80000, scoped, tag = 'input window, operand 7, single buffered']
    #allocation9 [shape = 's32[1]{0}', space=sflag, size = 0x4, scoped, tag = 'scoped memory for normal_lstm_forward.1']
    %14 = vsyncpa [#allocation4], 0
    %15 = vsyncpa [#allocation6], 0
    %16 = vsyncpa [#allocation9], 0
    // Predicated region
    $region2: #{normal_lstm_forward.1} parent=1 // pred_check
      _
    $region3: #{normal_lstm_forward.1} parent=1 // pred_check_branch
      %18 = sbr.rel (0) target = $region5
    $region4: #{normal_lstm_forward.1} parent=1 // pred_region
      _
    $region5: #{normal_lstm_forward.1} parent=1 // pred_fallthru
      _
    // Predicated region
    $region6: #{normal_lstm_forward.1} parent=1 // pred_check
      _
    $region7: #{normal_lstm_forward.1} parent=1 // pred_check_branch
      %20 = sbr.rel (0) target = $region9
    $region8: #{normal_lstm_forward.1} parent=1 // pred_region
      _
    $region9: #{normal_lstm_forward.1} parent=1 // pred_fallthru
      _
    // Predicated region
    $region10: #{normal_lstm_forward.1} parent=1 // pred_check
      _
    $region11: #{normal_lstm_forward.1} parent=1 // pred_check_branch
      %22 = sbr.rel (0) target = $region13
    $region12: #{normal_lstm_forward.1} parent=1 // pred_region
      %s24 = ssub.s32 8192, 8192
      %25 = vsyncadd [#allocation4], %s24
      %s26 = sshll.u32 [#allocation3], 4
      %s27 = int_to_ptr.vmem [resolvable:$true] %s26
      %32 = dma.hbm_to_vmem [thread:$0]  %s2, 8192, %s27, [#allocation4], 512, 512, 32
    $region13: #{normal_lstm_forward.1} parent=1 // pred_fallthru
      _
    // Predicated region
    $region14: #{normal_lstm_forward.1} parent=1 // pred_check
      _
    $region15: #{normal_lstm_forward.1} parent=1 // pred_check_branch
      %34 = sbr.rel (0) target = $region17
    $region16: #{normal_lstm_forward.1} parent=1 // pred_region
      _
    $region17: #{normal_lstm_forward.1} parent=1 // pred_fallthru
      _
    // Predicated region
    $region18: #{normal_lstm_forward.1} parent=1 // pred_check
      _
    $region19: #{normal_lstm_forward.1} parent=1 // pred_check_branch
      %36 = sbr.rel (0) target = $region21
    $region20: #{normal_lstm_forward.1} parent=1 // pred_region
      %s38 = ssub.s32 8192, 8192
      %39 = vsyncadd [#allocation6], %s38
      %s40 = sshll.u32 [#allocation5], 4
      %s41 = int_to_ptr.vmem [resolvable:$true] %s40
      %46 = dma.hbm_to_vmem [thread:$0]  %s4, 8192, %s41, [#allocation6], 512, 512, 32
    $region21: #{normal_lstm_forward.1} parent=1 // pred_fallthru
      _
    // Predicated region
    $region22: #{normal_lstm_forward.1} parent=1 // pred_check
      _
    $region23: #{normal_lstm_forward.1} parent=1 // pred_check_branch
      %48 = sbr.rel (0) target = $region25
    $region24: #{normal_lstm_forward.1} parent=1 // pred_region
      %s50 = ssub.s32 8192, 8192
      %51 = vsyncadd [#allocation6], %s50
      %s52 = sshll.u32 [#allocation7], 4
      %s53 = int_to_ptr.vmem [resolvable:$true] %s52
      %58 = dma.hbm_to_vmem [thread:$0]  %s5, 8192, %s53, [#allocation6], 512, 512, 32
    $region25: #{normal_lstm_forward.1} parent=1 // pred_fallthru
      _
    // Predicated region
    $region26: #{normal_lstm_forward.1} parent=1 // pred_check
      _
    $region27: #{normal_lstm_forward.1} parent=1 // pred_check_branch
      %60 = sbr.rel (0) target = $region29
    $region28: #{normal_lstm_forward.1} parent=1 // pred_region
      _
    $region29: #{normal_lstm_forward.1} parent=1 // pred_fallthru
      _
    // Predicated region
    $region30: #{normal_lstm_forward.1} parent=1 // pred_check
      _
    $region31: #{normal_lstm_forward.1} parent=1 // pred_check_branch
      %62 = sbr.rel (0) target = $region33
    $region32: #{normal_lstm_forward.1} parent=1 // pred_region
      %s64 = ssub.s32 16384, 16384
      %65 = vsyncadd [#allocation9], %s64
      %s66 = sshll.u32 [#allocation8], 4
      %s67 = int_to_ptr.vmem [resolvable:$true] %s66
      %72 = dma.hbm_to_vmem [thread:$0]  %s7, 16384, %s67, [#allocation9], 128, 128, 8
    $region33: #{normal_lstm_forward.1} parent=1 // pred_fallthru
      _
    // Predicated region
    $region34: #{normal_lstm_forward.1} parent=1 // pred_check
      _
    $region35: #{normal_lstm_forward.1} parent=1 // pred_check_branch
      %74 = sbr.rel (0) target = $region37
    $region36: #{normal_lstm_forward.1} parent=1 // pred_region
      _
    $region37: #{normal_lstm_forward.1} parent=1 // pred_fallthru
      _
    // Predicated region
    $region38: #{normal_lstm_forward.1} parent=1 // pred_check
      _
    $region39: #{normal_lstm_forward.1} parent=1 // pred_check_branch
      %76 = sbr.rel (0) target = $region41
    $region40: #{normal_lstm_forward.1} parent=1 // pred_region
      %77 = dma.done [#allocation4], 8192
    $region41: #{normal_lstm_forward.1} parent=1 // pred_fallthru
      _
    // Predicated region
    $region42: #{normal_lstm_forward.1} parent=1 // pred_check
      _
    $region43: #{normal_lstm_forward.1} parent=1 // pred_check_branch
      %79 = sbr.rel (0) target = $region45
    $region44: #{normal_lstm_forward.1} parent=1 // pred_region
      %80 = dma.done [#allocation6], 8192
    $region45: #{normal_lstm_forward.1} parent=1 // pred_fallthru
      _
    // Predicated region
    $region46: #{normal_lstm_forward.1} parent=1 // pred_check
      _
    $region47: #{normal_lstm_forward.1} parent=1 // pred_check_branch
      %82 = sbr.rel (0) target = $region49
    $region48: #{normal_lstm_forward.1} parent=1 // pred_region
      %83 = dma.done [#allocation6], 8192
    $region49: #{normal_lstm_forward.1} parent=1 // pred_fallthru
      _
    // Predicated region
    $region50: #{normal_lstm_forward.1} parent=1 // pred_check
      _
    $region51: #{normal_lstm_forward.1} parent=1 // pred_check_branch
      %85 = sbr.rel (0) target = $region53
    $region52: #{normal_lstm_forward.1} parent=1 // pred_region
      %86 = dma.done [#allocation9], 16384
    $region53: #{normal_lstm_forward.1} parent=1 // pred_fallthru
      _
    %v87 = vld [vmem:[%s8] sm:$0x1]
    %v89 = vlaneseq
    %v90 = vshrl.u32 %v89, 7
    %v91 = vsub.s32 0, %v90
    %v92 = vrot.slane %v87, %v91
    %v94 = vld [vmem:[%s0] sm:$0xff]
    %v95 = vld [vmem:[%s0 + $0x8] sm:$0xff]
    %v96 = vld [vmem:[%s0 + $0x10] sm:$0xff]
    %v97 = vld [vmem:[%s0 + $0x18] sm:$0xff]
    %v98 = vld [vmem:[%s0 + $0x20] sm:$0xff]
    %v99 = vld [vmem:[%s0 + $0x28] sm:$0xff]
    %v100 = vld [vmem:[%s0 + $0x30] sm:$0xff]
    %v101 = vld [vmem:[%s0 + $0x38] sm:$0xff]
    %v102 = vld [vmem:[%s1] sm:$0xff]
    %v103 = vld [vmem:[%s1 + $0x8] sm:$0xff]
    %v104 = vld [vmem:[%s1 + $0x10] sm:$0xff]
    %v105 = vld [vmem:[%s1 + $0x18] sm:$0xff]
    %v106 = vld [vmem:[%s1 + $0x20] sm:$0xff]
    %v107 = vld [vmem:[%s1 + $0x28] sm:$0xff]
    %v108 = vld [vmem:[%s1 + $0x30] sm:$0xff]
    %v109 = vld [vmem:[%s1 + $0x38] sm:$0xff]
    %v110 = vld [vmem:[%s1 + $0x40] sm:$0xff]
    %v111 = vld [vmem:[%s1 + $0x48] sm:$0xff]
    %v112 = vld [vmem:[%s1 + $0x50] sm:$0xff]
    %v113 = vld [vmem:[%s1 + $0x58] sm:$0xff]
    %v114 = vld [vmem:[%s1 + $0x60] sm:$0xff]
    %v115 = vld [vmem:[%s1 + $0x68] sm:$0xff]
    %v116 = vld [vmem:[%s1 + $0x70] sm:$0xff]
    %v117 = vld [vmem:[%s1 + $0x78] sm:$0xff]
    %v118 = vld [vmem:[%s3] sm:$0xf]
    %v120 = vlaneseq
    %v121 = vshrl.u32 %v120, 7
    %v122 = vsub.s32 0, %v121
    %v123 = vrot.slane %v118, %v122
    %v124 = vlaneseq
    %v125 = vshrl.u32 %v124, 7
    %v126 = vsub.s32 1, %v125
    %v127 = vrot.slane %v118, %v126
    %v128 = vlaneseq
    %v129 = vshrl.u32 %v128, 7
    %v130 = vsub.s32 2, %v129
    %v131 = vrot.slane %v118, %v130
    %v132 = vlaneseq
    %v133 = vshrl.u32 %v132, 7
    %v134 = vsub.s32 3, %v133
    %v135 = vrot.slane %v118, %v134
    %vm140 = vcmask 261120
    %v142 = vsel %vm140, %v94, 0
    %v145 = vsel %vm140, %v95, 0
    %v148 = vsel %vm140, %v96, 0
    %v151 = vsel %vm140, %v97, 0
    %v154 = vsel %vm140, %v98, 0
    %v157 = vsel %vm140, %v99, 0
    %v160 = vsel %vm140, %v100, 0
    %v163 = vsel %vm140, %v101, 0
    %165 = vmatprep.subr.mxu0 0.0
    %166 = vmatpush1.msra.mxu0 0.0
    %167 = vmatprep.subr.mxu0 0.0
    %168 = vmatpush1.msra.mxu0 0.0
    %169 = vmatprep.subr.mxu0 0.0
    %170 = vmatpush1.msra.mxu0 0.0
    %171 = vmatprep.subr.mxu0 0.0
    %172 = vmatpush1.msra.mxu0 0.0
    %173 = vmatprep.subr.mxu0 0.0
    %174 = vmatpush1.msra.mxu0 0.0
    %175 = vmatprep.subr.mxu0 0.0
    %176 = vmatpush1.msra.mxu0 0.0
    %177 = vmatprep.subr.mxu0 0.0
    %178 = vmatpush1.msra.mxu0 0.0
    %179 = vmatprep.subr.mxu0 0.0
    %180 = vmatpush1.msra.mxu0 0.0
    %181 = vmatprep.subr.mxu0 0.0
    %182 = vmatpush1.msra.mxu0 0.0
    %183 = vmatprep.subr.mxu0 0.0
    %184 = vmatpush1.msra.mxu0 0.0
    %185 = vmatprep.subr.mxu0 0.0
    %186 = vmatpush1.msra.mxu0 0.0
    %187 = vmatprep.subr.mxu0 0.0
    %188 = vmatpush1.msra.mxu0 0.0
    %189 = vmatprep.subr.mxu0 %v115
    %190 = vmatpush1.msra.mxu0 %v114
    %191 = vmatprep.subr.mxu0 %v111
    %192 = vmatpush1.msra.mxu0 %v110
    %193 = vmatprep.subr.mxu0 %v107
    %194 = vmatpush1.msra.mxu0 %v106
    %195 = vmatprep.subr.mxu0 %v103
    %196 = vmatpush1.msra.mxu0 %v102
    %197 = vmatprep.subr.mxu0 0.0
    %198 = vmatpush2.msra.mxu0 0.0
    %199 = vmatprep.subr.mxu0 0.0
    %200 = vmatpush2.msra.mxu0 0.0
    %201 = vmatprep.subr.mxu0 0.0
    %202 = vmatpush2.msra.mxu0 0.0
    %203 = vmatprep.subr.mxu0 0.0
    %204 = vmatpush2.msra.mxu0 0.0
    %205 = vmatprep.subr.mxu0 0.0
    %206 = vmatpush2.msra.mxu0 0.0
    %207 = vmatprep.subr.mxu0 0.0
    %208 = vmatpush2.msra.mxu0 0.0
    %209 = vmatprep.subr.mxu0 0.0
    %210 = vmatpush2.msra.mxu0 0.0
    %211 = vmatprep.subr.mxu0 0.0
    %212 = vmatpush2.msra.mxu0 0.0
    %213 = vmatprep.subr.mxu0 0.0
    %214 = vmatpush2.msra.mxu0 0.0
    %215 = vmatprep.subr.mxu0 0.0
    %216 = vmatpush2.msra.mxu0 0.0
    %217 = vmatprep.subr.mxu0 0.0
    %218 = vmatpush2.msra.mxu0 0.0
    %219 = vmatprep.subr.mxu0 0.0
    %220 = vmatpush2.msra.mxu0 0.0
    %221 = vmatprep.subr.mxu0 0.0
    %222 = vmatpush2.msra.mxu0 0.0
    %223 = vmatprep.subr.mxu0 0.0
    %224 = vmatpush2.msra.mxu0 0.0
    %225 = vmatprep.subr.mxu0 0.0
    %226 = vmatpush2.msra.mxu0 0.0
    %227 = vmatprep.subr.mxu0 0.0
    %228 = vmatpush2.msra.mxu0 0.0
    %229 = vmatprep.mubr.f32.mxu0 0.0
    %230 = vmatmul.mubr.f32.gmra.mxu0 %v142
    %v231 = vpop.f32.mrf.mxu0
    %v232 = vadd.f32 %v123, %v231
    %v233 = vpop.f32.mrf.mxu0
    %v234 = vadd.f32 %v127, %v233
    %235 = vmatprep.mubr.f32.mxu0 0.0
    %236 = vmatmul.mubr.f32.gmra.mxu0 %v145
    %v237 = vpop.f32.mrf.mxu0
    %v238 = vadd.f32 %v123, %v237
    %v239 = vpop.f32.mrf.mxu0
    %v240 = vadd.f32 %v127, %v239
    %241 = vmatprep.mubr.f32.mxu0 0.0
    %242 = vmatmul.mubr.f32.gmra.mxu0 %v148
    %v243 = vpop.f32.mrf.mxu0
    %v244 = vadd.f32 %v123, %v243
    %v245 = vpop.f32.mrf.mxu0
    %v246 = vadd.f32 %v127, %v245
    %247 = vmatprep.mubr.f32.mxu0 0.0
    %248 = vmatmul.mubr.f32.gmra.mxu0 %v151
    %v249 = vpop.f32.mrf.mxu0
    %v250 = vadd.f32 %v123, %v249
    %v251 = vpop.f32.mrf.mxu0
    %v252 = vadd.f32 %v127, %v251
    %253 = vmatprep.mubr.f32.mxu0 0.0
    %254 = vmatmul.mubr.f32.gmra.mxu0 %v154
    %v255 = vpop.f32.mrf.mxu0
    %v256 = vadd.f32 %v123, %v255
    %v257 = vpop.f32.mrf.mxu0
    %v258 = vadd.f32 %v127, %v257
    %259 = vmatprep.mubr.f32.mxu0 0.0
    %260 = vmatmul.mubr.f32.gmra.mxu0 %v157
    %v261 = vpop.f32.mrf.mxu0
    %v262 = vadd.f32 %v123, %v261
    %v263 = vpop.f32.mrf.mxu0
    %v264 = vadd.f32 %v127, %v263
    %265 = vmatprep.mubr.f32.mxu0 0.0
    %266 = vmatmul.mubr.f32.gmra.mxu0 %v160
    %v267 = vpop.f32.mrf.mxu0
    %v268 = vadd.f32 %v123, %v267
    %v269 = vpop.f32.mrf.mxu0
    %v270 = vadd.f32 %v127, %v269
    %271 = vmatprep.mubr.f32.mxu0 0.0
    %272 = vmatmul.mubr.f32.gmra.mxu0 %v163
    %v273 = vpop.f32.mrf.mxu0
    %v274 = vadd.f32 %v123, %v273
    %v275 = vpop.f32.mrf.mxu0
    %v276 = vadd.f32 %v127, %v275
    %277 = vdwg.mxu0
    %278 = vmatprep.subr.mxu0 0.0
    %279 = vmatpush1.msra.mxu0 0.0
    %280 = vmatprep.subr.mxu0 0.0
    %281 = vmatpush1.msra.mxu0 0.0
    %282 = vmatprep.subr.mxu0 0.0
    %283 = vmatpush1.msra.mxu0 0.0
    %284 = vmatprep.subr.mxu0 0.0
    %285 = vmatpush1.msra.mxu0 0.0
    %286 = vmatprep.subr.mxu0 0.0
    %287 = vmatpush1.msra.mxu0 0.0
    %288 = vmatprep.subr.mxu0 0.0
    %289 = vmatpush1.msra.mxu0 0.0
    %290 = vmatprep.subr.mxu0 0.0
    %291 = vmatpush1.msra.mxu0 0.0
    %292 = vmatprep.subr.mxu0 0.0
    %293 = vmatpush1.msra.mxu0 0.0
    %294 = vmatprep.subr.mxu0 0.0
    %295 = vmatpush1.msra.mxu0 0.0
    %296 = vmatprep.subr.mxu0 0.0
    %297 = vmatpush1.msra.mxu0 0.0
    %298 = vmatprep.subr.mxu0 0.0
    %299 = vmatpush1.msra.mxu0 0.0
    %300 = vmatprep.subr.mxu0 0.0
    %301 = vmatpush1.msra.mxu0 0.0
    %302 = vmatprep.subr.mxu0 %v117
    %303 = vmatpush1.msra.mxu0 %v116
    %304 = vmatprep.subr.mxu0 %v113
    %305 = vmatpush1.msra.mxu0 %v112
    %306 = vmatprep.subr.mxu0 %v109
    %307 = vmatpush1.msra.mxu0 %v108
    %308 = vmatprep.subr.mxu0 %v105
    %309 = vmatpush1.msra.mxu0 %v104
    %310 = vmatprep.subr.mxu0 0.0
    %311 = vmatpush2.msra.mxu0 0.0
    %312 = vmatprep.subr.mxu0 0.0
    %313 = vmatpush2.msra.mxu0 0.0
    %314 = vmatprep.subr.mxu0 0.0
    %315 = vmatpush2.msra.mxu0 0.0
    %316 = vmatprep.subr.mxu0 0.0
    %317 = vmatpush2.msra.mxu0 0.0
    %318 = vmatprep.subr.mxu0 0.0
    %319 = vmatpush2.msra.mxu0 0.0
    %320 = vmatprep.subr.mxu0 0.0
    %321 = vmatpush2.msra.mxu0 0.0
    %322 = vmatprep.subr.mxu0 0.0
    %323 = vmatpush2.msra.mxu0 0.0
    %324 = vmatprep.subr.mxu0 0.0
    %325 = vmatpush2.msra.mxu0 0.0
    %326 = vmatprep.subr.mxu0 0.0
    %327 = vmatpush2.msra.mxu0 0.0
    %328 = vmatprep.subr.mxu0 0.0
    %329 = vmatpush2.msra.mxu0 0.0
    %330 = vmatprep.subr.mxu0 0.0
    %331 = vmatpush2.msra.mxu0 0.0
    %332 = vmatprep.subr.mxu0 0.0
    %333 = vmatpush2.msra.mxu0 0.0
    %334 = vmatprep.subr.mxu0 0.0
    %335 = vmatpush2.msra.mxu0 0.0
    %336 = vmatprep.subr.mxu0 0.0
    %337 = vmatpush2.msra.mxu0 0.0
    %338 = vmatprep.subr.mxu0 0.0
    %339 = vmatpush2.msra.mxu0 0.0
    %340 = vmatprep.subr.mxu0 0.0
    %341 = vmatpush2.msra.mxu0 0.0
    %342 = vmatprep.mubr.f32.mxu0 0.0
    %343 = vmatmul.mubr.f32.gmra.mxu0 %v142
    %v344 = vpop.f32.mrf.mxu0
    %v345 = vadd.f32 %v131, %v344
    %v346 = vpop.f32.mrf.mxu0
    %v347 = vadd.f32 %v135, %v346
    %348 = vmatprep.mubr.f32.mxu0 0.0
    %349 = vmatmul.mubr.f32.gmra.mxu0 %v145
    %v350 = vpop.f32.mrf.mxu0
    %v351 = vadd.f32 %v131, %v350
    %v352 = vpop.f32.mrf.mxu0
    %v353 = vadd.f32 %v135, %v352
    %354 = vmatprep.mubr.f32.mxu0 0.0
    %355 = vmatmul.mubr.f32.gmra.mxu0 %v148
    %v356 = vpop.f32.mrf.mxu0
    %v357 = vadd.f32 %v131, %v356
    %v358 = vpop.f32.mrf.mxu0
    %v359 = vadd.f32 %v135, %v358
    %360 = vmatprep.mubr.f32.mxu0 0.0
    %361 = vmatmul.mubr.f32.gmra.mxu0 %v151
    %v362 = vpop.f32.mrf.mxu0
    %v363 = vadd.f32 %v131, %v362
    %v364 = vpop.f32.mrf.mxu0
    %v365 = vadd.f32 %v135, %v364
    %366 = vmatprep.mubr.f32.mxu0 0.0
    %367 = vmatmul.mubr.f32.gmra.mxu0 %v154
    %v368 = vpop.f32.mrf.mxu0
    %v369 = vadd.f32 %v131, %v368
    %v370 = vpop.f32.mrf.mxu0
    %v371 = vadd.f32 %v135, %v370
    %372 = vmatprep.mubr.f32.mxu0 0.0
    %373 = vmatmul.mubr.f32.gmra.mxu0 %v157
    %v374 = vpop.f32.mrf.mxu0
    %v375 = vadd.f32 %v131, %v374
    %v376 = vpop.f32.mrf.mxu0
    %v377 = vadd.f32 %v135, %v376
    %378 = vmatprep.mubr.f32.mxu0 0.0
    %379 = vmatmul.mubr.f32.gmra.mxu0 %v160
    %v380 = vpop.f32.mrf.mxu0
    %v381 = vadd.f32 %v131, %v380
    %v382 = vpop.f32.mrf.mxu0
    %v383 = vadd.f32 %v135, %v382
    %384 = vmatprep.mubr.f32.mxu0 0.0
    %385 = vmatmul.mubr.f32.gmra.mxu0 %v163
    %v386 = vpop.f32.mrf.mxu0
    %v387 = vadd.f32 %v131, %v386
    %v388 = vpop.f32.mrf.mxu0
    %v389 = vadd.f32 %v135, %v388
    %390 = vdwg.mxu0
    %v391 = vld [vmem:[#allocation3] sm:$0xff]
    %v392 = vld [vmem:[#allocation3 + $0x8] sm:$0xff]
    %v393 = vld [vmem:[#allocation3 + $0x10] sm:$0xff]
    %v394 = vld [vmem:[#allocation3 + $0x18] sm:$0xff]
    %v395 = vld [vmem:[#allocation3 + $0x20] sm:$0xff]
    %v396 = vld [vmem:[#allocation3 + $0x28] sm:$0xff]
    %v397 = vld [vmem:[#allocation3 + $0x30] sm:$0xff]
    %v398 = vld [vmem:[#allocation3 + $0x38] sm:$0xff]
    %v399 = vld [vmem:[#allocation3 + $0x40] sm:$0xff]
    %v400 = vld [vmem:[#allocation3 + $0x48] sm:$0xff]
    %v401 = vld [vmem:[#allocation3 + $0x50] sm:$0xff]
    %v402 = vld [vmem:[#allocation3 + $0x58] sm:$0xff]
    %v403 = vld [vmem:[#allocation3 + $0x60] sm:$0xff]
    %v404 = vld [vmem:[#allocation3 + $0x68] sm:$0xff]
    %v405 = vld [vmem:[#allocation3 + $0x70] sm:$0xff]
    %v406 = vld [vmem:[#allocation3 + $0x78] sm:$0xff]
    %v407 = vld [vmem:[#allocation3 + $0x80] sm:$0xff]
    %v408 = vld [vmem:[#allocation3 + $0x88] sm:$0xff]
    %v409 = vld [vmem:[#allocation3 + $0x90] sm:$0xff]
    %v410 = vld [vmem:[#allocation3 + $0x98] sm:$0xff]
    %v411 = vld [vmem:[#allocation3 + $0xa0] sm:$0xff]
    %v412 = vld [vmem:[#allocation3 + $0xa8] sm:$0xff]
    %v413 = vld [vmem:[#allocation3 + $0xb0] sm:$0xff]
    %v414 = vld [vmem:[#allocation3 + $0xb8] sm:$0xff]
    %v415 = vld [vmem:[#allocation3 + $0xc0] sm:$0xff]
    %v416 = vld [vmem:[#allocation3 + $0xc8] sm:$0xff]
    %v417 = vld [vmem:[#allocation3 + $0xd0] sm:$0xff]
    %v418 = vld [vmem:[#allocation3 + $0xd8] sm:$0xff]
    %v419 = vld [vmem:[#allocation3 + $0xe0] sm:$0xff]
    %v420 = vld [vmem:[#allocation3 + $0xe8] sm:$0xff]
    %v421 = vld [vmem:[#allocation3 + $0xf0] sm:$0xff]
    %v422 = vld [vmem:[#allocation3 + $0xf8] sm:$0xff]
    %v423 = vld [vmem:[#allocation3 + $0x100] sm:$0xff]
    %v424 = vld [vmem:[#allocation3 + $0x108] sm:$0xff]
    %v425 = vld [vmem:[#allocation3 + $0x110] sm:$0xff]
    %v426 = vld [vmem:[#allocation3 + $0x118] sm:$0xff]
    %v427 = vld [vmem:[#allocation3 + $0x120] sm:$0xff]
    %v428 = vld [vmem:[#allocation3 + $0x128] sm:$0xff]
    %v429 = vld [vmem:[#allocation3 + $0x130] sm:$0xff]
    %v430 = vld [vmem:[#allocation3 + $0x138] sm:$0xff]
    %v431 = vld [vmem:[#allocation3 + $0x140] sm:$0xff]
    %v432 = vld [vmem:[#allocation3 + $0x148] sm:$0xff]
    %v433 = vld [vmem:[#allocation3 + $0x150] sm:$0xff]
    %v434 = vld [vmem:[#allocation3 + $0x158] sm:$0xff]
    %v435 = vld [vmem:[#allocation3 + $0x160] sm:$0xff]
    %v436 = vld [vmem:[#allocation3 + $0x168] sm:$0xff]
    %v437 = vld [vmem:[#allocation3 + $0x170] sm:$0xff]
    %v438 = vld [vmem:[#allocation3 + $0x178] sm:$0xff]
    %v439 = vld [vmem:[#allocation3 + $0x180] sm:$0xff]
    %v440 = vld [vmem:[#allocation3 + $0x188] sm:$0xff]
    %v441 = vld [vmem:[#allocation3 + $0x190] sm:$0xff]
    %v442 = vld [vmem:[#allocation3 + $0x198] sm:$0xff]
    %v443 = vld [vmem:[#allocation3 + $0x1a0] sm:$0xff]
    %v444 = vld [vmem:[#allocation3 + $0x1a8] sm:$0xff]
    %v445 = vld [vmem:[#allocation3 + $0x1b0] sm:$0xff]
    %v446 = vld [vmem:[#allocation3 + $0x1b8] sm:$0xff]
    %v447 = vld [vmem:[#allocation3 + $0x1c0] sm:$0xff]
    %v448 = vld [vmem:[#allocation3 + $0x1c8] sm:$0xff]
    %v449 = vld [vmem:[#allocation3 + $0x1d0] sm:$0xff]
    %v450 = vld [vmem:[#allocation3 + $0x1d8] sm:$0xff]
    %v451 = vld [vmem:[#allocation3 + $0x1e0] sm:$0xff]
    %v452 = vld [vmem:[#allocation3 + $0x1e8] sm:$0xff]
    %v453 = vld [vmem:[#allocation3 + $0x1f0] sm:$0xff]
    %v454 = vld [vmem:[#allocation3 + $0x1f8] sm:$0xff]
    %455 = vmatprep.subr.mxu0 %v452
    %456 = vmatpush1.msra.mxu0 %v451
    %457 = vmatprep.subr.mxu0 %v448
    %458 = vmatpush1.msra.mxu0 %v447
    %459 = vmatprep.subr.mxu0 %v444
    %460 = vmatpush1.msra.mxu0 %v443
    %461 = vmatprep.subr.mxu0 %v440
    %462 = vmatpush1.msra.mxu0 %v439
    %463 = vmatprep.subr.mxu0 %v436
    %464 = vmatpush1.msra.mxu0 %v435
    %465 = vmatprep.subr.mxu0 %v432
    %466 = vmatpush1.msra.mxu0 %v431
    %467 = vmatprep.subr.mxu0 %v428
    %468 = vmatpush1.msra.mxu0 %v427
    %469 = vmatprep.subr.mxu0 %v424
    %470 = vmatpush1.msra.mxu0 %v423
    %471 = vmatprep.subr.mxu0 %v420
    %472 = vmatpush1.msra.mxu0 %v419
    %473 = vmatprep.subr.mxu0 %v416
    %474 = vmatpush1.msra.mxu0 %v415
    %475 = vmatprep.subr.mxu0 %v412
    %476 = vmatpush1.msra.mxu0 %v411
    %477 = vmatprep.subr.mxu0 %v408
    %478 = vmatpush1.msra.mxu0 %v407
    %479 = vmatprep.subr.mxu0 %v404
    %480 = vmatpush1.msra.mxu0 %v403
    %481 = vmatprep.subr.mxu0 %v400
    %482 = vmatpush1.msra.mxu0 %v399
    %483 = vmatprep.subr.mxu0 %v396
    %484 = vmatpush1.msra.mxu0 %v395
    %485 = vmatprep.subr.mxu0 %v392
    %486 = vmatpush1.msra.mxu0 %v391
    %487 = vmatprep.subr.mxu0 0.0
    %488 = vmatpush2.msra.mxu0 0.0
    %489 = vmatprep.subr.mxu0 0.0
    %490 = vmatpush2.msra.mxu0 0.0
    %491 = vmatprep.subr.mxu0 0.0
    %492 = vmatpush2.msra.mxu0 0.0
    %493 = vmatprep.subr.mxu0 0.0
    %494 = vmatpush2.msra.mxu0 0.0
    %495 = vmatprep.subr.mxu0 0.0
    %496 = vmatpush2.msra.mxu0 0.0
    %497 = vmatprep.subr.mxu0 0.0
    %498 = vmatpush2.msra.mxu0 0.0
    %499 = vmatprep.subr.mxu0 0.0
    %500 = vmatpush2.msra.mxu0 0.0
    %501 = vmatprep.subr.mxu0 0.0
    %502 = vmatpush2.msra.mxu0 0.0
    %503 = vmatprep.subr.mxu0 0.0
    %504 = vmatpush2.msra.mxu0 0.0
    %505 = vmatprep.subr.mxu0 0.0
    %506 = vmatpush2.msra.mxu0 0.0
    %507 = vmatprep.subr.mxu0 0.0
    %508 = vmatpush2.msra.mxu0 0.0
    %509 = vmatprep.subr.mxu0 0.0
    %510 = vmatpush2.msra.mxu0 0.0
    %511 = vmatprep.subr.mxu0 0.0
    %512 = vmatpush2.msra.mxu0 0.0
    %513 = vmatprep.subr.mxu0 0.0
    %514 = vmatpush2.msra.mxu0 0.0
    %515 = vmatprep.subr.mxu0 0.0
    %516 = vmatpush2.msra.mxu0 0.0
    %517 = vmatprep.subr.mxu0 0.0
    %518 = vmatpush2.msra.mxu0 0.0
    %519 = vmatprep.mubr.f32.mxu0 0.0
    %520 = vmatmul.mubr.f32.gmra.mxu0 0.0
    %v521 = vpop.f32.mrf.mxu0
    %v522 = vadd.f32 0.0, %v521
    %v523 = vpop.f32.mrf.mxu0
    %v524 = vadd.f32 0.0, %v523
    %525 = vdwg.mxu0
    %526 = vmatprep.subr.mxu0 %v454
    %527 = vmatpush1.msra.mxu0 %v453
    %528 = vmatprep.subr.mxu0 %v450
    %529 = vmatpush1.msra.mxu0 %v449
    %530 = vmatprep.subr.mxu0 %v446
    %531 = vmatpush1.msra.mxu0 %v445
    %532 = vmatprep.subr.mxu0 %v442
    %533 = vmatpush1.msra.mxu0 %v441
    %534 = vmatprep.subr.mxu0 %v438
    %535 = vmatpush1.msra.mxu0 %v437
    %536 = vmatprep.subr.mxu0 %v434
    %537 = vmatpush1.msra.mxu0 %v433
    %538 = vmatprep.subr.mxu0 %v430
    %539 = vmatpush1.msra.mxu0 %v429
    %540 = vmatprep.subr.mxu0 %v426
    %541 = vmatpush1.msra.mxu0 %v425
    %542 = vmatprep.subr.mxu0 %v422
    %543 = vmatpush1.msra.mxu0 %v421
    %544 = vmatprep.subr.mxu0 %v418
    %545 = vmatpush1.msra.mxu0 %v417
    %546 = vmatprep.subr.mxu0 %v414
    %547 = vmatpush1.msra.mxu0 %v413
    %548 = vmatprep.subr.mxu0 %v410
    %549 = vmatpush1.msra.mxu0 %v409
    %550 = vmatprep.subr.mxu0 %v406
    %551 = vmatpush1.msra.mxu0 %v405
    %552 = vmatprep.subr.mxu0 %v402
    %553 = vmatpush1.msra.mxu0 %v401
    %554 = vmatprep.subr.mxu0 %v398
    %555 = vmatpush1.msra.mxu0 %v397
    %556 = vmatprep.subr.mxu0 %v394
    %557 = vmatpush1.msra.mxu0 %v393
    %558 = vmatprep.subr.mxu0 0.0
    %559 = vmatpush2.msra.mxu0 0.0
    %560 = vmatprep.subr.mxu0 0.0
    %561 = vmatpush2.msra.mxu0 0.0
    %562 = vmatprep.subr.mxu0 0.0
    %563 = vmatpush2.msra.mxu0 0.0
    %564 = vmatprep.subr.mxu0 0.0
    %565 = vmatpush2.msra.mxu0 0.0
    %566 = vmatprep.subr.mxu0 0.0
    %567 = vmatpush2.msra.mxu0 0.0
    %568 = vmatprep.subr.mxu0 0.0
    %569 = vmatpush2.msra.mxu0 0.0
    %570 = vmatprep.subr.mxu0 0.0
    %571 = vmatpush2.msra.mxu0 0.0
    %572 = vmatprep.subr.mxu0 0.0
    %573 = vmatpush2.msra.mxu0 0.0
    %574 = vmatprep.subr.mxu0 0.0
    %575 = vmatpush2.msra.mxu0 0.0
    %576 = vmatprep.subr.mxu0 0.0
    %577 = vmatpush2.msra.mxu0 0.0
    %578 = vmatprep.subr.mxu0 0.0
    %579 = vmatpush2.msra.mxu0 0.0
    %580 = vmatprep.subr.mxu0 0.0
    %581 = vmatpush2.msra.mxu0 0.0
    %582 = vmatprep.subr.mxu0 0.0
    %583 = vmatpush2.msra.mxu0 0.0
    %584 = vmatprep.subr.mxu0 0.0
    %585 = vmatpush2.msra.mxu0 0.0
    %586 = vmatprep.subr.mxu0 0.0
    %587 = vmatpush2.msra.mxu0 0.0
    %588 = vmatprep.subr.mxu0 0.0
    %589 = vmatpush2.msra.mxu0 0.0
    %590 = vmatprep.mubr.f32.mxu0 0.0
    %591 = vmatmul.mubr.f32.gmra.mxu0 0.0
    %v592 = vpop.f32.mrf.mxu0
    %v593 = vadd.f32 0.0, %v592
    %v594 = vpop.f32.mrf.mxu0
    %v595 = vadd.f32 0.0, %v594
    %596 = vdwg.mxu0
    %v597 = vadd.f32 %v232, %v522
    %v598 = vadd.f32 %v234, %v524
    %v599 = vadd.f32 %v345, %v593
    %v600 = vadd.f32 %v347, %v595
    %v601 = vxor.u32 %v597, 2147483648
    %v602 = vxor.u32 %v598, 2147483648
    %v603 = vxor.u32 %v599, 2147483648
    %v604 = vxor.u32 %v600, 2147483648
    %v605 = vmul.f32 %v601, 1.442695
    %v606 = vpow.pop %v605
    %v607 = vmul.f32 %v602, 1.442695
    %v608 = vpow.pop %v607
    %v609 = vmul.f32 %v603, 1.442695
    %v610 = vpow.pop %v609
    %v611 = vmul.f32 %v604, 1.442695
    %v612 = vpow.pop %v611
    %v613 = vadd.f32 %v606, 1.0
    %v614 = vadd.f32 %v608, 1.0
    %v615 = vadd.f32 %v610, 1.0
    %v616 = vadd.f32 %v612, 1.0
    %v617 = vrcp.pop %v613
    %v618 = vmul.f32 1.0, %v617
    %v619 = vrcp.pop %v614
    %v620 = vmul.f32 1.0, %v619
    %v621 = vrcp.pop %v615
    %v622 = vmul.f32 1.0, %v621
    %v623 = vrcp.pop %v616
    %v624 = vmul.f32 1.0, %v623
    %v625 = vmul.f32 %v624, 2.0
    %v626 = vsub.f32 %v625, 1.0
    %v627 = vmul.f32 %v620, 0.0
    %v628 = vmul.f32 %v618, %v626
    %v629 = vadd.f32 %v627, %v628
    %v630 = vtanh.pop %v629
    %v631 = vmul.f32 %v622, %v630
    %632 = vst [vmem:[#allocation2] sm:$0xff] %v631
    %633 = vmatprep.subr.mxu0 %v452
    %634 = vmatpush1.msra.mxu0 %v451
    %635 = vmatprep.subr.mxu0 %v448
    %636 = vmatpush1.msra.mxu0 %v447
    %637 = vmatprep.subr.mxu0 %v444
    %638 = vmatpush1.msra.mxu0 %v443
    %639 = vmatprep.subr.mxu0 %v440
    %640 = vmatpush1.msra.mxu0 %v439
    %641 = vmatprep.subr.mxu0 %v436
    %642 = vmatpush1.msra.mxu0 %v435
    %643 = vmatprep.subr.mxu0 %v432
    %644 = vmatpush1.msra.mxu0 %v431
    %645 = vmatprep.subr.mxu0 %v428
    %646 = vmatpush1.msra.mxu0 %v427
    %647 = vmatprep.subr.mxu0 %v424
    %648 = vmatpush1.msra.mxu0 %v423
    %649 = vmatprep.subr.mxu0 %v420
    %650 = vmatpush1.msra.mxu0 %v419
    %651 = vmatprep.subr.mxu0 %v416
    %652 = vmatpush1.msra.mxu0 %v415
    %653 = vmatprep.subr.mxu0 %v412
    %654 = vmatpush1.msra.mxu0 %v411
    %655 = vmatprep.subr.mxu0 %v408
    %656 = vmatpush1.msra.mxu0 %v407
    %657 = vmatprep.subr.mxu0 %v404
    %658 = vmatpush1.msra.mxu0 %v403
    %659 = vmatprep.subr.mxu0 %v400
    %660 = vmatpush1.msra.mxu0 %v399
    %661 = vmatprep.subr.mxu0 %v396
    %662 = vmatpush1.msra.mxu0 %v395
    %663 = vmatprep.subr.mxu0 %v392
    %664 = vmatpush1.msra.mxu0 %v391
    %665 = vmatprep.subr.mxu0 0.0
    %666 = vmatpush2.msra.mxu0 0.0
    %667 = vmatprep.subr.mxu0 0.0
    %668 = vmatpush2.msra.mxu0 0.0
    %669 = vmatprep.subr.mxu0 0.0
    %670 = vmatpush2.msra.mxu0 0.0
    %671 = vmatprep.subr.mxu0 0.0
    %672 = vmatpush2.msra.mxu0 0.0
    %673 = vmatprep.subr.mxu0 0.0
    %674 = vmatpush2.msra.mxu0 0.0
    %675 = vmatprep.subr.mxu0 0.0
    %676 = vmatpush2.msra.mxu0 0.0
    %677 = vmatprep.subr.mxu0 0.0
    %678 = vmatpush2.msra.mxu0 0.0
    %679 = vmatprep.subr.mxu0 0.0
    %680 = vmatpush2.msra.mxu0 0.0
    %681 = vmatprep.subr.mxu0 0.0
    %682 = vmatpush2.msra.mxu0 0.0
    %683 = vmatprep.subr.mxu0 0.0
    %684 = vmatpush2.msra.mxu0 0.0
    %685 = vmatprep.subr.mxu0 0.0
    %686 = vmatpush2.msra.mxu0 0.0
    %687 = vmatprep.subr.mxu0 0.0
    %688 = vmatpush2.msra.mxu0 0.0
    %689 = vmatprep.subr.mxu0 0.0
    %690 = vmatpush2.msra.mxu0 0.0
    %691 = vmatprep.subr.mxu0 0.0
    %692 = vmatpush2.msra.mxu0 0.0
    %693 = vmatprep.subr.mxu0 0.0
    %694 = vmatpush2.msra.mxu0 0.0
    %695 = vmatprep.subr.mxu0 0.0
    %696 = vmatpush2.msra.mxu0 0.0
    %697 = vmatprep.mubr.f32.mxu0 0.0
    %698 = vmatmul.mubr.f32.gmra.mxu0 %v631
    %v699 = vpop.f32.mrf.mxu0
    %v700 = vadd.f32 0.0, %v699
    %v701 = vpop.f32.mrf.mxu0
    %v702 = vadd.f32 0.0, %v701
    %703 = vdwg.mxu0
    %704 = vmatprep.subr.mxu0 %v454
    %705 = vmatpush1.msra.mxu0 %v453
    %706 = vmatprep.subr.mxu0 %v450
    %707 = vmatpush1.msra.mxu0 %v449
    %708 = vmatprep.subr.mxu0 %v446
    %709 = vmatpush1.msra.mxu0 %v445
    %710 = vmatprep.subr.mxu0 %v442
    %711 = vmatpush1.msra.mxu0 %v441
    %712 = vmatprep.subr.mxu0 %v438
    %713 = vmatpush1.msra.mxu0 %v437
    %714 = vmatprep.subr.mxu0 %v434
    %715 = vmatpush1.msra.mxu0 %v433
    %716 = vmatprep.subr.mxu0 %v430
    %717 = vmatpush1.msra.mxu0 %v429
    %718 = vmatprep.subr.mxu0 %v426
    %719 = vmatpush1.msra.mxu0 %v425
    %720 = vmatprep.subr.mxu0 %v422
    %721 = vmatpush1.msra.mxu0 %v421
    %722 = vmatprep.subr.mxu0 %v418
    %723 = vmatpush1.msra.mxu0 %v417
    %724 = vmatprep.subr.mxu0 %v414
    %725 = vmatpush1.msra.mxu0 %v413
    %726 = vmatprep.subr.mxu0 %v410
    %727 = vmatpush1.msra.mxu0 %v409
    %728 = vmatprep.subr.mxu0 %v406
    %729 = vmatpush1.msra.mxu0 %v405
    %730 = vmatprep.subr.mxu0 %v402
    %731 = vmatpush1.msra.mxu0 %v401
    %732 = vmatprep.subr.mxu0 %v398
    %733 = vmatpush1.msra.mxu0 %v397
    %734 = vmatprep.subr.mxu0 %v394
    %735 = vmatpush1.msra.mxu0 %v393
    %736 = vmatprep.subr.mxu0 0.0
    %737 = vmatpush2.msra.mxu0 0.0
    %738 = vmatprep.subr.mxu0 0.0
    %739 = vmatpush2.msra.mxu0 0.0
    %740 = vmatprep.subr.mxu0 0.0
    %741 = vmatpush2.msra.mxu0 0.0
    %742 = vmatprep.subr.mxu0 0.0
    %743 = vmatpush2.msra.mxu0 0.0
    %744 = vmatprep.subr.mxu0 0.0
    %745 = vmatpush2.msra.mxu0 0.0
    %746 = vmatprep.subr.mxu0 0.0
    %747 = vmatpush2.msra.mxu0 0.0
    %748 = vmatprep.subr.mxu0 0.0
    %749 = vmatpush2.msra.mxu0 0.0
    %750 = vmatprep.subr.mxu0 0.0
    %751 = vmatpush2.msra.mxu0 0.0
    %752 = vmatprep.subr.mxu0 0.0
    %753 = vmatpush2.msra.mxu0 0.0
    %754 = vmatprep.subr.mxu0 0.0
    %755 = vmatpush2.msra.mxu0 0.0
    %756 = vmatprep.subr.mxu0 0.0
    %757 = vmatpush2.msra.mxu0 0.0
    %758 = vmatprep.subr.mxu0 0.0
    %759 = vmatpush2.msra.mxu0 0.0
    %760 = vmatprep.subr.mxu0 0.0
    %761 = vmatpush2.msra.mxu0 0.0
    %762 = vmatprep.subr.mxu0 0.0
    %763 = vmatpush2.msra.mxu0 0.0
    %764 = vmatprep.subr.mxu0 0.0
    %765 = vmatpush2.msra.mxu0 0.0
    %766 = vmatprep.subr.mxu0 0.0
    %767 = vmatpush2.msra.mxu0 0.0
    %768 = vmatprep.mubr.f32.mxu0 0.0
    %769 = vmatmul.mubr.f32.gmra.mxu0 %v631
    %v770 = vpop.f32.mrf.mxu0
    %v771 = vadd.f32 0.0, %v770
    %v772 = vpop.f32.mrf.mxu0
    %v773 = vadd.f32 0.0, %v772
    %774 = vdwg.mxu0
    %v775 = vadd.f32 %v238, %v700
    %v776 = vadd.f32 %v240, %v702
    %v777 = vadd.f32 %v351, %v771
    %v778 = vadd.f32 %v353, %v773
    %v779 = vxor.u32 %v775, 2147483648
    %v780 = vxor.u32 %v776, 2147483648
    %v781 = vxor.u32 %v777, 2147483648
    %v782 = vxor.u32 %v778, 2147483648
    %v783 = vmul.f32 %v779, 1.442695
    %v784 = vpow.pop %v783
    %v785 = vmul.f32 %v780, 1.442695
    %v786 = vpow.pop %v785
    %v787 = vmul.f32 %v781, 1.442695
    %v788 = vpow.pop %v787
    %v789 = vmul.f32 %v782, 1.442695
    %v790 = vpow.pop %v789
    %v791 = vadd.f32 %v784, 1.0
    %v792 = vadd.f32 %v786, 1.0
    %v793 = vadd.f32 %v788, 1.0
    %v794 = vadd.f32 %v790, 1.0
    %v795 = vrcp.pop %v791
    %v796 = vmul.f32 1.0, %v795
    %v797 = vrcp.pop %v792
    %v798 = vmul.f32 1.0, %v797
    %v799 = vrcp.pop %v793
    %v800 = vmul.f32 1.0, %v799
    %v801 = vrcp.pop %v794
    %v802 = vmul.f32 1.0, %v801
    %v803 = vmul.f32 %v802, 2.0
    %v804 = vsub.f32 %v803, 1.0
    %v805 = vmul.f32 %v798, %v629
    %v806 = vmul.f32 %v796, %v804
    %v807 = vadd.f32 %v805, %v806
    %v808 = vtanh.pop %v807
    %v809 = vmul.f32 %v800, %v808
    %810 = vst [vmem:[#allocation2 + $0x8] sm:$0xff] %v809
    %811 = vmatprep.subr.mxu0 %v452
    %812 = vmatpush1.msra.mxu0 %v451
    %813 = vmatprep.subr.mxu0 %v448
    %814 = vmatpush1.msra.mxu0 %v447
    %815 = vmatprep.subr.mxu0 %v444
    %816 = vmatpush1.msra.mxu0 %v443
    %817 = vmatprep.subr.mxu0 %v440
    %818 = vmatpush1.msra.mxu0 %v439
    %819 = vmatprep.subr.mxu0 %v436
    %820 = vmatpush1.msra.mxu0 %v435
    %821 = vmatprep.subr.mxu0 %v432
    %822 = vmatpush1.msra.mxu0 %v431
    %823 = vmatprep.subr.mxu0 %v428
    %824 = vmatpush1.msra.mxu0 %v427
    %825 = vmatprep.subr.mxu0 %v424
    %826 = vmatpush1.msra.mxu0 %v423
    %827 = vmatprep.subr.mxu0 %v420
    %828 = vmatpush1.msra.mxu0 %v419
    %829 = vmatprep.subr.mxu0 %v416
    %830 = vmatpush1.msra.mxu0 %v415
    %831 = vmatprep.subr.mxu0 %v412
    %832 = vmatpush1.msra.mxu0 %v411
    %833 = vmatprep.subr.mxu0 %v408
    %834 = vmatpush1.msra.mxu0 %v407
    %835 = vmatprep.subr.mxu0 %v404
    %836 = vmatpush1.msra.mxu0 %v403
    %837 = vmatprep.subr.mxu0 %v400
    %838 = vmatpush1.msra.mxu0 %v399
    %839 = vmatprep.subr.mxu0 %v396
    %840 = vmatpush1.msra.mxu0 %v395
    %841 = vmatprep.subr.mxu0 %v392
    %842 = vmatpush1.msra.mxu0 %v391
    %843 = vmatprep.subr.mxu0 0.0
    %844 = vmatpush2.msra.mxu0 0.0
    %845 = vmatprep.subr.mxu0 0.0
    %846 = vmatpush2.msra.mxu0 0.0
    %847 = vmatprep.subr.mxu0 0.0
    %848 = vmatpush2.msra.mxu0 0.0
    %849 = vmatprep.subr.mxu0 0.0
    %850 = vmatpush2.msra.mxu0 0.0
    %851 = vmatprep.subr.mxu0 0.0
    %852 = vmatpush2.msra.mxu0 0.0
    %853 = vmatprep.subr.mxu0 0.0
    %854 = vmatpush2.msra.mxu0 0.0
    %855 = vmatprep.subr.mxu0 0.0
    %856 = vmatpush2.msra.mxu0 0.0
    %857 = vmatprep.subr.mxu0 0.0
    %858 = vmatpush2.msra.mxu0 0.0
    %859 = vmatprep.subr.mxu0 0.0
    %860 = vmatpush2.msra.mxu0 0.0
    %861 = vmatprep.subr.mxu0 0.0
    %862 = vmatpush2.msra.mxu0 0.0
    %863 = vmatprep.subr.mxu0 0.0
    %864 = vmatpush2.msra.mxu0 0.0
    %865 = vmatprep.subr.mxu0 0.0
    %866 = vmatpush2.msra.mxu0 0.0
    %867 = vmatprep.subr.mxu0 0.0
    %868 = vmatpush2.msra.mxu0 0.0
    %869 = vmatprep.subr.mxu0 0.0
    %870 = vmatpush2.msra.mxu0 0.0
    %871 = vmatprep.subr.mxu0 0.0
    %872 = vmatpush2.msra.mxu0 0.0
    %873 = vmatprep.subr.mxu0 0.0
    %874 = vmatpush2.msra.mxu0 0.0
    %875 = vmatprep.mubr.f32.mxu0 0.0
    %876 = vmatmul.mubr.f32.gmra.mxu0 %v809
    %v877 = vpop.f32.mrf.mxu0
    %v878 = vadd.f32 0.0, %v877
    %v879 = vpop.f32.mrf.mxu0
    %v880 = vadd.f32 0.0, %v879
    %881 = vdwg.mxu0
    %882 = vmatprep.subr.mxu0 %v454
    %883 = vmatpush1.msra.mxu0 %v453
    %884 = vmatprep.subr.mxu0 %v450
    %885 = vmatpush1.msra.mxu0 %v449
    %886 = vmatprep.subr.mxu0 %v446
    %887 = vmatpush1.msra.mxu0 %v445
    %888 = vmatprep.subr.mxu0 %v442
    %889 = vmatpush1.msra.mxu0 %v441
    %890 = vmatprep.subr.mxu0 %v438
    %891 = vmatpush1.msra.mxu0 %v437
    %892 = vmatprep.subr.mxu0 %v434
    %893 = vmatpush1.msra.mxu0 %v433
    %894 = vmatprep.subr.mxu0 %v430
    %895 = vmatpush1.msra.mxu0 %v429
    %896 = vmatprep.subr.mxu0 %v426
    %897 = vmatpush1.msra.mxu0 %v425
    %898 = vmatprep.subr.mxu0 %v422
    %899 = vmatpush1.msra.mxu0 %v421
    %900 = vmatprep.subr.mxu0 %v418
    %901 = vmatpush1.msra.mxu0 %v417
    %902 = vmatprep.subr.mxu0 %v414
    %903 = vmatpush1.msra.mxu0 %v413
    %904 = vmatprep.subr.mxu0 %v410
    %905 = vmatpush1.msra.mxu0 %v409
    %906 = vmatprep.subr.mxu0 %v406
    %907 = vmatpush1.msra.mxu0 %v405
    %908 = vmatprep.subr.mxu0 %v402
    %909 = vmatpush1.msra.mxu0 %v401
    %910 = vmatprep.subr.mxu0 %v398
    %911 = vmatpush1.msra.mxu0 %v397
    %912 = vmatprep.subr.mxu0 %v394
    %913 = vmatpush1.msra.mxu0 %v393
    %914 = vmatprep.subr.mxu0 0.0
    %915 = vmatpush2.msra.mxu0 0.0
    %916 = vmatprep.subr.mxu0 0.0
    %917 = vmatpush2.msra.mxu0 0.0
    %918 = vmatprep.subr.mxu0 0.0
    %919 = vmatpush2.msra.mxu0 0.0
    %920 = vmatprep.subr.mxu0 0.0
    %921 = vmatpush2.msra.mxu0 0.0
    %922 = vmatprep.subr.mxu0 0.0
    %923 = vmatpush2.msra.mxu0 0.0
    %924 = vmatprep.subr.mxu0 0.0
    %925 = vmatpush2.msra.mxu0 0.0
    %926 = vmatprep.subr.mxu0 0.0
    %927 = vmatpush2.msra.mxu0 0.0
    %928 = vmatprep.subr.mxu0 0.0
    %929 = vmatpush2.msra.mxu0 0.0
    %930 = vmatprep.subr.mxu0 0.0
    %931 = vmatpush2.msra.mxu0 0.0
    %932 = vmatprep.subr.mxu0 0.0
    %933 = vmatpush2.msra.mxu0 0.0
    %934 = vmatprep.subr.mxu0 0.0
    %935 = vmatpush2.msra.mxu0 0.0
    %936 = vmatprep.subr.mxu0 0.0
    %937 = vmatpush2.msra.mxu0 0.0
    %938 = vmatprep.subr.mxu0 0.0
    %939 = vmatpush2.msra.mxu0 0.0
    %940 = vmatprep.subr.mxu0 0.0
    %941 = vmatpush2.msra.mxu0 0.0
    %942 = vmatprep.subr.mxu0 0.0
    %943 = vmatpush2.msra.mxu0 0.0
    %944 = vmatprep.subr.mxu0 0.0
    %945 = vmatpush2.msra.mxu0 0.0
    %946 = vmatprep.mubr.f32.mxu0 0.0
    %947 = vmatmul.mubr.f32.gmra.mxu0 %v809
    %v948 = vpop.f32.mrf.mxu0
    %v949 = vadd.f32 0.0, %v948
    %v950 = vpop.f32.mrf.mxu0
    %v951 = vadd.f32 0.0, %v950
    %952 = vdwg.mxu0
    %v953 = vadd.f32 %v244, %v878
    %v954 = vadd.f32 %v246, %v880
    %v955 = vadd.f32 %v357, %v949
    %v956 = vadd.f32 %v359, %v951
    %v957 = vxor.u32 %v953, 2147483648
    %v958 = vxor.u32 %v954, 2147483648
    %v959 = vxor.u32 %v955, 2147483648
    %v960 = vxor.u32 %v956, 2147483648
    %v961 = vmul.f32 %v957, 1.442695
    %v962 = vpow.pop %v961
    %v963 = vmul.f32 %v958, 1.442695
    %v964 = vpow.pop %v963
    %v965 = vmul.f32 %v959, 1.442695
    %v966 = vpow.pop %v965
    %v967 = vmul.f32 %v960, 1.442695
    %v968 = vpow.pop %v967
    %v969 = vadd.f32 %v962, 1.0
    %v970 = vadd.f32 %v964, 1.0
    %v971 = vadd.f32 %v966, 1.0
    %v972 = vadd.f32 %v968, 1.0
    %v973 = vrcp.pop %v969
    %v974 = vmul.f32 1.0, %v973
    %v975 = vrcp.pop %v970
    %v976 = vmul.f32 1.0, %v975
    %v977 = vrcp.pop %v971
    %v978 = vmul.f32 1.0, %v977
    %v979 = vrcp.pop %v972
    %v980 = vmul.f32 1.0, %v979
    %v981 = vmul.f32 %v980, 2.0
    %v982 = vsub.f32 %v981, 1.0
    %v983 = vmul.f32 %v976, %v807
    %v984 = vmul.f32 %v974, %v982
    %v985 = vadd.f32 %v983, %v984
    %v986 = vtanh.pop %v985
    %v987 = vmul.f32 %v978, %v986
    %988 = vst [vmem:[#allocation2 + $0x10] sm:$0xff] %v987
    %989 = vmatprep.subr.mxu0 %v452
    %990 = vmatpush1.msra.mxu0 %v451
    %991 = vmatprep.subr.mxu0 %v448
    %992 = vmatpush1.msra.mxu0 %v447
    %993 = vmatprep.subr.mxu0 %v444
    %994 = vmatpush1.msra.mxu0 %v443
    %995 = vmatprep.subr.mxu0 %v440
    %996 = vmatpush1.msra.mxu0 %v439
    %997 = vmatprep.subr.mxu0 %v436
    %998 = vmatpush1.msra.mxu0 %v435
    %999 = vmatprep.subr.mxu0 %v432
    %1000 = vmatpush1.msra.mxu0 %v431
    %1001 = vmatprep.subr.mxu0 %v428
    %1002 = vmatpush1.msra.mxu0 %v427
    %1003 = vmatprep.subr.mxu0 %v424
    %1004 = vmatpush1.msra.mxu0 %v423
    %1005 = vmatprep.subr.mxu0 %v420
    %1006 = vmatpush1.msra.mxu0 %v419
    %1007 = vmatprep.subr.mxu0 %v416
    %1008 = vmatpush1.msra.mxu0 %v415
    %1009 = vmatprep.subr.mxu0 %v412
    %1010 = vmatpush1.msra.mxu0 %v411
    %1011 = vmatprep.subr.mxu0 %v408
    %1012 = vmatpush1.msra.mxu0 %v407
    %1013 = vmatprep.subr.mxu0 %v404
    %1014 = vmatpush1.msra.mxu0 %v403
    %1015 = vmatprep.subr.mxu0 %v400
    %1016 = vmatpush1.msra.mxu0 %v399
    %1017 = vmatprep.subr.mxu0 %v396
    %1018 = vmatpush1.msra.mxu0 %v395
    %1019 = vmatprep.subr.mxu0 %v392
    %1020 = vmatpush1.msra.mxu0 %v391
    %1021 = vmatprep.subr.mxu0 0.0
    %1022 = vmatpush2.msra.mxu0 0.0
    %1023 = vmatprep.subr.mxu0 0.0
    %1024 = vmatpush2.msra.mxu0 0.0
    %1025 = vmatprep.subr.mxu0 0.0
    %1026 = vmatpush2.msra.mxu0 0.0
    %1027 = vmatprep.subr.mxu0 0.0
    %1028 = vmatpush2.msra.mxu0 0.0
    %1029 = vmatprep.subr.mxu0 0.0
    %1030 = vmatpush2.msra.mxu0 0.0
    %1031 = vmatprep.subr.mxu0 0.0
    %1032 = vmatpush2.msra.mxu0 0.0
    %1033 = vmatprep.subr.mxu0 0.0
    %1034 = vmatpush2.msra.mxu0 0.0
    %1035 = vmatprep.subr.mxu0 0.0
    %1036 = vmatpush2.msra.mxu0 0.0
    %1037 = vmatprep.subr.mxu0 0.0
    %1038 = vmatpush2.msra.mxu0 0.0
    %1039 = vmatprep.subr.mxu0 0.0
    %1040 = vmatpush2.msra.mxu0 0.0
    %1041 = vmatprep.subr.mxu0 0.0
    %1042 = vmatpush2.msra.mxu0 0.0
    %1043 = vmatprep.subr.mxu0 0.0
    %1044 = vmatpush2.msra.mxu0 0.0
    %1045 = vmatprep.subr.mxu0 0.0
    %1046 = vmatpush2.msra.mxu0 0.0
    %1047 = vmatprep.subr.mxu0 0.0
    %1048 = vmatpush2.msra.mxu0 0.0
    %1049 = vmatprep.subr.mxu0 0.0
    %1050 = vmatpush2.msra.mxu0 0.0
    %1051 = vmatprep.subr.mxu0 0.0
    %1052 = vmatpush2.msra.mxu0 0.0
    %1053 = vmatprep.mubr.f32.mxu0 0.0
    %1054 = vmatmul.mubr.f32.gmra.mxu0 %v987
    %v1055 = vpop.f32.mrf.mxu0
    %v1056 = vadd.f32 0.0, %v1055
    %v1057 = vpop.f32.mrf.mxu0
    %v1058 = vadd.f32 0.0, %v1057
    %1059 = vdwg.mxu0
    %1060 = vmatprep.subr.mxu0 %v454
    %1061 = vmatpush1.msra.mxu0 %v453
    %1062 = vmatprep.subr.mxu0 %v450
    %1063 = vmatpush1.msra.mxu0 %v449
    %1064 = vmatprep.subr.mxu0 %v446
    %1065 = vmatpush1.msra.mxu0 %v445
    %1066 = vmatprep.subr.mxu0 %v442
    %1067 = vmatpush1.msra.mxu0 %v441
    %1068 = vmatprep.subr.mxu0 %v438
    %1069 = vmatpush1.msra.mxu0 %v437
    %1070 = vmatprep.subr.mxu0 %v434
    %1071 = vmatpush1.msra.mxu0 %v433
    %1072 = vmatprep.subr.mxu0 %v430
    %1073 = vmatpush1.msra.mxu0 %v429
    %1074 = vmatprep.subr.mxu0 %v426
    %1075 = vmatpush1.msra.mxu0 %v425
    %1076 = vmatprep.subr.mxu0 %v422
    %1077 = vmatpush1.msra.mxu0 %v421
    %1078 = vmatprep.subr.mxu0 %v418
    %1079 = vmatpush1.msra.mxu0 %v417
    %1080 = vmatprep.subr.mxu0 %v414
    %1081 = vmatpush1.msra.mxu0 %v413
    %1082 = vmatprep.subr.mxu0 %v410
    %1083 = vmatpush1.msra.mxu0 %v409
    %1084 = vmatprep.subr.mxu0 %v406
    %1085 = vmatpush1.msra.mxu0 %v405
    %1086 = vmatprep.subr.mxu0 %v402
    %1087 = vmatpush1.msra.mxu0 %v401
    %1088 = vmatprep.subr.mxu0 %v398
    %1089 = vmatpush1.msra.mxu0 %v397
    %1090 = vmatprep.subr.mxu0 %v394
    %1091 = vmatpush1.msra.mxu0 %v393
    %1092 = vmatprep.subr.mxu0 0.0
    %1093 = vmatpush2.msra.mxu0 0.0
    %1094 = vmatprep.subr.mxu0 0.0
    %1095 = vmatpush2.msra.mxu0 0.0
    %1096 = vmatprep.subr.mxu0 0.0
    %1097 = vmatpush2.msra.mxu0 0.0
    %1098 = vmatprep.subr.mxu0 0.0
    %1099 = vmatpush2.msra.mxu0 0.0
    %1100 = vmatprep.subr.mxu0 0.0
    %1101 = vmatpush2.msra.mxu0 0.0
    %1102 = vmatprep.subr.mxu0 0.0
    %1103 = vmatpush2.msra.mxu0 0.0
    %1104 = vmatprep.subr.mxu0 0.0
    %1105 = vmatpush2.msra.mxu0 0.0
    %1106 = vmatprep.subr.mxu0 0.0
    %1107 = vmatpush2.msra.mxu0 0.0
    %1108 = vmatprep.subr.mxu0 0.0
    %1109 = vmatpush2.msra.mxu0 0.0
    %1110 = vmatprep.subr.mxu0 0.0
    %1111 = vmatpush2.msra.mxu0 0.0
    %1112 = vmatprep.subr.mxu0 0.0
    %1113 = vmatpush2.msra.mxu0 0.0
    %1114 = vmatprep.subr.mxu0 0.0
    %1115 = vmatpush2.msra.mxu0 0.0
    %1116 = vmatprep.subr.mxu0 0.0
    %1117 = vmatpush2.msra.mxu0 0.0
    %1118 = vmatprep.subr.mxu0 0.0
    %1119 = vmatpush2.msra.mxu0 0.0
    %1120 = vmatprep.subr.mxu0 0.0
    %1121 = vmatpush2.msra.mxu0 0.0
    %1122 = vmatprep.subr.mxu0 0.0
    %1123 = vmatpush2.msra.mxu0 0.0
    %1124 = vmatprep.mubr.f32.mxu0 0.0
    %1125 = vmatmul.mubr.f32.gmra.mxu0 %v987
    %v1126 = vpop.f32.mrf.mxu0
    %v1127 = vadd.f32 0.0, %v1126
    %v1128 = vpop.f32.mrf.mxu0
    %v1129 = vadd.f32 0.0, %v1128
    %1130 = vdwg.mxu0
    %v1131 = vadd.f32 %v250, %v1056
    %v1132 = vadd.f32 %v252, %v1058
    %v1133 = vadd.f32 %v363, %v1127
    %v1134 = vadd.f32 %v365, %v1129
    %v1135 = vxor.u32 %v1131, 2147483648
    %v1136 = vxor.u32 %v1132, 2147483648
    %v1137 = vxor.u32 %v1133, 2147483648
    %v1138 = vxor.u32 %v1134, 2147483648
    %v1139 = vmul.f32 %v1135, 1.442695
    %v1140 = vpow.pop %v1139
    %v1141 = vmul.f32 %v1136, 1.442695
    %v1142 = vpow.pop %v1141
    %v1143 = vmul.f32 %v1137, 1.442695
    %v1144 = vpow.pop %v1143
    %v1145 = vmul.f32 %v1138, 1.442695
    %v1146 = vpow.pop %v1145
    %v1147 = vadd.f32 %v1140, 1.0
    %v1148 = vadd.f32 %v1142, 1.0
    %v1149 = vadd.f32 %v1144, 1.0
    %v1150 = vadd.f32 %v1146, 1.0
    %v1151 = vrcp.pop %v1147
    %v1152 = vmul.f32 1.0, %v1151
    %v1153 = vrcp.pop %v1148
    %v1154 = vmul.f32 1.0, %v1153
    %v1155 = vrcp.pop %v1149
    %v1156 = vmul.f32 1.0, %v1155
    %v1157 = vrcp.pop %v1150
    %v1158 = vmul.f32 1.0, %v1157
    %v1159 = vmul.f32 %v1158, 2.0
    %v1160 = vsub.f32 %v1159, 1.0
    %v1161 = vmul.f32 %v1154, %v985
    %v1162 = vmul.f32 %v1152, %v1160
    %v1163 = vadd.f32 %v1161, %v1162
    %v1164 = vtanh.pop %v1163
    %v1165 = vmul.f32 %v1156, %v1164
    %1166 = vst [vmem:[#allocation2 + $0x18] sm:$0xff] %v1165
    %1167 = vmatprep.subr.mxu0 %v452
    %1168 = vmatpush1.msra.mxu0 %v451
    %1169 = vmatprep.subr.mxu0 %v448
    %1170 = vmatpush1.msra.mxu0 %v447
    %1171 = vmatprep.subr.mxu0 %v444
    %1172 = vmatpush1.msra.mxu0 %v443
    %1173 = vmatprep.subr.mxu0 %v440
    %1174 = vmatpush1.msra.mxu0 %v439
    %1175 = vmatprep.subr.mxu0 %v436
    %1176 = vmatpush1.msra.mxu0 %v435
    %1177 = vmatprep.subr.mxu0 %v432
    %1178 = vmatpush1.msra.mxu0 %v431
    %1179 = vmatprep.subr.mxu0 %v428
    %1180 = vmatpush1.msra.mxu0 %v427
    %1181 = vmatprep.subr.mxu0 %v424
    %1182 = vmatpush1.msra.mxu0 %v423
    %1183 = vmatprep.subr.mxu0 %v420
    %1184 = vmatpush1.msra.mxu0 %v419
    %1185 = vmatprep.subr.mxu0 %v416
    %1186 = vmatpush1.msra.mxu0 %v415
    %1187 = vmatprep.subr.mxu0 %v412
    %1188 = vmatpush1.msra.mxu0 %v411
    %1189 = vmatprep.subr.mxu0 %v408
    %1190 = vmatpush1.msra.mxu0 %v407
    %1191 = vmatprep.subr.mxu0 %v404
    %1192 = vmatpush1.msra.mxu0 %v403
    %1193 = vmatprep.subr.mxu0 %v400
    %1194 = vmatpush1.msra.mxu0 %v399
    %1195 = vmatprep.subr.mxu0 %v396
    %1196 = vmatpush1.msra.mxu0 %v395
    %1197 = vmatprep.subr.mxu0 %v392
    %1198 = vmatpush1.msra.mxu0 %v391
    %1199 = vmatprep.subr.mxu0 0.0
    %1200 = vmatpush2.msra.mxu0 0.0
    %1201 = vmatprep.subr.mxu0 0.0
    %1202 = vmatpush2.msra.mxu0 0.0
    %1203 = vmatprep.subr.mxu0 0.0
    %1204 = vmatpush2.msra.mxu0 0.0
    %1205 = vmatprep.subr.mxu0 0.0
    %1206 = vmatpush2.msra.mxu0 0.0
    %1207 = vmatprep.subr.mxu0 0.0
    %1208 = vmatpush2.msra.mxu0 0.0
    %1209 = vmatprep.subr.mxu0 0.0
    %1210 = vmatpush2.msra.mxu0 0.0
    %1211 = vmatprep.subr.mxu0 0.0
    %1212 = vmatpush2.msra.mxu0 0.0
    %1213 = vmatprep.subr.mxu0 0.0
    %1214 = vmatpush2.msra.mxu0 0.0
    %1215 = vmatprep.subr.mxu0 0.0
    %1216 = vmatpush2.msra.mxu0 0.0
    %1217 = vmatprep.subr.mxu0 0.0
    %1218 = vmatpush2.msra.mxu0 0.0
    %1219 = vmatprep.subr.mxu0 0.0
    %1220 = vmatpush2.msra.mxu0 0.0
    %1221 = vmatprep.subr.mxu0 0.0
    %1222 = vmatpush2.msra.mxu0 0.0
    %1223 = vmatprep.subr.mxu0 0.0
    %1224 = vmatpush2.msra.mxu0 0.0
    %1225 = vmatprep.subr.mxu0 0.0
    %1226 = vmatpush2.msra.mxu0 0.0
    %1227 = vmatprep.subr.mxu0 0.0
    %1228 = vmatpush2.msra.mxu0 0.0
    %1229 = vmatprep.subr.mxu0 0.0
    %1230 = vmatpush2.msra.mxu0 0.0
    %1231 = vmatprep.mubr.f32.mxu0 0.0
    %1232 = vmatmul.mubr.f32.gmra.mxu0 %v1165
    %v1233 = vpop.f32.mrf.mxu0
    %v1234 = vadd.f32 0.0, %v1233
    %v1235 = vpop.f32.mrf.mxu0
    %v1236 = vadd.f32 0.0, %v1235
    %1237 = vdwg.mxu0
    %1238 = vmatprep.subr.mxu0 %v454
    %1239 = vmatpush1.msra.mxu0 %v453
    %1240 = vmatprep.subr.mxu0 %v450
    %1241 = vmatpush1.msra.mxu0 %v449
    %1242 = vmatprep.subr.mxu0 %v446
    %1243 = vmatpush1.msra.mxu0 %v445
    %1244 = vmatprep.subr.mxu0 %v442
    %1245 = vmatpush1.msra.mxu0 %v441
    %1246 = vmatprep.subr.mxu0 %v438
    %1247 = vmatpush1.msra.mxu0 %v437
    %1248 = vmatprep.subr.mxu0 %v434
    %1249 = vmatpush1.msra.mxu0 %v433
    %1250 = vmatprep.subr.mxu0 %v430
    %1251 = vmatpush1.msra.mxu0 %v429
    %1252 = vmatprep.subr.mxu0 %v426
    %1253 = vmatpush1.msra.mxu0 %v425
    %1254 = vmatprep.subr.mxu0 %v422
    %1255 = vmatpush1.msra.mxu0 %v421
    %1256 = vmatprep.subr.mxu0 %v418
    %1257 = vmatpush1.msra.mxu0 %v417
    %1258 = vmatprep.subr.mxu0 %v414
    %1259 = vmatpush1.msra.mxu0 %v413
    %1260 = vmatprep.subr.mxu0 %v410
    %1261 = vmatpush1.msra.mxu0 %v409
    %1262 = vmatprep.subr.mxu0 %v406
    %1263 = vmatpush1.msra.mxu0 %v405
    %1264 = vmatprep.subr.mxu0 %v402
    %1265 = vmatpush1.msra.mxu0 %v401
    %1266 = vmatprep.subr.mxu0 %v398
    %1267 = vmatpush1.msra.mxu0 %v397
    %1268 = vmatprep.subr.mxu0 %v394
    %1269 = vmatpush1.msra.mxu0 %v393
    %1270 = vmatprep.subr.mxu0 0.0
    %1271 = vmatpush2.msra.mxu0 0.0
    %1272 = vmatprep.subr.mxu0 0.0
    %1273 = vmatpush2.msra.mxu0 0.0
    %1274 = vmatprep.subr.mxu0 0.0
    %1275 = vmatpush2.msra.mxu0 0.0
    %1276 = vmatprep.subr.mxu0 0.0
    %1277 = vmatpush2.msra.mxu0 0.0
    %1278 = vmatprep.subr.mxu0 0.0
    %1279 = vmatpush2.msra.mxu0 0.0
    %1280 = vmatprep.subr.mxu0 0.0
    %1281 = vmatpush2.msra.mxu0 0.0
    %1282 = vmatprep.subr.mxu0 0.0
    %1283 = vmatpush2.msra.mxu0 0.0
    %1284 = vmatprep.subr.mxu0 0.0
    %1285 = vmatpush2.msra.mxu0 0.0
    %1286 = vmatprep.subr.mxu0 0.0
    %1287 = vmatpush2.msra.mxu0 0.0
    %1288 = vmatprep.subr.mxu0 0.0
    %1289 = vmatpush2.msra.mxu0 0.0
    %1290 = vmatprep.subr.mxu0 0.0
    %1291 = vmatpush2.msra.mxu0 0.0
    %1292 = vmatprep.subr.mxu0 0.0
    %1293 = vmatpush2.msra.mxu0 0.0
    %1294 = vmatprep.subr.mxu0 0.0
    %1295 = vmatpush2.msra.mxu0 0.0
    %1296 = vmatprep.subr.mxu0 0.0
    %1297 = vmatpush2.msra.mxu0 0.0
    %1298 = vmatprep.subr.mxu0 0.0
    %1299 = vmatpush2.msra.mxu0 0.0
    %1300 = vmatprep.subr.mxu0 0.0
    %1301 = vmatpush2.msra.mxu0 0.0
    %1302 = vmatprep.mubr.f32.mxu0 0.0
    %1303 = vmatmul.mubr.f32.gmra.mxu0 %v1165
    %v1304 = vpop.f32.mrf.mxu0
    %v1305 = vadd.f32 0.0, %v1304
    %v1306 = vpop.f32.mrf.mxu0
    %v1307 = vadd.f32 0.0, %v1306
    %1308 = vdwg.mxu0
    %v1309 = vadd.f32 %v256, %v1234
    %v1310 = vadd.f32 %v258, %v1236
    %v1311 = vadd.f32 %v369, %v1305
    %v1312 = vadd.f32 %v371, %v1307
    %v1313 = vxor.u32 %v1309, 2147483648
    %v1314 = vxor.u32 %v1310, 2147483648
    %v1315 = vxor.u32 %v1311, 2147483648
    %v1316 = vxor.u32 %v1312, 2147483648
    %v1317 = vmul.f32 %v1313, 1.442695
    %v1318 = vpow.pop %v1317
    %v1319 = vmul.f32 %v1314, 1.442695
    %v1320 = vpow.pop %v1319
    %v1321 = vmul.f32 %v1315, 1.442695
    %v1322 = vpow.pop %v1321
    %v1323 = vmul.f32 %v1316, 1.442695
    %v1324 = vpow.pop %v1323
    %v1325 = vadd.f32 %v1318, 1.0
    %v1326 = vadd.f32 %v1320, 1.0
    %v1327 = vadd.f32 %v1322, 1.0
    %v1328 = vadd.f32 %v1324, 1.0
    %v1329 = vrcp.pop %v1325
    %v1330 = vmul.f32 1.0, %v1329
    %v1331 = vrcp.pop %v1326
    %v1332 = vmul.f32 1.0, %v1331
    %v1333 = vrcp.pop %v1327
    %v1334 = vmul.f32 1.0, %v1333
    %v1335 = vrcp.pop %v1328
    %v1336 = vmul.f32 1.0, %v1335
    %v1337 = vmul.f32 %v1336, 2.0
    %v1338 = vsub.f32 %v1337, 1.0
    %v1339 = vmul.f32 %v1332, %v1163
    %v1340 = vmul.f32 %v1330, %v1338
    %v1341 = vadd.f32 %v1339, %v1340
    %v1342 = vtanh.pop %v1341
    %v1343 = vmul.f32 %v1334, %v1342
    %1344 = vst [vmem:[#allocation2 + $0x20] sm:$0xff] %v1343
    %1345 = vmatprep.subr.mxu0 %v452
    %1346 = vmatpush1.msra.mxu0 %v451
    %1347 = vmatprep.subr.mxu0 %v448
    %1348 = vmatpush1.msra.mxu0 %v447
    %1349 = vmatprep.subr.mxu0 %v444
    %1350 = vmatpush1.msra.mxu0 %v443
    %1351 = vmatprep.subr.mxu0 %v440
    %1352 = vmatpush1.msra.mxu0 %v439
    %1353 = vmatprep.subr.mxu0 %v436
    %1354 = vmatpush1.msra.mxu0 %v435
    %1355 = vmatprep.subr.mxu0 %v432
    %1356 = vmatpush1.msra.mxu0 %v431
    %1357 = vmatprep.subr.mxu0 %v428
    %1358 = vmatpush1.msra.mxu0 %v427
    %1359 = vmatprep.subr.mxu0 %v424
    %1360 = vmatpush1.msra.mxu0 %v423
    %1361 = vmatprep.subr.mxu0 %v420
    %1362 = vmatpush1.msra.mxu0 %v419
    %1363 = vmatprep.subr.mxu0 %v416
    %1364 = vmatpush1.msra.mxu0 %v415
    %1365 = vmatprep.subr.mxu0 %v412
    %1366 = vmatpush1.msra.mxu0 %v411
    %1367 = vmatprep.subr.mxu0 %v408
    %1368 = vmatpush1.msra.mxu0 %v407
    %1369 = vmatprep.subr.mxu0 %v404
    %1370 = vmatpush1.msra.mxu0 %v403
    %1371 = vmatprep.subr.mxu0 %v400
    %1372 = vmatpush1.msra.mxu0 %v399
    %1373 = vmatprep.subr.mxu0 %v396
    %1374 = vmatpush1.msra.mxu0 %v395
    %1375 = vmatprep.subr.mxu0 %v392
    %1376 = vmatpush1.msra.mxu0 %v391
    %1377 = vmatprep.subr.mxu0 0.0
    %1378 = vmatpush2.msra.mxu0 0.0
    %1379 = vmatprep.subr.mxu0 0.0
    %1380 = vmatpush2.msra.mxu0 0.0
    %1381 = vmatprep.subr.mxu0 0.0
    %1382 = vmatpush2.msra.mxu0 0.0
    %1383 = vmatprep.subr.mxu0 0.0
    %1384 = vmatpush2.msra.mxu0 0.0
    %1385 = vmatprep.subr.mxu0 0.0
    %1386 = vmatpush2.msra.mxu0 0.0
    %1387 = vmatprep.subr.mxu0 0.0
    %1388 = vmatpush2.msra.mxu0 0.0
    %1389 = vmatprep.subr.mxu0 0.0
    %1390 = vmatpush2.msra.mxu0 0.0
    %1391 = vmatprep.subr.mxu0 0.0
    %1392 = vmatpush2.msra.mxu0 0.0
    %1393 = vmatprep.subr.mxu0 0.0
    %1394 = vmatpush2.msra.mxu0 0.0
    %1395 = vmatprep.subr.mxu0 0.0
    %1396 = vmatpush2.msra.mxu0 0.0
    %1397 = vmatprep.subr.mxu0 0.0
    %1398 = vmatpush2.msra.mxu0 0.0
    %1399 = vmatprep.subr.mxu0 0.0
    %1400 = vmatpush2.msra.mxu0 0.0
    %1401 = vmatprep.subr.mxu0 0.0
    %1402 = vmatpush2.msra.mxu0 0.0
    %1403 = vmatprep.subr.mxu0 0.0
    %1404 = vmatpush2.msra.mxu0 0.0
    %1405 = vmatprep.subr.mxu0 0.0
    %1406 = vmatpush2.msra.mxu0 0.0
    %1407 = vmatprep.subr.mxu0 0.0
    %1408 = vmatpush2.msra.mxu0 0.0
    %1409 = vmatprep.mubr.f32.mxu0 0.0
    %1410 = vmatmul.mubr.f32.gmra.mxu0 %v1343
    %v1411 = vpop.f32.mrf.mxu0
    %v1412 = vadd.f32 0.0, %v1411
    %v1413 = vpop.f32.mrf.mxu0
    %v1414 = vadd.f32 0.0, %v1413
    %1415 = vdwg.mxu0
    %1416 = vmatprep.subr.mxu0 %v454
    %1417 = vmatpush1.msra.mxu0 %v453
    %1418 = vmatprep.subr.mxu0 %v450
    %1419 = vmatpush1.msra.mxu0 %v449
    %1420 = vmatprep.subr.mxu0 %v446
    %1421 = vmatpush1.msra.mxu0 %v445
    %1422 = vmatprep.subr.mxu0 %v442
    %1423 = vmatpush1.msra.mxu0 %v441
    %1424 = vmatprep.subr.mxu0 %v438
    %1425 = vmatpush1.msra.mxu0 %v437
    %1426 = vmatprep.subr.mxu0 %v434
    %1427 = vmatpush1.msra.mxu0 %v433
    %1428 = vmatprep.subr.mxu0 %v430
    %1429 = vmatpush1.msra.mxu0 %v429
    %1430 = vmatprep.subr.mxu0 %v426
    %1431 = vmatpush1.msra.mxu0 %v425
    %1432 = vmatprep.subr.mxu0 %v422
    %1433 = vmatpush1.msra.mxu0 %v421
    %1434 = vmatprep.subr.mxu0 %v418
    %1435 = vmatpush1.msra.mxu0 %v417
    %1436 = vmatprep.subr.mxu0 %v414
    %1437 = vmatpush1.msra.mxu0 %v413
    %1438 = vmatprep.subr.mxu0 %v410
    %1439 = vmatpush1.msra.mxu0 %v409
    %1440 = vmatprep.subr.mxu0 %v406
    %1441 = vmatpush1.msra.mxu0 %v405
    %1442 = vmatprep.subr.mxu0 %v402
    %1443 = vmatpush1.msra.mxu0 %v401
    %1444 = vmatprep.subr.mxu0 %v398
    %1445 = vmatpush1.msra.mxu0 %v397
    %1446 = vmatprep.subr.mxu0 %v394
    %1447 = vmatpush1.msra.mxu0 %v393
    %1448 = vmatprep.subr.mxu0 0.0
    %1449 = vmatpush2.msra.mxu0 0.0
    %1450 = vmatprep.subr.mxu0 0.0
    %1451 = vmatpush2.msra.mxu0 0.0
    %1452 = vmatprep.subr.mxu0 0.0
    %1453 = vmatpush2.msra.mxu0 0.0
    %1454 = vmatprep.subr.mxu0 0.0
    %1455 = vmatpush2.msra.mxu0 0.0
    %1456 = vmatprep.subr.mxu0 0.0
    %1457 = vmatpush2.msra.mxu0 0.0
    %1458 = vmatprep.subr.mxu0 0.0
    %1459 = vmatpush2.msra.mxu0 0.0
    %1460 = vmatprep.subr.mxu0 0.0
    %1461 = vmatpush2.msra.mxu0 0.0
    %1462 = vmatprep.subr.mxu0 0.0
    %1463 = vmatpush2.msra.mxu0 0.0
    %1464 = vmatprep.subr.mxu0 0.0
    %1465 = vmatpush2.msra.mxu0 0.0
    %1466 = vmatprep.subr.mxu0 0.0
    %1467 = vmatpush2.msra.mxu0 0.0
    %1468 = vmatprep.subr.mxu0 0.0
    %1469 = vmatpush2.msra.mxu0 0.0
    %1470 = vmatprep.subr.mxu0 0.0
    %1471 = vmatpush2.msra.mxu0 0.0
    %1472 = vmatprep.subr.mxu0 0.0
    %1473 = vmatpush2.msra.mxu0 0.0
    %1474 = vmatprep.subr.mxu0 0.0
    %1475 = vmatpush2.msra.mxu0 0.0
    %1476 = vmatprep.subr.mxu0 0.0
    %1477 = vmatpush2.msra.mxu0 0.0
    %1478 = vmatprep.subr.mxu0 0.0
    %1479 = vmatpush2.msra.mxu0 0.0
    %1480 = vmatprep.mubr.f32.mxu0 0.0
    %1481 = vmatmul.mubr.f32.gmra.mxu0 %v1343
    %v1482 = vpop.f32.mrf.mxu0
    %v1483 = vadd.f32 0.0, %v1482
    %v1484 = vpop.f32.mrf.mxu0
    %v1485 = vadd.f32 0.0, %v1484
    %1486 = vdwg.mxu0
    %v1487 = vadd.f32 %v262, %v1412
    %v1488 = vadd.f32 %v264, %v1414
    %v1489 = vadd.f32 %v375, %v1483
    %v1490 = vadd.f32 %v377, %v1485
    %v1491 = vxor.u32 %v1487, 2147483648
    %v1492 = vxor.u32 %v1488, 2147483648
    %v1493 = vxor.u32 %v1489, 2147483648
    %v1494 = vxor.u32 %v1490, 2147483648
    %v1495 = vmul.f32 %v1491, 1.442695
    %v1496 = vpow.pop %v1495
    %v1497 = vmul.f32 %v1492, 1.442695
    %v1498 = vpow.pop %v1497
    %v1499 = vmul.f32 %v1493, 1.442695
    %v1500 = vpow.pop %v1499
    %v1501 = vmul.f32 %v1494, 1.442695
    %v1502 = vpow.pop %v1501
    %v1503 = vadd.f32 %v1496, 1.0
    %v1504 = vadd.f32 %v1498, 1.0
    %v1505 = vadd.f32 %v1500, 1.0
    %v1506 = vadd.f32 %v1502, 1.0
    %v1507 = vrcp.pop %v1503
    %v1508 = vmul.f32 1.0, %v1507
    %v1509 = vrcp.pop %v1504
    %v1510 = vmul.f32 1.0, %v1509
    %v1511 = vrcp.pop %v1505
    %v1512 = vmul.f32 1.0, %v1511
    %v1513 = vrcp.pop %v1506
    %v1514 = vmul.f32 1.0, %v1513
    %v1515 = vmul.f32 %v1514, 2.0
    %v1516 = vsub.f32 %v1515, 1.0
    %v1517 = vmul.f32 %v1510, %v1341
    %v1518 = vmul.f32 %v1508, %v1516
    %v1519 = vadd.f32 %v1517, %v1518
    %v1520 = vtanh.pop %v1519
    %v1521 = vmul.f32 %v1512, %v1520
    %1522 = vst [vmem:[#allocation2 + $0x28] sm:$0xff] %v1521
    %1523 = vmatprep.subr.mxu0 %v452
    %1524 = vmatpush1.msra.mxu0 %v451
    %1525 = vmatprep.subr.mxu0 %v448
    %1526 = vmatpush1.msra.mxu0 %v447
    %1527 = vmatprep.subr.mxu0 %v444
    %1528 = vmatpush1.msra.mxu0 %v443
    %1529 = vmatprep.subr.mxu0 %v440
    %1530 = vmatpush1.msra.mxu0 %v439
    %1531 = vmatprep.subr.mxu0 %v436
    %1532 = vmatpush1.msra.mxu0 %v435
    %1533 = vmatprep.subr.mxu0 %v432
    %1534 = vmatpush1.msra.mxu0 %v431
    %1535 = vmatprep.subr.mxu0 %v428
    %1536 = vmatpush1.msra.mxu0 %v427
    %1537 = vmatprep.subr.mxu0 %v424
    %1538 = vmatpush1.msra.mxu0 %v423
    %1539 = vmatprep.subr.mxu0 %v420
    %1540 = vmatpush1.msra.mxu0 %v419
    %1541 = vmatprep.subr.mxu0 %v416
    %1542 = vmatpush1.msra.mxu0 %v415
    %1543 = vmatprep.subr.mxu0 %v412
    %1544 = vmatpush1.msra.mxu0 %v411
    %1545 = vmatprep.subr.mxu0 %v408
    %1546 = vmatpush1.msra.mxu0 %v407
    %1547 = vmatprep.subr.mxu0 %v404
    %1548 = vmatpush1.msra.mxu0 %v403
    %1549 = vmatprep.subr.mxu0 %v400
    %1550 = vmatpush1.msra.mxu0 %v399
    %1551 = vmatprep.subr.mxu0 %v396
    %1552 = vmatpush1.msra.mxu0 %v395
    %1553 = vmatprep.subr.mxu0 %v392
    %1554 = vmatpush1.msra.mxu0 %v391
    %1555 = vmatprep.subr.mxu0 0.0
    %1556 = vmatpush2.msra.mxu0 0.0
    %1557 = vmatprep.subr.mxu0 0.0
    %1558 = vmatpush2.msra.mxu0 0.0
    %1559 = vmatprep.subr.mxu0 0.0
    %1560 = vmatpush2.msra.mxu0 0.0
    %1561 = vmatprep.subr.mxu0 0.0
    %1562 = vmatpush2.msra.mxu0 0.0
    %1563 = vmatprep.subr.mxu0 0.0
    %1564 = vmatpush2.msra.mxu0 0.0
    %1565 = vmatprep.subr.mxu0 0.0
    %1566 = vmatpush2.msra.mxu0 0.0
    %1567 = vmatprep.subr.mxu0 0.0
    %1568 = vmatpush2.msra.mxu0 0.0
    %1569 = vmatprep.subr.mxu0 0.0
    %1570 = vmatpush2.msra.mxu0 0.0
    %1571 = vmatprep.subr.mxu0 0.0
    %1572 = vmatpush2.msra.mxu0 0.0
    %1573 = vmatprep.subr.mxu0 0.0
    %1574 = vmatpush2.msra.mxu0 0.0
    %1575 = vmatprep.subr.mxu0 0.0
    %1576 = vmatpush2.msra.mxu0 0.0
    %1577 = vmatprep.subr.mxu0 0.0
    %1578 = vmatpush2.msra.mxu0 0.0
    %1579 = vmatprep.subr.mxu0 0.0
    %1580 = vmatpush2.msra.mxu0 0.0
    %1581 = vmatprep.subr.mxu0 0.0
    %1582 = vmatpush2.msra.mxu0 0.0
    %1583 = vmatprep.subr.mxu0 0.0
    %1584 = vmatpush2.msra.mxu0 0.0
    %1585 = vmatprep.subr.mxu0 0.0
    %1586 = vmatpush2.msra.mxu0 0.0
    %1587 = vmatprep.mubr.f32.mxu0 0.0
    %1588 = vmatmul.mubr.f32.gmra.mxu0 %v1521
    %v1589 = vpop.f32.mrf.mxu0
    %v1590 = vadd.f32 0.0, %v1589
    %v1591 = vpop.f32.mrf.mxu0
    %v1592 = vadd.f32 0.0, %v1591
    %1593 = vdwg.mxu0
    %1594 = vmatprep.subr.mxu0 %v454
    %1595 = vmatpush1.msra.mxu0 %v453
    %1596 = vmatprep.subr.mxu0 %v450
    %1597 = vmatpush1.msra.mxu0 %v449
    %1598 = vmatprep.subr.mxu0 %v446
    %1599 = vmatpush1.msra.mxu0 %v445
    %1600 = vmatprep.subr.mxu0 %v442
    %1601 = vmatpush1.msra.mxu0 %v441
    %1602 = vmatprep.subr.mxu0 %v438
    %1603 = vmatpush1.msra.mxu0 %v437
    %1604 = vmatprep.subr.mxu0 %v434
    %1605 = vmatpush1.msra.mxu0 %v433
    %1606 = vmatprep.subr.mxu0 %v430
    %1607 = vmatpush1.msra.mxu0 %v429
    %1608 = vmatprep.subr.mxu0 %v426
    %1609 = vmatpush1.msra.mxu0 %v425
    %1610 = vmatprep.subr.mxu0 %v422
    %1611 = vmatpush1.msra.mxu0 %v421
    %1612 = vmatprep.subr.mxu0 %v418
    %1613 = vmatpush1.msra.mxu0 %v417
    %1614 = vmatprep.subr.mxu0 %v414
    %1615 = vmatpush1.msra.mxu0 %v413
    %1616 = vmatprep.subr.mxu0 %v410
    %1617 = vmatpush1.msra.mxu0 %v409
    %1618 = vmatprep.subr.mxu0 %v406
    %1619 = vmatpush1.msra.mxu0 %v405
    %1620 = vmatprep.subr.mxu0 %v402
    %1621 = vmatpush1.msra.mxu0 %v401
    %1622 = vmatprep.subr.mxu0 %v398
    %1623 = vmatpush1.msra.mxu0 %v397
    %1624 = vmatprep.subr.mxu0 %v394
    %1625 = vmatpush1.msra.mxu0 %v393
    %1626 = vmatprep.subr.mxu0 0.0
    %1627 = vmatpush2.msra.mxu0 0.0
    %1628 = vmatprep.subr.mxu0 0.0
    %1629 = vmatpush2.msra.mxu0 0.0
    %1630 = vmatprep.subr.mxu0 0.0
    %1631 = vmatpush2.msra.mxu0 0.0
    %1632 = vmatprep.subr.mxu0 0.0
    %1633 = vmatpush2.msra.mxu0 0.0
    %1634 = vmatprep.subr.mxu0 0.0
    %1635 = vmatpush2.msra.mxu0 0.0
    %1636 = vmatprep.subr.mxu0 0.0
    %1637 = vmatpush2.msra.mxu0 0.0
    %1638 = vmatprep.subr.mxu0 0.0
    %1639 = vmatpush2.msra.mxu0 0.0
    %1640 = vmatprep.subr.mxu0 0.0
    %1641 = vmatpush2.msra.mxu0 0.0
    %1642 = vmatprep.subr.mxu0 0.0
    %1643 = vmatpush2.msra.mxu0 0.0
    %1644 = vmatprep.subr.mxu0 0.0
    %1645 = vmatpush2.msra.mxu0 0.0
    %1646 = vmatprep.subr.mxu0 0.0
    %1647 = vmatpush2.msra.mxu0 0.0
    %1648 = vmatprep.subr.mxu0 0.0
    %1649 = vmatpush2.msra.mxu0 0.0
    %1650 = vmatprep.subr.mxu0 0.0
    %1651 = vmatpush2.msra.mxu0 0.0
    %1652 = vmatprep.subr.mxu0 0.0
    %1653 = vmatpush2.msra.mxu0 0.0
    %1654 = vmatprep.subr.mxu0 0.0
    %1655 = vmatpush2.msra.mxu0 0.0
    %1656 = vmatprep.subr.mxu0 0.0
    %1657 = vmatpush2.msra.mxu0 0.0
    %1658 = vmatprep.mubr.f32.mxu0 0.0
    %1659 = vmatmul.mubr.f32.gmra.mxu0 %v1521
    %v1660 = vpop.f32.mrf.mxu0
    %v1661 = vadd.f32 0.0, %v1660
    %v1662 = vpop.f32.mrf.mxu0
    %v1663 = vadd.f32 0.0, %v1662
    %1664 = vdwg.mxu0
    %v1665 = vadd.f32 %v268, %v1590
    %v1666 = vadd.f32 %v270, %v1592
    %v1667 = vadd.f32 %v381, %v1661
    %v1668 = vadd.f32 %v383, %v1663
    %v1669 = vxor.u32 %v1665, 2147483648
    %v1670 = vxor.u32 %v1666, 2147483648
    %v1671 = vxor.u32 %v1667, 2147483648
    %v1672 = vxor.u32 %v1668, 2147483648
    %v1673 = vmul.f32 %v1669, 1.442695
    %v1674 = vpow.pop %v1673
    %v1675 = vmul.f32 %v1670, 1.442695
    %v1676 = vpow.pop %v1675
    %v1677 = vmul.f32 %v1671, 1.442695
    %v1678 = vpow.pop %v1677
    %v1679 = vmul.f32 %v1672, 1.442695
    %v1680 = vpow.pop %v1679
    %v1681 = vadd.f32 %v1674, 1.0
    %v1682 = vadd.f32 %v1676, 1.0
    %v1683 = vadd.f32 %v1678, 1.0
    %v1684 = vadd.f32 %v1680, 1.0
    %v1685 = vrcp.pop %v1681
    %v1686 = vmul.f32 1.0, %v1685
    %v1687 = vrcp.pop %v1682
    %v1688 = vmul.f32 1.0, %v1687
    %v1689 = vrcp.pop %v1683
    %v1690 = vmul.f32 1.0, %v1689
    %v1691 = vrcp.pop %v1684
    %v1692 = vmul.f32 1.0, %v1691
    %v1693 = vmul.f32 %v1692, 2.0
    %v1694 = vsub.f32 %v1693, 1.0
    %v1695 = vmul.f32 %v1688, %v1519
    %v1696 = vmul.f32 %v1686, %v1694
    %v1697 = vadd.f32 %v1695, %v1696
    %v1698 = vtanh.pop %v1697
    %v1699 = vmul.f32 %v1690, %v1698
    %1700 = vst [vmem:[#allocation2 + $0x30] sm:$0xff] %v1699
    %1701 = vmatprep.subr.mxu0 %v452
    %1702 = vmatpush1.msra.mxu0 %v451
    %1703 = vmatprep.subr.mxu0 %v448
    %1704 = vmatpush1.msra.mxu0 %v447
    %1705 = vmatprep.subr.mxu0 %v444
    %1706 = vmatpush1.msra.mxu0 %v443
    %1707 = vmatprep.subr.mxu0 %v440
    %1708 = vmatpush1.msra.mxu0 %v439
    %1709 = vmatprep.subr.mxu0 %v436
    %1710 = vmatpush1.msra.mxu0 %v435
    %1711 = vmatprep.subr.mxu0 %v432
    %1712 = vmatpush1.msra.mxu0 %v431
    %1713 = vmatprep.subr.mxu0 %v428
    %1714 = vmatpush1.msra.mxu0 %v427
    %1715 = vmatprep.subr.mxu0 %v424
    %1716 = vmatpush1.msra.mxu0 %v423
    %1717 = vmatprep.subr.mxu0 %v420
    %1718 = vmatpush1.msra.mxu0 %v419
    %1719 = vmatprep.subr.mxu0 %v416
    %1720 = vmatpush1.msra.mxu0 %v415
    %1721 = vmatprep.subr.mxu0 %v412
    %1722 = vmatpush1.msra.mxu0 %v411
    %1723 = vmatprep.subr.mxu0 %v408
    %1724 = vmatpush1.msra.mxu0 %v407
    %1725 = vmatprep.subr.mxu0 %v404
    %1726 = vmatpush1.msra.mxu0 %v403
    %1727 = vmatprep.subr.mxu0 %v400
    %1728 = vmatpush1.msra.mxu0 %v399
    %1729 = vmatprep.subr.mxu0 %v396
    %1730 = vmatpush1.msra.mxu0 %v395
    %1731 = vmatprep.subr.mxu0 %v392
    %1732 = vmatpush1.msra.mxu0 %v391
    %1733 = vmatprep.subr.mxu0 0.0
    %1734 = vmatpush2.msra.mxu0 0.0
    %1735 = vmatprep.subr.mxu0 0.0
    %1736 = vmatpush2.msra.mxu0 0.0
    %1737 = vmatprep.subr.mxu0 0.0
    %1738 = vmatpush2.msra.mxu0 0.0
    %1739 = vmatprep.subr.mxu0 0.0
    %1740 = vmatpush2.msra.mxu0 0.0
    %1741 = vmatprep.subr.mxu0 0.0
    %1742 = vmatpush2.msra.mxu0 0.0
    %1743 = vmatprep.subr.mxu0 0.0
    %1744 = vmatpush2.msra.mxu0 0.0
    %1745 = vmatprep.subr.mxu0 0.0
    %1746 = vmatpush2.msra.mxu0 0.0
    %1747 = vmatprep.subr.mxu0 0.0
    %1748 = vmatpush2.msra.mxu0 0.0
    %1749 = vmatprep.subr.mxu0 0.0
    %1750 = vmatpush2.msra.mxu0 0.0
    %1751 = vmatprep.subr.mxu0 0.0
    %1752 = vmatpush2.msra.mxu0 0.0
    %1753 = vmatprep.subr.mxu0 0.0
    %1754 = vmatpush2.msra.mxu0 0.0
    %1755 = vmatprep.subr.mxu0 0.0
    %1756 = vmatpush2.msra.mxu0 0.0
    %1757 = vmatprep.subr.mxu0 0.0
    %1758 = vmatpush2.msra.mxu0 0.0
    %1759 = vmatprep.subr.mxu0 0.0
    %1760 = vmatpush2.msra.mxu0 0.0
    %1761 = vmatprep.subr.mxu0 0.0
    %1762 = vmatpush2.msra.mxu0 0.0
    %1763 = vmatprep.subr.mxu0 0.0
    %1764 = vmatpush2.msra.mxu0 0.0
    %1765 = vmatprep.mubr.f32.mxu0 0.0
    %1766 = vmatmul.mubr.f32.gmra.mxu0 %v1699
    %v1767 = vpop.f32.mrf.mxu0
    %v1768 = vadd.f32 0.0, %v1767
    %v1769 = vpop.f32.mrf.mxu0
    %v1770 = vadd.f32 0.0, %v1769
    %1771 = vdwg.mxu0
    %1772 = vmatprep.subr.mxu0 %v454
    %1773 = vmatpush1.msra.mxu0 %v453
    %1774 = vmatprep.subr.mxu0 %v450
    %1775 = vmatpush1.msra.mxu0 %v449
    %1776 = vmatprep.subr.mxu0 %v446
    %1777 = vmatpush1.msra.mxu0 %v445
    %1778 = vmatprep.subr.mxu0 %v442
    %1779 = vmatpush1.msra.mxu0 %v441
    %1780 = vmatprep.subr.mxu0 %v438
    %1781 = vmatpush1.msra.mxu0 %v437
    %1782 = vmatprep.subr.mxu0 %v434
    %1783 = vmatpush1.msra.mxu0 %v433
    %1784 = vmatprep.subr.mxu0 %v430
    %1785 = vmatpush1.msra.mxu0 %v429
    %1786 = vmatprep.subr.mxu0 %v426
    %1787 = vmatpush1.msra.mxu0 %v425
    %1788 = vmatprep.subr.mxu0 %v422
    %1789 = vmatpush1.msra.mxu0 %v421
    %1790 = vmatprep.subr.mxu0 %v418
    %1791 = vmatpush1.msra.mxu0 %v417
    %1792 = vmatprep.subr.mxu0 %v414
    %1793 = vmatpush1.msra.mxu0 %v413
    %1794 = vmatprep.subr.mxu0 %v410
    %1795 = vmatpush1.msra.mxu0 %v409
    %1796 = vmatprep.subr.mxu0 %v406
    %1797 = vmatpush1.msra.mxu0 %v405
    %1798 = vmatprep.subr.mxu0 %v402
    %1799 = vmatpush1.msra.mxu0 %v401
    %1800 = vmatprep.subr.mxu0 %v398
    %1801 = vmatpush1.msra.mxu0 %v397
    %1802 = vmatprep.subr.mxu0 %v394
    %1803 = vmatpush1.msra.mxu0 %v393
    %1804 = vmatprep.subr.mxu0 0.0
    %1805 = vmatpush2.msra.mxu0 0.0
    %1806 = vmatprep.subr.mxu0 0.0
    %1807 = vmatpush2.msra.mxu0 0.0
    %1808 = vmatprep.subr.mxu0 0.0
    %1809 = vmatpush2.msra.mxu0 0.0
    %1810 = vmatprep.subr.mxu0 0.0
    %1811 = vmatpush2.msra.mxu0 0.0
    %1812 = vmatprep.subr.mxu0 0.0
    %1813 = vmatpush2.msra.mxu0 0.0
    %1814 = vmatprep.subr.mxu0 0.0
    %1815 = vmatpush2.msra.mxu0 0.0
    %1816 = vmatprep.subr.mxu0 0.0
    %1817 = vmatpush2.msra.mxu0 0.0
    %1818 = vmatprep.subr.mxu0 0.0
    %1819 = vmatpush2.msra.mxu0 0.0
    %1820 = vmatprep.subr.mxu0 0.0
    %1821 = vmatpush2.msra.mxu0 0.0
    %1822 = vmatprep.subr.mxu0 0.0
    %1823 = vmatpush2.msra.mxu0 0.0
    %1824 = vmatprep.subr.mxu0 0.0
    %1825 = vmatpush2.msra.mxu0 0.0
    %1826 = vmatprep.subr.mxu0 0.0
    %1827 = vmatpush2.msra.mxu0 0.0
    %1828 = vmatprep.subr.mxu0 0.0
    %1829 = vmatpush2.msra.mxu0 0.0
    %1830 = vmatprep.subr.mxu0 0.0
    %1831 = vmatpush2.msra.mxu0 0.0
    %1832 = vmatprep.subr.mxu0 0.0
    %1833 = vmatpush2.msra.mxu0 0.0
    %1834 = vmatprep.subr.mxu0 0.0
    %1835 = vmatpush2.msra.mxu0 0.0
    %1836 = vmatprep.mubr.f32.mxu0 0.0
    %1837 = vmatmul.mubr.f32.gmra.mxu0 %v1699
    %v1838 = vpop.f32.mrf.mxu0
    %v1839 = vadd.f32 0.0, %v1838
    %v1840 = vpop.f32.mrf.mxu0
    %v1841 = vadd.f32 0.0, %v1840
    %1842 = vdwg.mxu0
    %v1843 = vadd.f32 %v274, %v1768
    %v1844 = vadd.f32 %v276, %v1770
    %v1845 = vadd.f32 %v387, %v1839
    %v1846 = vadd.f32 %v389, %v1841
    %v1847 = vxor.u32 %v1843, 2147483648
    %v1848 = vxor.u32 %v1844, 2147483648
    %v1849 = vxor.u32 %v1845, 2147483648
    %v1850 = vxor.u32 %v1846, 2147483648
    %v1851 = vmul.f32 %v1847, 1.442695
    %v1852 = vpow.pop %v1851
    %v1853 = vmul.f32 %v1848, 1.442695
    %v1854 = vpow.pop %v1853
    %v1855 = vmul.f32 %v1849, 1.442695
    %v1856 = vpow.pop %v1855
    %v1857 = vmul.f32 %v1850, 1.442695
    %v1858 = vpow.pop %v1857
    %v1859 = vadd.f32 %v1852, 1.0
    %v1860 = vadd.f32 %v1854, 1.0
    %v1861 = vadd.f32 %v1856, 1.0
    %v1862 = vadd.f32 %v1858, 1.0
    %v1863 = vrcp.pop %v1859
    %v1864 = vmul.f32 1.0, %v1863
    %v1865 = vrcp.pop %v1860
    %v1866 = vmul.f32 1.0, %v1865
    %v1867 = vrcp.pop %v1861
    %v1868 = vmul.f32 1.0, %v1867
    %v1869 = vrcp.pop %v1862
    %v1870 = vmul.f32 1.0, %v1869
    %v1871 = vmul.f32 %v1870, 2.0
    %v1872 = vsub.f32 %v1871, 1.0
    %v1873 = vmul.f32 %v1866, %v1697
    %v1874 = vmul.f32 %v1864, %v1872
    %v1875 = vadd.f32 %v1873, %v1874
    %v1876 = vtanh.pop %v1875
    %v1877 = vmul.f32 %v1868, %v1876
    %1878 = vst [vmem:[#allocation2 + $0x38] sm:$0xff] %v1877
    %v1879 = vld [vmem:[#allocation2] sm:$0xff]
    %v1880 = vld [vmem:[#allocation2 + $0x8] sm:$0xff]
    %v1881 = vld [vmem:[#allocation2 + $0x10] sm:$0xff]
    %v1882 = vld [vmem:[#allocation2 + $0x18] sm:$0xff]
    %v1883 = vld [vmem:[#allocation2 + $0x20] sm:$0xff]
    %v1884 = vld [vmem:[#allocation2 + $0x28] sm:$0xff]
    %v1885 = vld [vmem:[#allocation2 + $0x30] sm:$0xff]
    %v1886 = vld [vmem:[#allocation2 + $0x38] sm:$0xff]
    %v1887 = vld [vmem:[#allocation5] sm:$0xff]
    %v1888 = vld [vmem:[#allocation5 + $0x8] sm:$0xff]
    %v1889 = vld [vmem:[#allocation5 + $0x10] sm:$0xff]
    %v1890 = vld [vmem:[#allocation5 + $0x18] sm:$0xff]
    %v1891 = vld [vmem:[#allocation5 + $0x20] sm:$0xff]
    %v1892 = vld [vmem:[#allocation5 + $0x28] sm:$0xff]
    %v1893 = vld [vmem:[#allocation5 + $0x30] sm:$0xff]
    %v1894 = vld [vmem:[#allocation5 + $0x38] sm:$0xff]
    %v1895 = vld [vmem:[#allocation5 + $0x40] sm:$0xff]
    %v1896 = vld [vmem:[#allocation5 + $0x48] sm:$0xff]
    %v1897 = vld [vmem:[#allocation5 + $0x50] sm:$0xff]
    %v1898 = vld [vmem:[#allocation5 + $0x58] sm:$0xff]
    %v1899 = vld [vmem:[#allocation5 + $0x60] sm:$0xff]
    %v1900 = vld [vmem:[#allocation5 + $0x68] sm:$0xff]
    %v1901 = vld [vmem:[#allocation5 + $0x70] sm:$0xff]
    %v1902 = vld [vmem:[#allocation5 + $0x78] sm:$0xff]
    %v1903 = vld [vmem:[#allocation5 + $0x80] sm:$0xff]
    %v1904 = vld [vmem:[#allocation5 + $0x88] sm:$0xff]
    %v1905 = vld [vmem:[#allocation5 + $0x90] sm:$0xff]
    %v1906 = vld [vmem:[#allocation5 + $0x98] sm:$0xff]
    %v1907 = vld [vmem:[#allocation5 + $0xa0] sm:$0xff]
    %v1908 = vld [vmem:[#allocation5 + $0xa8] sm:$0xff]
    %v1909 = vld [vmem:[#allocation5 + $0xb0] sm:$0xff]
    %v1910 = vld [vmem:[#allocation5 + $0xb8] sm:$0xff]
    %v1911 = vld [vmem:[#allocation5 + $0xc0] sm:$0xff]
    %v1912 = vld [vmem:[#allocation5 + $0xc8] sm:$0xff]
    %v1913 = vld [vmem:[#allocation5 + $0xd0] sm:$0xff]
    %v1914 = vld [vmem:[#allocation5 + $0xd8] sm:$0xff]
    %v1915 = vld [vmem:[#allocation5 + $0xe0] sm:$0xff]
    %v1916 = vld [vmem:[#allocation5 + $0xe8] sm:$0xff]
    %v1917 = vld [vmem:[#allocation5 + $0xf0] sm:$0xff]
    %v1918 = vld [vmem:[#allocation5 + $0xf8] sm:$0xff]
    %v1919 = vld [vmem:[#allocation5 + $0x100] sm:$0xff]
    %v1920 = vld [vmem:[#allocation5 + $0x108] sm:$0xff]
    %v1921 = vld [vmem:[#allocation5 + $0x110] sm:$0xff]
    %v1922 = vld [vmem:[#allocation5 + $0x118] sm:$0xff]
    %v1923 = vld [vmem:[#allocation5 + $0x120] sm:$0xff]
    %v1924 = vld [vmem:[#allocation5 + $0x128] sm:$0xff]
    %v1925 = vld [vmem:[#allocation5 + $0x130] sm:$0xff]
    %v1926 = vld [vmem:[#allocation5 + $0x138] sm:$0xff]
    %v1927 = vld [vmem:[#allocation5 + $0x140] sm:$0xff]
    %v1928 = vld [vmem:[#allocation5 + $0x148] sm:$0xff]
    %v1929 = vld [vmem:[#allocation5 + $0x150] sm:$0xff]
    %v1930 = vld [vmem:[#allocation5 + $0x158] sm:$0xff]
    %v1931 = vld [vmem:[#allocation5 + $0x160] sm:$0xff]
    %v1932 = vld [vmem:[#allocation5 + $0x168] sm:$0xff]
    %v1933 = vld [vmem:[#allocation5 + $0x170] sm:$0xff]
    %v1934 = vld [vmem:[#allocation5 + $0x178] sm:$0xff]
    %v1935 = vld [vmem:[#allocation5 + $0x180] sm:$0xff]
    %v1936 = vld [vmem:[#allocation5 + $0x188] sm:$0xff]
    %v1937 = vld [vmem:[#allocation5 + $0x190] sm:$0xff]
    %v1938 = vld [vmem:[#allocation5 + $0x198] sm:$0xff]
    %v1939 = vld [vmem:[#allocation5 + $0x1a0] sm:$0xff]
    %v1940 = vld [vmem:[#allocation5 + $0x1a8] sm:$0xff]
    %v1941 = vld [vmem:[#allocation5 + $0x1b0] sm:$0xff]
    %v1942 = vld [vmem:[#allocation5 + $0x1b8] sm:$0xff]
    %v1943 = vld [vmem:[#allocation5 + $0x1c0] sm:$0xff]
    %v1944 = vld [vmem:[#allocation5 + $0x1c8] sm:$0xff]
    %v1945 = vld [vmem:[#allocation5 + $0x1d0] sm:$0xff]
    %v1946 = vld [vmem:[#allocation5 + $0x1d8] sm:$0xff]
    %v1947 = vld [vmem:[#allocation5 + $0x1e0] sm:$0xff]
    %v1948 = vld [vmem:[#allocation5 + $0x1e8] sm:$0xff]
    %v1949 = vld [vmem:[#allocation5 + $0x1f0] sm:$0xff]
    %v1950 = vld [vmem:[#allocation5 + $0x1f8] sm:$0xff]
    %v1951 = vld [vmem:[%s6] sm:$0xf]
    %v1953 = vlaneseq
    %v1954 = vshrl.u32 %v1953, 7
    %v1955 = vsub.s32 0, %v1954
    %v1956 = vrot.slane %v1951, %v1955
    %v1957 = vlaneseq
    %v1958 = vshrl.u32 %v1957, 7
    %v1959 = vsub.s32 1, %v1958
    %v1960 = vrot.slane %v1951, %v1959
    %v1961 = vlaneseq
    %v1962 = vshrl.u32 %v1961, 7
    %v1963 = vsub.s32 2, %v1962
    %v1964 = vrot.slane %v1951, %v1963
    %v1965 = vlaneseq
    %v1966 = vshrl.u32 %v1965, 7
    %v1967 = vsub.s32 3, %v1966
    %v1968 = vrot.slane %v1951, %v1967
    %1973 = vmatprep.subr.mxu0 %v1948
    %1974 = vmatpush1.msra.mxu0 %v1947
    %1975 = vmatprep.subr.mxu0 %v1944
    %1976 = vmatpush1.msra.mxu0 %v1943
    %1977 = vmatprep.subr.mxu0 %v1940
    %1978 = vmatpush1.msra.mxu0 %v1939
    %1979 = vmatprep.subr.mxu0 %v1936
    %1980 = vmatpush1.msra.mxu0 %v1935
    %1981 = vmatprep.subr.mxu0 %v1932
    %1982 = vmatpush1.msra.mxu0 %v1931
    %1983 = vmatprep.subr.mxu0 %v1928
    %1984 = vmatpush1.msra.mxu0 %v1927
    %1985 = vmatprep.subr.mxu0 %v1924
    %1986 = vmatpush1.msra.mxu0 %v1923
    %1987 = vmatprep.subr.mxu0 %v1920
    %1988 = vmatpush1.msra.mxu0 %v1919
    %1989 = vmatprep.subr.mxu0 %v1916
    %1990 = vmatpush1.msra.mxu0 %v1915
    %1991 = vmatprep.subr.mxu0 %v1912
    %1992 = vmatpush1.msra.mxu0 %v1911
    %1993 = vmatprep.subr.mxu0 %v1908
    %1994 = vmatpush1.msra.mxu0 %v1907
    %1995 = vmatprep.subr.mxu0 %v1904
    %1996 = vmatpush1.msra.mxu0 %v1903
    %1997 = vmatprep.subr.mxu0 %v1900
    %1998 = vmatpush1.msra.mxu0 %v1899
    %1999 = vmatprep.subr.mxu0 %v1896
    %2000 = vmatpush1.msra.mxu0 %v1895
    %2001 = vmatprep.subr.mxu0 %v1892
    %2002 = vmatpush1.msra.mxu0 %v1891
    %2003 = vmatprep.subr.mxu0 %v1888
    %2004 = vmatpush1.msra.mxu0 %v1887
    %2005 = vmatprep.subr.mxu0 0.0
    %2006 = vmatpush2.msra.mxu0 0.0
    %2007 = vmatprep.subr.mxu0 0.0
    %2008 = vmatpush2.msra.mxu0 0.0
    %2009 = vmatprep.subr.mxu0 0.0
    %2010 = vmatpush2.msra.mxu0 0.0
    %2011 = vmatprep.subr.mxu0 0.0
    %2012 = vmatpush2.msra.mxu0 0.0
    %2013 = vmatprep.subr.mxu0 0.0
    %2014 = vmatpush2.msra.mxu0 0.0
    %2015 = vmatprep.subr.mxu0 0.0
    %2016 = vmatpush2.msra.mxu0 0.0
    %2017 = vmatprep.subr.mxu0 0.0
    %2018 = vmatpush2.msra.mxu0 0.0
    %2019 = vmatprep.subr.mxu0 0.0
    %2020 = vmatpush2.msra.mxu0 0.0
    %2021 = vmatprep.subr.mxu0 0.0
    %2022 = vmatpush2.msra.mxu0 0.0
    %2023 = vmatprep.subr.mxu0 0.0
    %2024 = vmatpush2.msra.mxu0 0.0
    %2025 = vmatprep.subr.mxu0 0.0
    %2026 = vmatpush2.msra.mxu0 0.0
    %2027 = vmatprep.subr.mxu0 0.0
    %2028 = vmatpush2.msra.mxu0 0.0
    %2029 = vmatprep.subr.mxu0 0.0
    %2030 = vmatpush2.msra.mxu0 0.0
    %2031 = vmatprep.subr.mxu0 0.0
    %2032 = vmatpush2.msra.mxu0 0.0
    %2033 = vmatprep.subr.mxu0 0.0
    %2034 = vmatpush2.msra.mxu0 0.0
    %2035 = vmatprep.subr.mxu0 0.0
    %2036 = vmatpush2.msra.mxu0 0.0
    %2037 = vmatprep.mubr.f32.mxu0 0.0
    %2038 = vmatmul.mubr.f32.gmra.mxu0 %v1879
    %v2039 = vpop.f32.mrf.mxu0
    %v2040 = vadd.f32 %v1956, %v2039
    %v2041 = vpop.f32.mrf.mxu0
    %v2042 = vadd.f32 %v1960, %v2041
    %2043 = vmatprep.mubr.f32.mxu0 0.0
    %2044 = vmatmul.mubr.f32.gmra.mxu0 %v1880
    %v2045 = vpop.f32.mrf.mxu0
    %v2046 = vadd.f32 %v1956, %v2045
    %v2047 = vpop.f32.mrf.mxu0
    %v2048 = vadd.f32 %v1960, %v2047
    %2049 = vmatprep.mubr.f32.mxu0 0.0
    %2050 = vmatmul.mubr.f32.gmra.mxu0 %v1881
    %v2051 = vpop.f32.mrf.mxu0
    %v2052 = vadd.f32 %v1956, %v2051
    %v2053 = vpop.f32.mrf.mxu0
    %v2054 = vadd.f32 %v1960, %v2053
    %2055 = vmatprep.mubr.f32.mxu0 0.0
    %2056 = vmatmul.mubr.f32.gmra.mxu0 %v1882
    %v2057 = vpop.f32.mrf.mxu0
    %v2058 = vadd.f32 %v1956, %v2057
    %v2059 = vpop.f32.mrf.mxu0
    %v2060 = vadd.f32 %v1960, %v2059
    %2061 = vmatprep.mubr.f32.mxu0 0.0
    %2062 = vmatmul.mubr.f32.gmra.mxu0 %v1883
    %v2063 = vpop.f32.mrf.mxu0
    %v2064 = vadd.f32 %v1956, %v2063
    %v2065 = vpop.f32.mrf.mxu0
    %v2066 = vadd.f32 %v1960, %v2065
    %2067 = vmatprep.mubr.f32.mxu0 0.0
    %2068 = vmatmul.mubr.f32.gmra.mxu0 %v1884
    %v2069 = vpop.f32.mrf.mxu0
    %v2070 = vadd.f32 %v1956, %v2069
    %v2071 = vpop.f32.mrf.mxu0
    %v2072 = vadd.f32 %v1960, %v2071
    %2073 = vmatprep.mubr.f32.mxu0 0.0
    %2074 = vmatmul.mubr.f32.gmra.mxu0 %v1885
    %v2075 = vpop.f32.mrf.mxu0
    %v2076 = vadd.f32 %v1956, %v2075
    %v2077 = vpop.f32.mrf.mxu0
    %v2078 = vadd.f32 %v1960, %v2077
    %2079 = vmatprep.mubr.f32.mxu0 0.0
    %2080 = vmatmul.mubr.f32.gmra.mxu0 %v1886
    %v2081 = vpop.f32.mrf.mxu0
    %v2082 = vadd.f32 %v1956, %v2081
    %v2083 = vpop.f32.mrf.mxu0
    %v2084 = vadd.f32 %v1960, %v2083
    %2085 = vdwg.mxu0
    %2086 = vmatprep.subr.mxu0 %v1950
    %2087 = vmatpush1.msra.mxu0 %v1949
    %2088 = vmatprep.subr.mxu0 %v1946
    %2089 = vmatpush1.msra.mxu0 %v1945
    %2090 = vmatprep.subr.mxu0 %v1942
    %2091 = vmatpush1.msra.mxu0 %v1941
    %2092 = vmatprep.subr.mxu0 %v1938
    %2093 = vmatpush1.msra.mxu0 %v1937
    %2094 = vmatprep.subr.mxu0 %v1934
    %2095 = vmatpush1.msra.mxu0 %v1933
    %2096 = vmatprep.subr.mxu0 %v1930
    %2097 = vmatpush1.msra.mxu0 %v1929
    %2098 = vmatprep.subr.mxu0 %v1926
    %2099 = vmatpush1.msra.mxu0 %v1925
    %2100 = vmatprep.subr.mxu0 %v1922
    %2101 = vmatpush1.msra.mxu0 %v1921
    %2102 = vmatprep.subr.mxu0 %v1918
    %2103 = vmatpush1.msra.mxu0 %v1917
    %2104 = vmatprep.subr.mxu0 %v1914
    %2105 = vmatpush1.msra.mxu0 %v1913
    %2106 = vmatprep.subr.mxu0 %v1910
    %2107 = vmatpush1.msra.mxu0 %v1909
    %2108 = vmatprep.subr.mxu0 %v1906
    %2109 = vmatpush1.msra.mxu0 %v1905
    %2110 = vmatprep.subr.mxu0 %v1902
    %2111 = vmatpush1.msra.mxu0 %v1901
    %2112 = vmatprep.subr.mxu0 %v1898
    %2113 = vmatpush1.msra.mxu0 %v1897
    %2114 = vmatprep.subr.mxu0 %v1894
    %2115 = vmatpush1.msra.mxu0 %v1893
    %2116 = vmatprep.subr.mxu0 %v1890
    %2117 = vmatpush1.msra.mxu0 %v1889
    %2118 = vmatprep.subr.mxu0 0.0
    %2119 = vmatpush2.msra.mxu0 0.0
    %2120 = vmatprep.subr.mxu0 0.0
    %2121 = vmatpush2.msra.mxu0 0.0
    %2122 = vmatprep.subr.mxu0 0.0
    %2123 = vmatpush2.msra.mxu0 0.0
    %2124 = vmatprep.subr.mxu0 0.0
    %2125 = vmatpush2.msra.mxu0 0.0
    %2126 = vmatprep.subr.mxu0 0.0
    %2127 = vmatpush2.msra.mxu0 0.0
    %2128 = vmatprep.subr.mxu0 0.0
    %2129 = vmatpush2.msra.mxu0 0.0
    %2130 = vmatprep.subr.mxu0 0.0
    %2131 = vmatpush2.msra.mxu0 0.0
    %2132 = vmatprep.subr.mxu0 0.0
    %2133 = vmatpush2.msra.mxu0 0.0
    %2134 = vmatprep.subr.mxu0 0.0
    %2135 = vmatpush2.msra.mxu0 0.0
    %2136 = vmatprep.subr.mxu0 0.0
    %2137 = vmatpush2.msra.mxu0 0.0
    %2138 = vmatprep.subr.mxu0 0.0
    %2139 = vmatpush2.msra.mxu0 0.0
    %2140 = vmatprep.subr.mxu0 0.0
    %2141 = vmatpush2.msra.mxu0 0.0
    %2142 = vmatprep.subr.mxu0 0.0
    %2143 = vmatpush2.msra.mxu0 0.0
    %2144 = vmatprep.subr.mxu0 0.0
    %2145 = vmatpush2.msra.mxu0 0.0
    %2146 = vmatprep.subr.mxu0 0.0
    %2147 = vmatpush2.msra.mxu0 0.0
    %2148 = vmatprep.subr.mxu0 0.0
    %2149 = vmatpush2.msra.mxu0 0.0
    %2150 = vmatprep.mubr.f32.mxu0 0.0
    %2151 = vmatmul.mubr.f32.gmra.mxu0 %v1879
    %v2152 = vpop.f32.mrf.mxu0
    %v2153 = vadd.f32 %v1964, %v2152
    %v2154 = vpop.f32.mrf.mxu0
    %v2155 = vadd.f32 %v1968, %v2154
    %2156 = vmatprep.mubr.f32.mxu0 0.0
    %2157 = vmatmul.mubr.f32.gmra.mxu0 %v1880
    %v2158 = vpop.f32.mrf.mxu0
    %v2159 = vadd.f32 %v1964, %v2158
    %v2160 = vpop.f32.mrf.mxu0
    %v2161 = vadd.f32 %v1968, %v2160
    %2162 = vmatprep.mubr.f32.mxu0 0.0
    %2163 = vmatmul.mubr.f32.gmra.mxu0 %v1881
    %v2164 = vpop.f32.mrf.mxu0
    %v2165 = vadd.f32 %v1964, %v2164
    %v2166 = vpop.f32.mrf.mxu0
    %v2167 = vadd.f32 %v1968, %v2166
    %2168 = vmatprep.mubr.f32.mxu0 0.0
    %2169 = vmatmul.mubr.f32.gmra.mxu0 %v1882
    %v2170 = vpop.f32.mrf.mxu0
    %v2171 = vadd.f32 %v1964, %v2170
    %v2172 = vpop.f32.mrf.mxu0
    %v2173 = vadd.f32 %v1968, %v2172
    %2174 = vmatprep.mubr.f32.mxu0 0.0
    %2175 = vmatmul.mubr.f32.gmra.mxu0 %v1883
    %v2176 = vpop.f32.mrf.mxu0
    %v2177 = vadd.f32 %v1964, %v2176
    %v2178 = vpop.f32.mrf.mxu0
    %v2179 = vadd.f32 %v1968, %v2178
    %2180 = vmatprep.mubr.f32.mxu0 0.0
    %2181 = vmatmul.mubr.f32.gmra.mxu0 %v1884
    %v2182 = vpop.f32.mrf.mxu0
    %v2183 = vadd.f32 %v1964, %v2182
    %v2184 = vpop.f32.mrf.mxu0
    %v2185 = vadd.f32 %v1968, %v2184
    %2186 = vmatprep.mubr.f32.mxu0 0.0
    %2187 = vmatmul.mubr.f32.gmra.mxu0 %v1885
    %v2188 = vpop.f32.mrf.mxu0
    %v2189 = vadd.f32 %v1964, %v2188
    %v2190 = vpop.f32.mrf.mxu0
    %v2191 = vadd.f32 %v1968, %v2190
    %2192 = vmatprep.mubr.f32.mxu0 0.0
    %2193 = vmatmul.mubr.f32.gmra.mxu0 %v1886
    %v2194 = vpop.f32.mrf.mxu0
    %v2195 = vadd.f32 %v1964, %v2194
    %v2196 = vpop.f32.mrf.mxu0
    %v2197 = vadd.f32 %v1968, %v2196
    %2198 = vdwg.mxu0
    %v2199 = vld [vmem:[#allocation7] sm:$0xff]
    %v2200 = vld [vmem:[#allocation7 + $0x8] sm:$0xff]
    %v2201 = vld [vmem:[#allocation7 + $0x10] sm:$0xff]
    %v2202 = vld [vmem:[#allocation7 + $0x18] sm:$0xff]
    %v2203 = vld [vmem:[#allocation7 + $0x20] sm:$0xff]
    %v2204 = vld [vmem:[#allocation7 + $0x28] sm:$0xff]
    %v2205 = vld [vmem:[#allocation7 + $0x30] sm:$0xff]
    %v2206 = vld [vmem:[#allocation7 + $0x38] sm:$0xff]
    %v2207 = vld [vmem:[#allocation7 + $0x40] sm:$0xff]
    %v2208 = vld [vmem:[#allocation7 + $0x48] sm:$0xff]
    %v2209 = vld [vmem:[#allocation7 + $0x50] sm:$0xff]
    %v2210 = vld [vmem:[#allocation7 + $0x58] sm:$0xff]
    %v2211 = vld [vmem:[#allocation7 + $0x60] sm:$0xff]
    %v2212 = vld [vmem:[#allocation7 + $0x68] sm:$0xff]
    %v2213 = vld [vmem:[#allocation7 + $0x70] sm:$0xff]
    %v2214 = vld [vmem:[#allocation7 + $0x78] sm:$0xff]
    %v2215 = vld [vmem:[#allocation7 + $0x80] sm:$0xff]
    %v2216 = vld [vmem:[#allocation7 + $0x88] sm:$0xff]
    %v2217 = vld [vmem:[#allocation7 + $0x90] sm:$0xff]
    %v2218 = vld [vmem:[#allocation7 + $0x98] sm:$0xff]
    %v2219 = vld [vmem:[#allocation7 + $0xa0] sm:$0xff]
    %v2220 = vld [vmem:[#allocation7 + $0xa8] sm:$0xff]
    %v2221 = vld [vmem:[#allocation7 + $0xb0] sm:$0xff]
    %v2222 = vld [vmem:[#allocation7 + $0xb8] sm:$0xff]
    %v2223 = vld [vmem:[#allocation7 + $0xc0] sm:$0xff]
    %v2224 = vld [vmem:[#allocation7 + $0xc8] sm:$0xff]
    %v2225 = vld [vmem:[#allocation7 + $0xd0] sm:$0xff]
    %v2226 = vld [vmem:[#allocation7 + $0xd8] sm:$0xff]
    %v2227 = vld [vmem:[#allocation7 + $0xe0] sm:$0xff]
    %v2228 = vld [vmem:[#allocation7 + $0xe8] sm:$0xff]
    %v2229 = vld [vmem:[#allocation7 + $0xf0] sm:$0xff]
    %v2230 = vld [vmem:[#allocation7 + $0xf8] sm:$0xff]
    %v2231 = vld [vmem:[#allocation7 + $0x100] sm:$0xff]
    %v2232 = vld [vmem:[#allocation7 + $0x108] sm:$0xff]
    %v2233 = vld [vmem:[#allocation7 + $0x110] sm:$0xff]
    %v2234 = vld [vmem:[#allocation7 + $0x118] sm:$0xff]
    %v2235 = vld [vmem:[#allocation7 + $0x120] sm:$0xff]
    %v2236 = vld [vmem:[#allocation7 + $0x128] sm:$0xff]
    %v2237 = vld [vmem:[#allocation7 + $0x130] sm:$0xff]
    %v2238 = vld [vmem:[#allocation7 + $0x138] sm:$0xff]
    %v2239 = vld [vmem:[#allocation7 + $0x140] sm:$0xff]
    %v2240 = vld [vmem:[#allocation7 + $0x148] sm:$0xff]
    %v2241 = vld [vmem:[#allocation7 + $0x150] sm:$0xff]
    %v2242 = vld [vmem:[#allocation7 + $0x158] sm:$0xff]
    %v2243 = vld [vmem:[#allocation7 + $0x160] sm:$0xff]
    %v2244 = vld [vmem:[#allocation7 + $0x168] sm:$0xff]
    %v2245 = vld [vmem:[#allocation7 + $0x170] sm:$0xff]
    %v2246 = vld [vmem:[#allocation7 + $0x178] sm:$0xff]
    %v2247 = vld [vmem:[#allocation7 + $0x180] sm:$0xff]
    %v2248 = vld [vmem:[#allocation7 + $0x188] sm:$0xff]
    %v2249 = vld [vmem:[#allocation7 + $0x190] sm:$0xff]
    %v2250 = vld [vmem:[#allocation7 + $0x198] sm:$0xff]
    %v2251 = vld [vmem:[#allocation7 + $0x1a0] sm:$0xff]
    %v2252 = vld [vmem:[#allocation7 + $0x1a8] sm:$0xff]
    %v2253 = vld [vmem:[#allocation7 + $0x1b0] sm:$0xff]
    %v2254 = vld [vmem:[#allocation7 + $0x1b8] sm:$0xff]
    %v2255 = vld [vmem:[#allocation7 + $0x1c0] sm:$0xff]
    %v2256 = vld [vmem:[#allocation7 + $0x1c8] sm:$0xff]
    %v2257 = vld [vmem:[#allocation7 + $0x1d0] sm:$0xff]
    %v2258 = vld [vmem:[#allocation7 + $0x1d8] sm:$0xff]
    %v2259 = vld [vmem:[#allocation7 + $0x1e0] sm:$0xff]
    %v2260 = vld [vmem:[#allocation7 + $0x1e8] sm:$0xff]
    %v2261 = vld [vmem:[#allocation7 + $0x1f0] sm:$0xff]
    %v2262 = vld [vmem:[#allocation7 + $0x1f8] sm:$0xff]
    %2263 = vmatprep.subr.mxu0 %v2260
    %2264 = vmatpush1.msra.mxu0 %v2259
    %2265 = vmatprep.subr.mxu0 %v2256
    %2266 = vmatpush1.msra.mxu0 %v2255
    %2267 = vmatprep.subr.mxu0 %v2252
    %2268 = vmatpush1.msra.mxu0 %v2251
    %2269 = vmatprep.subr.mxu0 %v2248
    %2270 = vmatpush1.msra.mxu0 %v2247
    %2271 = vmatprep.subr.mxu0 %v2244
    %2272 = vmatpush1.msra.mxu0 %v2243
    %2273 = vmatprep.subr.mxu0 %v2240
    %2274 = vmatpush1.msra.mxu0 %v2239
    %2275 = vmatprep.subr.mxu0 %v2236
    %2276 = vmatpush1.msra.mxu0 %v2235
    %2277 = vmatprep.subr.mxu0 %v2232
    %2278 = vmatpush1.msra.mxu0 %v2231
    %2279 = vmatprep.subr.mxu0 %v2228
    %2280 = vmatpush1.msra.mxu0 %v2227
    %2281 = vmatprep.subr.mxu0 %v2224
    %2282 = vmatpush1.msra.mxu0 %v2223
    %2283 = vmatprep.subr.mxu0 %v2220
    %2284 = vmatpush1.msra.mxu0 %v2219
    %2285 = vmatprep.subr.mxu0 %v2216
    %2286 = vmatpush1.msra.mxu0 %v2215
    %2287 = vmatprep.subr.mxu0 %v2212
    %2288 = vmatpush1.msra.mxu0 %v2211
    %2289 = vmatprep.subr.mxu0 %v2208
    %2290 = vmatpush1.msra.mxu0 %v2207
    %2291 = vmatprep.subr.mxu0 %v2204
    %2292 = vmatpush1.msra.mxu0 %v2203
    %2293 = vmatprep.subr.mxu0 %v2200
    %2294 = vmatpush1.msra.mxu0 %v2199
    %2295 = vmatprep.subr.mxu0 0.0
    %2296 = vmatpush2.msra.mxu0 0.0
    %2297 = vmatprep.subr.mxu0 0.0
    %2298 = vmatpush2.msra.mxu0 0.0
    %2299 = vmatprep.subr.mxu0 0.0
    %2300 = vmatpush2.msra.mxu0 0.0
    %2301 = vmatprep.subr.mxu0 0.0
    %2302 = vmatpush2.msra.mxu0 0.0
    %2303 = vmatprep.subr.mxu0 0.0
    %2304 = vmatpush2.msra.mxu0 0.0
    %2305 = vmatprep.subr.mxu0 0.0
    %2306 = vmatpush2.msra.mxu0 0.0
    %2307 = vmatprep.subr.mxu0 0.0
    %2308 = vmatpush2.msra.mxu0 0.0
    %2309 = vmatprep.subr.mxu0 0.0
    %2310 = vmatpush2.msra.mxu0 0.0
    %2311 = vmatprep.subr.mxu0 0.0
    %2312 = vmatpush2.msra.mxu0 0.0
    %2313 = vmatprep.subr.mxu0 0.0
    %2314 = vmatpush2.msra.mxu0 0.0
    %2315 = vmatprep.subr.mxu0 0.0
    %2316 = vmatpush2.msra.mxu0 0.0
    %2317 = vmatprep.subr.mxu0 0.0
    %2318 = vmatpush2.msra.mxu0 0.0
    %2319 = vmatprep.subr.mxu0 0.0
    %2320 = vmatpush2.msra.mxu0 0.0
    %2321 = vmatprep.subr.mxu0 0.0
    %2322 = vmatpush2.msra.mxu0 0.0
    %2323 = vmatprep.subr.mxu0 0.0
    %2324 = vmatpush2.msra.mxu0 0.0
    %2325 = vmatprep.subr.mxu0 0.0
    %2326 = vmatpush2.msra.mxu0 0.0
    %2327 = vmatprep.mubr.f32.mxu0 0.0
    %2328 = vmatmul.mubr.f32.gmra.mxu0 0.0
    %v2329 = vpop.f32.mrf.mxu0
    %v2330 = vadd.f32 0.0, %v2329
    %v2331 = vpop.f32.mrf.mxu0
    %v2332 = vadd.f32 0.0, %v2331
    %2333 = vdwg.mxu0
    %2334 = vmatprep.subr.mxu0 %v2262
    %2335 = vmatpush1.msra.mxu0 %v2261
    %2336 = vmatprep.subr.mxu0 %v2258
    %2337 = vmatpush1.msra.mxu0 %v2257
    %2338 = vmatprep.subr.mxu0 %v2254
    %2339 = vmatpush1.msra.mxu0 %v2253
    %2340 = vmatprep.subr.mxu0 %v2250
    %2341 = vmatpush1.msra.mxu0 %v2249
    %2342 = vmatprep.subr.mxu0 %v2246
    %2343 = vmatpush1.msra.mxu0 %v2245
    %2344 = vmatprep.subr.mxu0 %v2242
    %2345 = vmatpush1.msra.mxu0 %v2241
    %2346 = vmatprep.subr.mxu0 %v2238
    %2347 = vmatpush1.msra.mxu0 %v2237
    %2348 = vmatprep.subr.mxu0 %v2234
    %2349 = vmatpush1.msra.mxu0 %v2233
    %2350 = vmatprep.subr.mxu0 %v2230
    %2351 = vmatpush1.msra.mxu0 %v2229
    %2352 = vmatprep.subr.mxu0 %v2226
    %2353 = vmatpush1.msra.mxu0 %v2225
    %2354 = vmatprep.subr.mxu0 %v2222
    %2355 = vmatpush1.msra.mxu0 %v2221
    %2356 = vmatprep.subr.mxu0 %v2218
    %2357 = vmatpush1.msra.mxu0 %v2217
    %2358 = vmatprep.subr.mxu0 %v2214
    %2359 = vmatpush1.msra.mxu0 %v2213
    %2360 = vmatprep.subr.mxu0 %v2210
    %2361 = vmatpush1.msra.mxu0 %v2209
    %2362 = vmatprep.subr.mxu0 %v2206
    %2363 = vmatpush1.msra.mxu0 %v2205
    %2364 = vmatprep.subr.mxu0 %v2202
    %2365 = vmatpush1.msra.mxu0 %v2201
    %2366 = vmatprep.subr.mxu0 0.0
    %2367 = vmatpush2.msra.mxu0 0.0
    %2368 = vmatprep.subr.mxu0 0.0
    %2369 = vmatpush2.msra.mxu0 0.0
    %2370 = vmatprep.subr.mxu0 0.0
    %2371 = vmatpush2.msra.mxu0 0.0
    %2372 = vmatprep.subr.mxu0 0.0
    %2373 = vmatpush2.msra.mxu0 0.0
    %2374 = vmatprep.subr.mxu0 0.0
    %2375 = vmatpush2.msra.mxu0 0.0
    %2376 = vmatprep.subr.mxu0 0.0
    %2377 = vmatpush2.msra.mxu0 0.0
    %2378 = vmatprep.subr.mxu0 0.0
    %2379 = vmatpush2.msra.mxu0 0.0
    %2380 = vmatprep.subr.mxu0 0.0
    %2381 = vmatpush2.msra.mxu0 0.0
    %2382 = vmatprep.subr.mxu0 0.0
    %2383 = vmatpush2.msra.mxu0 0.0
    %2384 = vmatprep.subr.mxu0 0.0
    %2385 = vmatpush2.msra.mxu0 0.0
    %2386 = vmatprep.subr.mxu0 0.0
    %2387 = vmatpush2.msra.mxu0 0.0
    %2388 = vmatprep.subr.mxu0 0.0
    %2389 = vmatpush2.msra.mxu0 0.0
    %2390 = vmatprep.subr.mxu0 0.0
    %2391 = vmatpush2.msra.mxu0 0.0
    %2392 = vmatprep.subr.mxu0 0.0
    %2393 = vmatpush2.msra.mxu0 0.0
    %2394 = vmatprep.subr.mxu0 0.0
    %2395 = vmatpush2.msra.mxu0 0.0
    %2396 = vmatprep.subr.mxu0 0.0
    %2397 = vmatpush2.msra.mxu0 0.0
    %2398 = vmatprep.mubr.f32.mxu0 0.0
    %2399 = vmatmul.mubr.f32.gmra.mxu0 0.0
    %v2400 = vpop.f32.mrf.mxu0
    %v2401 = vadd.f32 0.0, %v2400
    %v2402 = vpop.f32.mrf.mxu0
    %v2403 = vadd.f32 0.0, %v2402
    %2404 = vdwg.mxu0
    %v2405 = vadd.f32 %v2040, %v2330
    %v2406 = vadd.f32 %v2042, %v2332
    %v2407 = vadd.f32 %v2153, %v2401
    %v2408 = vadd.f32 %v2155, %v2403
    %v2409 = vxor.u32 %v2405, 2147483648
    %v2410 = vxor.u32 %v2406, 2147483648
    %v2411 = vxor.u32 %v2407, 2147483648
    %v2412 = vxor.u32 %v2408, 2147483648
    %v2413 = vmul.f32 %v2409, 1.442695
    %v2414 = vpow.pop %v2413
    %v2415 = vmul.f32 %v2410, 1.442695
    %v2416 = vpow.pop %v2415
    %v2417 = vmul.f32 %v2411, 1.442695
    %v2418 = vpow.pop %v2417
    %v2419 = vmul.f32 %v2412, 1.442695
    %v2420 = vpow.pop %v2419
    %v2421 = vadd.f32 %v2414, 1.0
    %v2422 = vadd.f32 %v2416, 1.0
    %v2423 = vadd.f32 %v2418, 1.0
    %v2424 = vadd.f32 %v2420, 1.0
    %v2425 = vrcp.pop %v2421
    %v2426 = vmul.f32 1.0, %v2425
    %v2427 = vrcp.pop %v2422
    %v2428 = vmul.f32 1.0, %v2427
    %v2429 = vrcp.pop %v2423
    %v2430 = vmul.f32 1.0, %v2429
    %v2431 = vrcp.pop %v2424
    %v2432 = vmul.f32 1.0, %v2431
    %v2433 = vmul.f32 %v2432, 2.0
    %v2434 = vsub.f32 %v2433, 1.0
    %v2435 = vmul.f32 %v2428, 0.0
    %v2436 = vmul.f32 %v2426, %v2434
    %v2437 = vadd.f32 %v2435, %v2436
    %v2438 = vtanh.pop %v2437
    %v2439 = vmul.f32 %v2430, %v2438
    %v2440 = vld [vmem:[#allocation8] sm:$0xff]
    %v2441 = vld [vmem:[#allocation8 + $0x8] sm:$0xff]
    %v2442 = vld [vmem:[#allocation8 + $0x10] sm:$0xff]
    %v2443 = vld [vmem:[#allocation8 + $0x18] sm:$0xff]
    %v2444 = vld [vmem:[#allocation8 + $0x20] sm:$0xff]
    %v2445 = vld [vmem:[#allocation8 + $0x28] sm:$0xff]
    %v2446 = vld [vmem:[#allocation8 + $0x30] sm:$0xff]
    %v2447 = vld [vmem:[#allocation8 + $0x38] sm:$0xff]
    %v2448 = vld [vmem:[#allocation8 + $0x40] sm:$0xff]
    %v2449 = vld [vmem:[#allocation8 + $0x48] sm:$0xff]
    %v2450 = vld [vmem:[#allocation8 + $0x50] sm:$0xff]
    %v2451 = vld [vmem:[#allocation8 + $0x58] sm:$0xff]
    %v2452 = vld [vmem:[#allocation8 + $0x60] sm:$0xff]
    %v2453 = vld [vmem:[#allocation8 + $0x68] sm:$0xff]
    %v2454 = vld [vmem:[#allocation8 + $0x70] sm:$0xff]
    %v2455 = vld [vmem:[#allocation8 + $0x78] sm:$0xff]
    %2456 = vmatprep.subr.mxu0 0.0
    %2457 = vmatpush1.msra.mxu0 %v2455
    %2458 = vmatprep.subr.mxu0 0.0
    %2459 = vmatpush1.msra.mxu0 %v2454
    %2460 = vmatprep.subr.mxu0 0.0
    %2461 = vmatpush1.msra.mxu0 %v2453
    %2462 = vmatprep.subr.mxu0 0.0
    %2463 = vmatpush1.msra.mxu0 %v2452
    %2464 = vmatprep.subr.mxu0 0.0
    %2465 = vmatpush1.msra.mxu0 %v2451
    %2466 = vmatprep.subr.mxu0 0.0
    %2467 = vmatpush1.msra.mxu0 %v2450
    %2468 = vmatprep.subr.mxu0 0.0
    %2469 = vmatpush1.msra.mxu0 %v2449
    %2470 = vmatprep.subr.mxu0 0.0
    %2471 = vmatpush1.msra.mxu0 %v2448
    %2472 = vmatprep.subr.mxu0 0.0
    %2473 = vmatpush1.msra.mxu0 %v2447
    %2474 = vmatprep.subr.mxu0 0.0
    %2475 = vmatpush1.msra.mxu0 %v2446
    %2476 = vmatprep.subr.mxu0 0.0
    %2477 = vmatpush1.msra.mxu0 %v2445
    %2478 = vmatprep.subr.mxu0 0.0
    %2479 = vmatpush1.msra.mxu0 %v2444
    %2480 = vmatprep.subr.mxu0 0.0
    %2481 = vmatpush1.msra.mxu0 %v2443
    %2482 = vmatprep.subr.mxu0 0.0
    %2483 = vmatpush1.msra.mxu0 %v2442
    %2484 = vmatprep.subr.mxu0 0.0
    %2485 = vmatpush1.msra.mxu0 %v2441
    %2486 = vmatprep.subr.mxu0 0.0
    %2487 = vmatpush1.msra.mxu0 %v2440
    %2488 = vmatprep.subr.mxu0 0.0
    %2489 = vmatpush2.msra.mxu0 0.0
    %2490 = vmatprep.subr.mxu0 0.0
    %2491 = vmatpush2.msra.mxu0 0.0
    %2492 = vmatprep.subr.mxu0 0.0
    %2493 = vmatpush2.msra.mxu0 0.0
    %2494 = vmatprep.subr.mxu0 0.0
    %2495 = vmatpush2.msra.mxu0 0.0
    %2496 = vmatprep.subr.mxu0 0.0
    %2497 = vmatpush2.msra.mxu0 0.0
    %2498 = vmatprep.subr.mxu0 0.0
    %2499 = vmatpush2.msra.mxu0 0.0
    %2500 = vmatprep.subr.mxu0 0.0
    %2501 = vmatpush2.msra.mxu0 0.0
    %2502 = vmatprep.subr.mxu0 0.0
    %2503 = vmatpush2.msra.mxu0 0.0
    %2504 = vmatprep.subr.mxu0 0.0
    %2505 = vmatpush2.msra.mxu0 0.0
    %2506 = vmatprep.subr.mxu0 0.0
    %2507 = vmatpush2.msra.mxu0 0.0
    %2508 = vmatprep.subr.mxu0 0.0
    %2509 = vmatpush2.msra.mxu0 0.0
    %2510 = vmatprep.subr.mxu0 0.0
    %2511 = vmatpush2.msra.mxu0 0.0
    %2512 = vmatprep.subr.mxu0 0.0
    %2513 = vmatpush2.msra.mxu0 0.0
    %2514 = vmatprep.subr.mxu0 0.0
    %2515 = vmatpush2.msra.mxu0 0.0
    %2516 = vmatprep.subr.mxu0 0.0
    %2517 = vmatpush2.msra.mxu0 0.0
    %2518 = vmatprep.subr.mxu0 0.0
    %2519 = vmatpush2.msra.mxu0 0.0
    %2520 = vmatprep.mubr.f32.mxu0 0.0
    %2521 = vmatmul.mubr.f32.gmra.mxu0 %v2439
    %v2522 = vpop.f32.mrf.mxu0
    %v2523 = vadd.f32 0.0, %v2522
    %v2524 = vpop.f32.mrf.mxu0
    %2525 = vdwg.mxu0
    %v2526 = vadd.f32 %v92, %v2523
    %2527 = vmatprep.subr.mxu0 %v2260
    %2528 = vmatpush1.msra.mxu0 %v2259
    %2529 = vmatprep.subr.mxu0 %v2256
    %2530 = vmatpush1.msra.mxu0 %v2255
    %2531 = vmatprep.subr.mxu0 %v2252
    %2532 = vmatpush1.msra.mxu0 %v2251
    %2533 = vmatprep.subr.mxu0 %v2248
    %2534 = vmatpush1.msra.mxu0 %v2247
    %2535 = vmatprep.subr.mxu0 %v2244
    %2536 = vmatpush1.msra.mxu0 %v2243
    %2537 = vmatprep.subr.mxu0 %v2240
    %2538 = vmatpush1.msra.mxu0 %v2239
    %2539 = vmatprep.subr.mxu0 %v2236
    %2540 = vmatpush1.msra.mxu0 %v2235
    %2541 = vmatprep.subr.mxu0 %v2232
    %2542 = vmatpush1.msra.mxu0 %v2231
    %2543 = vmatprep.subr.mxu0 %v2228
    %2544 = vmatpush1.msra.mxu0 %v2227
    %2545 = vmatprep.subr.mxu0 %v2224
    %2546 = vmatpush1.msra.mxu0 %v2223
    %2547 = vmatprep.subr.mxu0 %v2220
    %2548 = vmatpush1.msra.mxu0 %v2219
    %2549 = vmatprep.subr.mxu0 %v2216
    %2550 = vmatpush1.msra.mxu0 %v2215
    %2551 = vmatprep.subr.mxu0 %v2212
    %2552 = vmatpush1.msra.mxu0 %v2211
    %2553 = vmatprep.subr.mxu0 %v2208
    %2554 = vmatpush1.msra.mxu0 %v2207
    %2555 = vmatprep.subr.mxu0 %v2204
    %2556 = vmatpush1.msra.mxu0 %v2203
    %2557 = vmatprep.subr.mxu0 %v2200
    %2558 = vmatpush1.msra.mxu0 %v2199
    %2559 = vmatprep.subr.mxu0 0.0
    %2560 = vmatpush2.msra.mxu0 0.0
    %2561 = vmatprep.subr.mxu0 0.0
    %2562 = vmatpush2.msra.mxu0 0.0
    %2563 = vmatprep.subr.mxu0 0.0
    %2564 = vmatpush2.msra.mxu0 0.0
    %2565 = vmatprep.subr.mxu0 0.0
    %2566 = vmatpush2.msra.mxu0 0.0
    %2567 = vmatprep.subr.mxu0 0.0
    %2568 = vmatpush2.msra.mxu0 0.0
    %2569 = vmatprep.subr.mxu0 0.0
    %2570 = vmatpush2.msra.mxu0 0.0
    %2571 = vmatprep.subr.mxu0 0.0
    %2572 = vmatpush2.msra.mxu0 0.0
    %2573 = vmatprep.subr.mxu0 0.0
    %2574 = vmatpush2.msra.mxu0 0.0
    %2575 = vmatprep.subr.mxu0 0.0
    %2576 = vmatpush2.msra.mxu0 0.0
    %2577 = vmatprep.subr.mxu0 0.0
    %2578 = vmatpush2.msra.mxu0 0.0
    %2579 = vmatprep.subr.mxu0 0.0
    %2580 = vmatpush2.msra.mxu0 0.0
    %2581 = vmatprep.subr.mxu0 0.0
    %2582 = vmatpush2.msra.mxu0 0.0
    %2583 = vmatprep.subr.mxu0 0.0
    %2584 = vmatpush2.msra.mxu0 0.0
    %2585 = vmatprep.subr.mxu0 0.0
    %2586 = vmatpush2.msra.mxu0 0.0
    %2587 = vmatprep.subr.mxu0 0.0
    %2588 = vmatpush2.msra.mxu0 0.0
    %2589 = vmatprep.subr.mxu0 0.0
    %2590 = vmatpush2.msra.mxu0 0.0
    %2591 = vmatprep.mubr.f32.mxu0 0.0
    %2592 = vmatmul.mubr.f32.gmra.mxu0 %v2439
    %v2593 = vpop.f32.mrf.mxu0
    %v2594 = vadd.f32 0.0, %v2593
    %v2595 = vpop.f32.mrf.mxu0
    %v2596 = vadd.f32 0.0, %v2595
    %2597 = vdwg.mxu0
    %2598 = vmatprep.subr.mxu0 %v2262
    %2599 = vmatpush1.msra.mxu0 %v2261
    %2600 = vmatprep.subr.mxu0 %v2258
    %2601 = vmatpush1.msra.mxu0 %v2257
    %2602 = vmatprep.subr.mxu0 %v2254
    %2603 = vmatpush1.msra.mxu0 %v2253
    %2604 = vmatprep.subr.mxu0 %v2250
    %2605 = vmatpush1.msra.mxu0 %v2249
    %2606 = vmatprep.subr.mxu0 %v2246
    %2607 = vmatpush1.msra.mxu0 %v2245
    %2608 = vmatprep.subr.mxu0 %v2242
    %2609 = vmatpush1.msra.mxu0 %v2241
    %2610 = vmatprep.subr.mxu0 %v2238
    %2611 = vmatpush1.msra.mxu0 %v2237
    %2612 = vmatprep.subr.mxu0 %v2234
    %2613 = vmatpush1.msra.mxu0 %v2233
    %2614 = vmatprep.subr.mxu0 %v2230
    %2615 = vmatpush1.msra.mxu0 %v2229
    %2616 = vmatprep.subr.mxu0 %v2226
    %2617 = vmatpush1.msra.mxu0 %v2225
    %2618 = vmatprep.subr.mxu0 %v2222
    %2619 = vmatpush1.msra.mxu0 %v2221
    %2620 = vmatprep.subr.mxu0 %v2218
    %2621 = vmatpush1.msra.mxu0 %v2217
    %2622 = vmatprep.subr.mxu0 %v2214
    %2623 = vmatpush1.msra.mxu0 %v2213
    %2624 = vmatprep.subr.mxu0 %v2210
    %2625 = vmatpush1.msra.mxu0 %v2209
    %2626 = vmatprep.subr.mxu0 %v2206
    %2627 = vmatpush1.msra.mxu0 %v2205
    %2628 = vmatprep.subr.mxu0 %v2202
    %2629 = vmatpush1.msra.mxu0 %v2201
    %2630 = vmatprep.subr.mxu0 0.0
    %2631 = vmatpush2.msra.mxu0 0.0
    %2632 = vmatprep.subr.mxu0 0.0
    %2633 = vmatpush2.msra.mxu0 0.0
    %2634 = vmatprep.subr.mxu0 0.0
    %2635 = vmatpush2.msra.mxu0 0.0
    %2636 = vmatprep.subr.mxu0 0.0
    %2637 = vmatpush2.msra.mxu0 0.0
    %2638 = vmatprep.subr.mxu0 0.0
    %2639 = vmatpush2.msra.mxu0 0.0
    %2640 = vmatprep.subr.mxu0 0.0
    %2641 = vmatpush2.msra.mxu0 0.0
    %2642 = vmatprep.subr.mxu0 0.0
    %2643 = vmatpush2.msra.mxu0 0.0
    %2644 = vmatprep.subr.mxu0 0.0
    %2645 = vmatpush2.msra.mxu0 0.0
    %2646 = vmatprep.subr.mxu0 0.0
    %2647 = vmatpush2.msra.mxu0 0.0
    %2648 = vmatprep.subr.mxu0 0.0
    %2649 = vmatpush2.msra.mxu0 0.0
    %2650 = vmatprep.subr.mxu0 0.0
    %2651 = vmatpush2.msra.mxu0 0.0
    %2652 = vmatprep.subr.mxu0 0.0
    %2653 = vmatpush2.msra.mxu0 0.0
    %2654 = vmatprep.subr.mxu0 0.0
    %2655 = vmatpush2.msra.mxu0 0.0
    %2656 = vmatprep.subr.mxu0 0.0
    %2657 = vmatpush2.msra.mxu0 0.0
    %2658 = vmatprep.subr.mxu0 0.0
    %2659 = vmatpush2.msra.mxu0 0.0
    %2660 = vmatprep.subr.mxu0 0.0
    %2661 = vmatpush2.msra.mxu0 0.0
    %2662 = vmatprep.mubr.f32.mxu0 0.0
    %2663 = vmatmul.mubr.f32.gmra.mxu0 %v2439
    %v2664 = vpop.f32.mrf.mxu0
    %v2665 = vadd.f32 0.0, %v2664
    %v2666 = vpop.f32.mrf.mxu0
    %v2667 = vadd.f32 0.0, %v2666
    %2668 = vdwg.mxu0
    %v2669 = vadd.f32 %v2046, %v2594
    %v2670 = vadd.f32 %v2048, %v2596
    %v2671 = vadd.f32 %v2159, %v2665
    %v2672 = vadd.f32 %v2161, %v2667
    %v2673 = vxor.u32 %v2669, 2147483648
    %v2674 = vxor.u32 %v2670, 2147483648
    %v2675 = vxor.u32 %v2671, 2147483648
    %v2676 = vxor.u32 %v2672, 2147483648
    %v2677 = vmul.f32 %v2673, 1.442695
    %v2678 = vpow.pop %v2677
    %v2679 = vmul.f32 %v2674, 1.442695
    %v2680 = vpow.pop %v2679
    %v2681 = vmul.f32 %v2675, 1.442695
    %v2682 = vpow.pop %v2681
    %v2683 = vmul.f32 %v2676, 1.442695
    %v2684 = vpow.pop %v2683
    %v2685 = vadd.f32 %v2678, 1.0
    %v2686 = vadd.f32 %v2680, 1.0
    %v2687 = vadd.f32 %v2682, 1.0
    %v2688 = vadd.f32 %v2684, 1.0
    %v2689 = vrcp.pop %v2685
    %v2690 = vmul.f32 1.0, %v2689
    %v2691 = vrcp.pop %v2686
    %v2692 = vmul.f32 1.0, %v2691
    %v2693 = vrcp.pop %v2687
    %v2694 = vmul.f32 1.0, %v2693
    %v2695 = vrcp.pop %v2688
    %v2696 = vmul.f32 1.0, %v2695
    %v2697 = vmul.f32 %v2696, 2.0
    %v2698 = vsub.f32 %v2697, 1.0
    %v2699 = vmul.f32 %v2692, %v2437
    %v2700 = vmul.f32 %v2690, %v2698
    %v2701 = vadd.f32 %v2699, %v2700
    %v2702 = vtanh.pop %v2701
    %v2703 = vmul.f32 %v2694, %v2702
    %v2704 = vld [vmem:[#allocation8 + $0x80] sm:$0xff]
    %v2705 = vld [vmem:[#allocation8 + $0x88] sm:$0xff]
    %v2706 = vld [vmem:[#allocation8 + $0x90] sm:$0xff]
    %v2707 = vld [vmem:[#allocation8 + $0x98] sm:$0xff]
    %v2708 = vld [vmem:[#allocation8 + $0xa0] sm:$0xff]
    %v2709 = vld [vmem:[#allocation8 + $0xa8] sm:$0xff]
    %v2710 = vld [vmem:[#allocation8 + $0xb0] sm:$0xff]
    %v2711 = vld [vmem:[#allocation8 + $0xb8] sm:$0xff]
    %v2712 = vld [vmem:[#allocation8 + $0xc0] sm:$0xff]
    %v2713 = vld [vmem:[#allocation8 + $0xc8] sm:$0xff]
    %v2714 = vld [vmem:[#allocation8 + $0xd0] sm:$0xff]
    %v2715 = vld [vmem:[#allocation8 + $0xd8] sm:$0xff]
    %v2716 = vld [vmem:[#allocation8 + $0xe0] sm:$0xff]
    %v2717 = vld [vmem:[#allocation8 + $0xe8] sm:$0xff]
    %v2718 = vld [vmem:[#allocation8 + $0xf0] sm:$0xff]
    %v2719 = vld [vmem:[#allocation8 + $0xf8] sm:$0xff]
    %2720 = vmatprep.subr.mxu0 0.0
    %2721 = vmatpush1.msra.mxu0 %v2719
    %2722 = vmatprep.subr.mxu0 0.0
    %2723 = vmatpush1.msra.mxu0 %v2718
    %2724 = vmatprep.subr.mxu0 0.0
    %2725 = vmatpush1.msra.mxu0 %v2717
    %2726 = vmatprep.subr.mxu0 0.0
    %2727 = vmatpush1.msra.mxu0 %v2716
    %2728 = vmatprep.subr.mxu0 0.0
    %2729 = vmatpush1.msra.mxu0 %v2715
    %2730 = vmatprep.subr.mxu0 0.0
    %2731 = vmatpush1.msra.mxu0 %v2714
    %2732 = vmatprep.subr.mxu0 0.0
    %2733 = vmatpush1.msra.mxu0 %v2713
    %2734 = vmatprep.subr.mxu0 0.0
    %2735 = vmatpush1.msra.mxu0 %v2712
    %2736 = vmatprep.subr.mxu0 0.0
    %2737 = vmatpush1.msra.mxu0 %v2711
    %2738 = vmatprep.subr.mxu0 0.0
    %2739 = vmatpush1.msra.mxu0 %v2710
    %2740 = vmatprep.subr.mxu0 0.0
    %2741 = vmatpush1.msra.mxu0 %v2709
    %2742 = vmatprep.subr.mxu0 0.0
    %2743 = vmatpush1.msra.mxu0 %v2708
    %2744 = vmatprep.subr.mxu0 0.0
    %2745 = vmatpush1.msra.mxu0 %v2707
    %2746 = vmatprep.subr.mxu0 0.0
    %2747 = vmatpush1.msra.mxu0 %v2706
    %2748 = vmatprep.subr.mxu0 0.0
    %2749 = vmatpush1.msra.mxu0 %v2705
    %2750 = vmatprep.subr.mxu0 0.0
    %2751 = vmatpush1.msra.mxu0 %v2704
    %2752 = vmatprep.subr.mxu0 0.0
    %2753 = vmatpush2.msra.mxu0 0.0
    %2754 = vmatprep.subr.mxu0 0.0
    %2755 = vmatpush2.msra.mxu0 0.0
    %2756 = vmatprep.subr.mxu0 0.0
    %2757 = vmatpush2.msra.mxu0 0.0
    %2758 = vmatprep.subr.mxu0 0.0
    %2759 = vmatpush2.msra.mxu0 0.0
    %2760 = vmatprep.subr.mxu0 0.0
    %2761 = vmatpush2.msra.mxu0 0.0
    %2762 = vmatprep.subr.mxu0 0.0
    %2763 = vmatpush2.msra.mxu0 0.0
    %2764 = vmatprep.subr.mxu0 0.0
    %2765 = vmatpush2.msra.mxu0 0.0
    %2766 = vmatprep.subr.mxu0 0.0
    %2767 = vmatpush2.msra.mxu0 0.0
    %2768 = vmatprep.subr.mxu0 0.0
    %2769 = vmatpush2.msra.mxu0 0.0
    %2770 = vmatprep.subr.mxu0 0.0
    %2771 = vmatpush2.msra.mxu0 0.0
    %2772 = vmatprep.subr.mxu0 0.0
    %2773 = vmatpush2.msra.mxu0 0.0
    %2774 = vmatprep.subr.mxu0 0.0
    %2775 = vmatpush2.msra.mxu0 0.0
    %2776 = vmatprep.subr.mxu0 0.0
    %2777 = vmatpush2.msra.mxu0 0.0
    %2778 = vmatprep.subr.mxu0 0.0
    %2779 = vmatpush2.msra.mxu0 0.0
    %2780 = vmatprep.subr.mxu0 0.0
    %2781 = vmatpush2.msra.mxu0 0.0
    %2782 = vmatprep.subr.mxu0 0.0
    %2783 = vmatpush2.msra.mxu0 0.0
    %2784 = vmatprep.mubr.f32.mxu0 0.0
    %2785 = vmatmul.mubr.f32.gmra.mxu0 %v2703
    %v2786 = vpop.f32.mrf.mxu0
    %v2787 = vadd.f32 0.0, %v2786
    %v2788 = vpop.f32.mrf.mxu0
    %2789 = vdwg.mxu0
    %v2790 = vadd.f32 %v2526, %v2787
    %2791 = vmatprep.subr.mxu0 %v2260
    %2792 = vmatpush1.msra.mxu0 %v2259
    %2793 = vmatprep.subr.mxu0 %v2256
    %2794 = vmatpush1.msra.mxu0 %v2255
    %2795 = vmatprep.subr.mxu0 %v2252
    %2796 = vmatpush1.msra.mxu0 %v2251
    %2797 = vmatprep.subr.mxu0 %v2248
    %2798 = vmatpush1.msra.mxu0 %v2247
    %2799 = vmatprep.subr.mxu0 %v2244
    %2800 = vmatpush1.msra.mxu0 %v2243
    %2801 = vmatprep.subr.mxu0 %v2240
    %2802 = vmatpush1.msra.mxu0 %v2239
    %2803 = vmatprep.subr.mxu0 %v2236
    %2804 = vmatpush1.msra.mxu0 %v2235
    %2805 = vmatprep.subr.mxu0 %v2232
    %2806 = vmatpush1.msra.mxu0 %v2231
    %2807 = vmatprep.subr.mxu0 %v2228
    %2808 = vmatpush1.msra.mxu0 %v2227
    %2809 = vmatprep.subr.mxu0 %v2224
    %2810 = vmatpush1.msra.mxu0 %v2223
    %2811 = vmatprep.subr.mxu0 %v2220
    %2812 = vmatpush1.msra.mxu0 %v2219
    %2813 = vmatprep.subr.mxu0 %v2216
    %2814 = vmatpush1.msra.mxu0 %v2215
    %2815 = vmatprep.subr.mxu0 %v2212
    %2816 = vmatpush1.msra.mxu0 %v2211
    %2817 = vmatprep.subr.mxu0 %v2208
    %2818 = vmatpush1.msra.mxu0 %v2207
    %2819 = vmatprep.subr.mxu0 %v2204
    %2820 = vmatpush1.msra.mxu0 %v2203
    %2821 = vmatprep.subr.mxu0 %v2200
    %2822 = vmatpush1.msra.mxu0 %v2199
    %2823 = vmatprep.subr.mxu0 0.0
    %2824 = vmatpush2.msra.mxu0 0.0
    %2825 = vmatprep.subr.mxu0 0.0
    %2826 = vmatpush2.msra.mxu0 0.0
    %2827 = vmatprep.subr.mxu0 0.0
    %2828 = vmatpush2.msra.mxu0 0.0
    %2829 = vmatprep.subr.mxu0 0.0
    %2830 = vmatpush2.msra.mxu0 0.0
    %2831 = vmatprep.subr.mxu0 0.0
    %2832 = vmatpush2.msra.mxu0 0.0
    %2833 = vmatprep.subr.mxu0 0.0
    %2834 = vmatpush2.msra.mxu0 0.0
    %2835 = vmatprep.subr.mxu0 0.0
    %2836 = vmatpush2.msra.mxu0 0.0
    %2837 = vmatprep.subr.mxu0 0.0
    %2838 = vmatpush2.msra.mxu0 0.0
    %2839 = vmatprep.subr.mxu0 0.0
    %2840 = vmatpush2.msra.mxu0 0.0
    %2841 = vmatprep.subr.mxu0 0.0
    %2842 = vmatpush2.msra.mxu0 0.0
    %2843 = vmatprep.subr.mxu0 0.0
    %2844 = vmatpush2.msra.mxu0 0.0
    %2845 = vmatprep.subr.mxu0 0.0
    %2846 = vmatpush2.msra.mxu0 0.0
    %2847 = vmatprep.subr.mxu0 0.0
    %2848 = vmatpush2.msra.mxu0 0.0
    %2849 = vmatprep.subr.mxu0 0.0
    %2850 = vmatpush2.msra.mxu0 0.0
    %2851 = vmatprep.subr.mxu0 0.0
    %2852 = vmatpush2.msra.mxu0 0.0
    %2853 = vmatprep.subr.mxu0 0.0
    %2854 = vmatpush2.msra.mxu0 0.0
    %2855 = vmatprep.mubr.f32.mxu0 0.0
    %2856 = vmatmul.mubr.f32.gmra.mxu0 %v2703
    %v2857 = vpop.f32.mrf.mxu0
    %v2858 = vadd.f32 0.0, %v2857
    %v2859 = vpop.f32.mrf.mxu0
    %v2860 = vadd.f32 0.0, %v2859
    %2861 = vdwg.mxu0
    %2862 = vmatprep.subr.mxu0 %v2262
    %2863 = vmatpush1.msra.mxu0 %v2261
    %2864 = vmatprep.subr.mxu0 %v2258
    %2865 = vmatpush1.msra.mxu0 %v2257
    %2866 = vmatprep.subr.mxu0 %v2254
    %2867 = vmatpush1.msra.mxu0 %v2253
    %2868 = vmatprep.subr.mxu0 %v2250
    %2869 = vmatpush1.msra.mxu0 %v2249
    %2870 = vmatprep.subr.mxu0 %v2246
    %2871 = vmatpush1.msra.mxu0 %v2245
    %2872 = vmatprep.subr.mxu0 %v2242
    %2873 = vmatpush1.msra.mxu0 %v2241
    %2874 = vmatprep.subr.mxu0 %v2238
    %2875 = vmatpush1.msra.mxu0 %v2237
    %2876 = vmatprep.subr.mxu0 %v2234
    %2877 = vmatpush1.msra.mxu0 %v2233
    %2878 = vmatprep.subr.mxu0 %v2230
    %2879 = vmatpush1.msra.mxu0 %v2229
    %2880 = vmatprep.subr.mxu0 %v2226
    %2881 = vmatpush1.msra.mxu0 %v2225
    %2882 = vmatprep.subr.mxu0 %v2222
    %2883 = vmatpush1.msra.mxu0 %v2221
    %2884 = vmatprep.subr.mxu0 %v2218
    %2885 = vmatpush1.msra.mxu0 %v2217
    %2886 = vmatprep.subr.mxu0 %v2214
    %2887 = vmatpush1.msra.mxu0 %v2213
    %2888 = vmatprep.subr.mxu0 %v2210
    %2889 = vmatpush1.msra.mxu0 %v2209
    %2890 = vmatprep.subr.mxu0 %v2206
    %2891 = vmatpush1.msra.mxu0 %v2205
    %2892 = vmatprep.subr.mxu0 %v2202
    %2893 = vmatpush1.msra.mxu0 %v2201
    %2894 = vmatprep.subr.mxu0 0.0
    %2895 = vmatpush2.msra.mxu0 0.0
    %2896 = vmatprep.subr.mxu0 0.0
    %2897 = vmatpush2.msra.mxu0 0.0
    %2898 = vmatprep.subr.mxu0 0.0
    %2899 = vmatpush2.msra.mxu0 0.0
    %2900 = vmatprep.subr.mxu0 0.0
    %2901 = vmatpush2.msra.mxu0 0.0
    %2902 = vmatprep.subr.mxu0 0.0
    %2903 = vmatpush2.msra.mxu0 0.0
    %2904 = vmatprep.subr.mxu0 0.0
    %2905 = vmatpush2.msra.mxu0 0.0
    %2906 = vmatprep.subr.mxu0 0.0
    %2907 = vmatpush2.msra.mxu0 0.0
    %2908 = vmatprep.subr.mxu0 0.0
    %2909 = vmatpush2.msra.mxu0 0.0
    %2910 = vmatprep.subr.mxu0 0.0
    %2911 = vmatpush2.msra.mxu0 0.0
    %2912 = vmatprep.subr.mxu0 0.0
    %2913 = vmatpush2.msra.mxu0 0.0
    %2914 = vmatprep.subr.mxu0 0.0
    %2915 = vmatpush2.msra.mxu0 0.0
    %2916 = vmatprep.subr.mxu0 0.0
    %2917 = vmatpush2.msra.mxu0 0.0
    %2918 = vmatprep.subr.mxu0 0.0
    %2919 = vmatpush2.msra.mxu0 0.0
    %2920 = vmatprep.subr.mxu0 0.0
    %2921 = vmatpush2.msra.mxu0 0.0
    %2922 = vmatprep.subr.mxu0 0.0
    %2923 = vmatpush2.msra.mxu0 0.0
    %2924 = vmatprep.subr.mxu0 0.0
    %2925 = vmatpush2.msra.mxu0 0.0
    %2926 = vmatprep.mubr.f32.mxu0 0.0
    %2927 = vmatmul.mubr.f32.gmra.mxu0 %v2703
    %v2928 = vpop.f32.mrf.mxu0
    %v2929 = vadd.f32 0.0, %v2928
    %v2930 = vpop.f32.mrf.mxu0
    %v2931 = vadd.f32 0.0, %v2930
    %2932 = vdwg.mxu0
    %v2933 = vadd.f32 %v2052, %v2858
    %v2934 = vadd.f32 %v2054, %v2860
    %v2935 = vadd.f32 %v2165, %v2929
    %v2936 = vadd.f32 %v2167, %v2931
    %v2937 = vxor.u32 %v2933, 2147483648
    %v2938 = vxor.u32 %v2934, 2147483648
    %v2939 = vxor.u32 %v2935, 2147483648
    %v2940 = vxor.u32 %v2936, 2147483648
    %v2941 = vmul.f32 %v2937, 1.442695
    %v2942 = vpow.pop %v2941
    %v2943 = vmul.f32 %v2938, 1.442695
    %v2944 = vpow.pop %v2943
    %v2945 = vmul.f32 %v2939, 1.442695
    %v2946 = vpow.pop %v2945
    %v2947 = vmul.f32 %v2940, 1.442695
    %v2948 = vpow.pop %v2947
    %v2949 = vadd.f32 %v2942, 1.0
    %v2950 = vadd.f32 %v2944, 1.0
    %v2951 = vadd.f32 %v2946, 1.0
    %v2952 = vadd.f32 %v2948, 1.0
    %v2953 = vrcp.pop %v2949
    %v2954 = vmul.f32 1.0, %v2953
    %v2955 = vrcp.pop %v2950
    %v2956 = vmul.f32 1.0, %v2955
    %v2957 = vrcp.pop %v2951
    %v2958 = vmul.f32 1.0, %v2957
    %v2959 = vrcp.pop %v2952
    %v2960 = vmul.f32 1.0, %v2959
    %v2961 = vmul.f32 %v2960, 2.0
    %v2962 = vsub.f32 %v2961, 1.0
    %v2963 = vmul.f32 %v2956, %v2701
    %v2964 = vmul.f32 %v2954, %v2962
    %v2965 = vadd.f32 %v2963, %v2964
    %v2966 = vtanh.pop %v2965
    %v2967 = vmul.f32 %v2958, %v2966
    %v2968 = vld [vmem:[#allocation8 + $0x100] sm:$0xff]
    %v2969 = vld [vmem:[#allocation8 + $0x108] sm:$0xff]
    %v2970 = vld [vmem:[#allocation8 + $0x110] sm:$0xff]
    %v2971 = vld [vmem:[#allocation8 + $0x118] sm:$0xff]
    %v2972 = vld [vmem:[#allocation8 + $0x120] sm:$0xff]
    %v2973 = vld [vmem:[#allocation8 + $0x128] sm:$0xff]
    %v2974 = vld [vmem:[#allocation8 + $0x130] sm:$0xff]
    %v2975 = vld [vmem:[#allocation8 + $0x138] sm:$0xff]
    %v2976 = vld [vmem:[#allocation8 + $0x140] sm:$0xff]
    %v2977 = vld [vmem:[#allocation8 + $0x148] sm:$0xff]
    %v2978 = vld [vmem:[#allocation8 + $0x150] sm:$0xff]
    %v2979 = vld [vmem:[#allocation8 + $0x158] sm:$0xff]
    %v2980 = vld [vmem:[#allocation8 + $0x160] sm:$0xff]
    %v2981 = vld [vmem:[#allocation8 + $0x168] sm:$0xff]
    %v2982 = vld [vmem:[#allocation8 + $0x170] sm:$0xff]
    %v2983 = vld [vmem:[#allocation8 + $0x178] sm:$0xff]
    %2984 = vmatprep.subr.mxu0 0.0
    %2985 = vmatpush1.msra.mxu0 %v2983
    %2986 = vmatprep.subr.mxu0 0.0
    %2987 = vmatpush1.msra.mxu0 %v2982
    %2988 = vmatprep.subr.mxu0 0.0
    %2989 = vmatpush1.msra.mxu0 %v2981
    %2990 = vmatprep.subr.mxu0 0.0
    %2991 = vmatpush1.msra.mxu0 %v2980
    %2992 = vmatprep.subr.mxu0 0.0
    %2993 = vmatpush1.msra.mxu0 %v2979
    %2994 = vmatprep.subr.mxu0 0.0
    %2995 = vmatpush1.msra.mxu0 %v2978
    %2996 = vmatprep.subr.mxu0 0.0
    %2997 = vmatpush1.msra.mxu0 %v2977
    %2998 = vmatprep.subr.mxu0 0.0
    %2999 = vmatpush1.msra.mxu0 %v2976
    %3000 = vmatprep.subr.mxu0 0.0
    %3001 = vmatpush1.msra.mxu0 %v2975
    %3002 = vmatprep.subr.mxu0 0.0
    %3003 = vmatpush1.msra.mxu0 %v2974
    %3004 = vmatprep.subr.mxu0 0.0
    %3005 = vmatpush1.msra.mxu0 %v2973
    %3006 = vmatprep.subr.mxu0 0.0
    %3007 = vmatpush1.msra.mxu0 %v2972
    %3008 = vmatprep.subr.mxu0 0.0
    %3009 = vmatpush1.msra.mxu0 %v2971
    %3010 = vmatprep.subr.mxu0 0.0
    %3011 = vmatpush1.msra.mxu0 %v2970
    %3012 = vmatprep.subr.mxu0 0.0
    %3013 = vmatpush1.msra.mxu0 %v2969
    %3014 = vmatprep.subr.mxu0 0.0
    %3015 = vmatpush1.msra.mxu0 %v2968
    %3016 = vmatprep.subr.mxu0 0.0
    %3017 = vmatpush2.msra.mxu0 0.0
    %3018 = vmatprep.subr.mxu0 0.0
    %3019 = vmatpush2.msra.mxu0 0.0
    %3020 = vmatprep.subr.mxu0 0.0
    %3021 = vmatpush2.msra.mxu0 0.0
    %3022 = vmatprep.subr.mxu0 0.0
    %3023 = vmatpush2.msra.mxu0 0.0
    %3024 = vmatprep.subr.mxu0 0.0
    %3025 = vmatpush2.msra.mxu0 0.0
    %3026 = vmatprep.subr.mxu0 0.0
    %3027 = vmatpush2.msra.mxu0 0.0
    %3028 = vmatprep.subr.mxu0 0.0
    %3029 = vmatpush2.msra.mxu0 0.0
    %3030 = vmatprep.subr.mxu0 0.0
    %3031 = vmatpush2.msra.mxu0 0.0
    %3032 = vmatprep.subr.mxu0 0.0
    %3033 = vmatpush2.msra.mxu0 0.0
    %3034 = vmatprep.subr.mxu0 0.0
    %3035 = vmatpush2.msra.mxu0 0.0
    %3036 = vmatprep.subr.mxu0 0.0
    %3037 = vmatpush2.msra.mxu0 0.0
    %3038 = vmatprep.subr.mxu0 0.0
    %3039 = vmatpush2.msra.mxu0 0.0
    %3040 = vmatprep.subr.mxu0 0.0
    %3041 = vmatpush2.msra.mxu0 0.0
    %3042 = vmatprep.subr.mxu0 0.0
    %3043 = vmatpush2.msra.mxu0 0.0
    %3044 = vmatprep.subr.mxu0 0.0
    %3045 = vmatpush2.msra.mxu0 0.0
    %3046 = vmatprep.subr.mxu0 0.0
    %3047 = vmatpush2.msra.mxu0 0.0
    %3048 = vmatprep.mubr.f32.mxu0 0.0
    %3049 = vmatmul.mubr.f32.gmra.mxu0 %v2967
    %v3050 = vpop.f32.mrf.mxu0
    %v3051 = vadd.f32 0.0, %v3050
    %v3052 = vpop.f32.mrf.mxu0
    %3053 = vdwg.mxu0
    %v3054 = vadd.f32 %v2790, %v3051
    %3055 = vmatprep.subr.mxu0 %v2260
    %3056 = vmatpush1.msra.mxu0 %v2259
    %3057 = vmatprep.subr.mxu0 %v2256
    %3058 = vmatpush1.msra.mxu0 %v2255
    %3059 = vmatprep.subr.mxu0 %v2252
    %3060 = vmatpush1.msra.mxu0 %v2251
    %3061 = vmatprep.subr.mxu0 %v2248
    %3062 = vmatpush1.msra.mxu0 %v2247
    %3063 = vmatprep.subr.mxu0 %v2244
    %3064 = vmatpush1.msra.mxu0 %v2243
    %3065 = vmatprep.subr.mxu0 %v2240
    %3066 = vmatpush1.msra.mxu0 %v2239
    %3067 = vmatprep.subr.mxu0 %v2236
    %3068 = vmatpush1.msra.mxu0 %v2235
    %3069 = vmatprep.subr.mxu0 %v2232
    %3070 = vmatpush1.msra.mxu0 %v2231
    %3071 = vmatprep.subr.mxu0 %v2228
    %3072 = vmatpush1.msra.mxu0 %v2227
    %3073 = vmatprep.subr.mxu0 %v2224
    %3074 = vmatpush1.msra.mxu0 %v2223
    %3075 = vmatprep.subr.mxu0 %v2220
    %3076 = vmatpush1.msra.mxu0 %v2219
    %3077 = vmatprep.subr.mxu0 %v2216
    %3078 = vmatpush1.msra.mxu0 %v2215
    %3079 = vmatprep.subr.mxu0 %v2212
    %3080 = vmatpush1.msra.mxu0 %v2211
    %3081 = vmatprep.subr.mxu0 %v2208
    %3082 = vmatpush1.msra.mxu0 %v2207
    %3083 = vmatprep.subr.mxu0 %v2204
    %3084 = vmatpush1.msra.mxu0 %v2203
    %3085 = vmatprep.subr.mxu0 %v2200
    %3086 = vmatpush1.msra.mxu0 %v2199
    %3087 = vmatprep.subr.mxu0 0.0
    %3088 = vmatpush2.msra.mxu0 0.0
    %3089 = vmatprep.subr.mxu0 0.0
    %3090 = vmatpush2.msra.mxu0 0.0
    %3091 = vmatprep.subr.mxu0 0.0
    %3092 = vmatpush2.msra.mxu0 0.0
    %3093 = vmatprep.subr.mxu0 0.0
    %3094 = vmatpush2.msra.mxu0 0.0
    %3095 = vmatprep.subr.mxu0 0.0
    %3096 = vmatpush2.msra.mxu0 0.0
    %3097 = vmatprep.subr.mxu0 0.0
    %3098 = vmatpush2.msra.mxu0 0.0
    %3099 = vmatprep.subr.mxu0 0.0
    %3100 = vmatpush2.msra.mxu0 0.0
    %3101 = vmatprep.subr.mxu0 0.0
    %3102 = vmatpush2.msra.mxu0 0.0
    %3103 = vmatprep.subr.mxu0 0.0
    %3104 = vmatpush2.msra.mxu0 0.0
    %3105 = vmatprep.subr.mxu0 0.0
    %3106 = vmatpush2.msra.mxu0 0.0
    %3107 = vmatprep.subr.mxu0 0.0
    %3108 = vmatpush2.msra.mxu0 0.0
    %3109 = vmatprep.subr.mxu0 0.0
    %3110 = vmatpush2.msra.mxu0 0.0
    %3111 = vmatprep.subr.mxu0 0.0
    %3112 = vmatpush2.msra.mxu0 0.0
    %3113 = vmatprep.subr.mxu0 0.0
    %3114 = vmatpush2.msra.mxu0 0.0
    %3115 = vmatprep.subr.mxu0 0.0
    %3116 = vmatpush2.msra.mxu0 0.0
    %3117 = vmatprep.subr.mxu0 0.0
    %3118 = vmatpush2.msra.mxu0 0.0
    %3119 = vmatprep.mubr.f32.mxu0 0.0
    %3120 = vmatmul.mubr.f32.gmra.mxu0 %v2967
    %v3121 = vpop.f32.mrf.mxu0
    %v3122 = vadd.f32 0.0, %v3121
    %v3123 = vpop.f32.mrf.mxu0
    %v3124 = vadd.f32 0.0, %v3123
    %3125 = vdwg.mxu0
    %3126 = vmatprep.subr.mxu0 %v2262
    %3127 = vmatpush1.msra.mxu0 %v2261
    %3128 = vmatprep.subr.mxu0 %v2258
    %3129 = vmatpush1.msra.mxu0 %v2257
    %3130 = vmatprep.subr.mxu0 %v2254
    %3131 = vmatpush1.msra.mxu0 %v2253
    %3132 = vmatprep.subr.mxu0 %v2250
    %3133 = vmatpush1.msra.mxu0 %v2249
    %3134 = vmatprep.subr.mxu0 %v2246
    %3135 = vmatpush1.msra.mxu0 %v2245
    %3136 = vmatprep.subr.mxu0 %v2242
    %3137 = vmatpush1.msra.mxu0 %v2241
    %3138 = vmatprep.subr.mxu0 %v2238
    %3139 = vmatpush1.msra.mxu0 %v2237
    %3140 = vmatprep.subr.mxu0 %v2234
    %3141 = vmatpush1.msra.mxu0 %v2233
    %3142 = vmatprep.subr.mxu0 %v2230
    %3143 = vmatpush1.msra.mxu0 %v2229
    %3144 = vmatprep.subr.mxu0 %v2226
    %3145 = vmatpush1.msra.mxu0 %v2225
    %3146 = vmatprep.subr.mxu0 %v2222
    %3147 = vmatpush1.msra.mxu0 %v2221
    %3148 = vmatprep.subr.mxu0 %v2218
    %3149 = vmatpush1.msra.mxu0 %v2217
    %3150 = vmatprep.subr.mxu0 %v2214
    %3151 = vmatpush1.msra.mxu0 %v2213
    %3152 = vmatprep.subr.mxu0 %v2210
    %3153 = vmatpush1.msra.mxu0 %v2209
    %3154 = vmatprep.subr.mxu0 %v2206
    %3155 = vmatpush1.msra.mxu0 %v2205
    %3156 = vmatprep.subr.mxu0 %v2202
    %3157 = vmatpush1.msra.mxu0 %v2201
    %3158 = vmatprep.subr.mxu0 0.0
    %3159 = vmatpush2.msra.mxu0 0.0
    %3160 = vmatprep.subr.mxu0 0.0
    %3161 = vmatpush2.msra.mxu0 0.0
    %3162 = vmatprep.subr.mxu0 0.0
    %3163 = vmatpush2.msra.mxu0 0.0
    %3164 = vmatprep.subr.mxu0 0.0
    %3165 = vmatpush2.msra.mxu0 0.0
    %3166 = vmatprep.subr.mxu0 0.0
    %3167 = vmatpush2.msra.mxu0 0.0
    %3168 = vmatprep.subr.mxu0 0.0
    %3169 = vmatpush2.msra.mxu0 0.0
    %3170 = vmatprep.subr.mxu0 0.0
    %3171 = vmatpush2.msra.mxu0 0.0
    %3172 = vmatprep.subr.mxu0 0.0
    %3173 = vmatpush2.msra.mxu0 0.0
    %3174 = vmatprep.subr.mxu0 0.0
    %3175 = vmatpush2.msra.mxu0 0.0
    %3176 = vmatprep.subr.mxu0 0.0
    %3177 = vmatpush2.msra.mxu0 0.0
    %3178 = vmatprep.subr.mxu0 0.0
    %3179 = vmatpush2.msra.mxu0 0.0
    %3180 = vmatprep.subr.mxu0 0.0
    %3181 = vmatpush2.msra.mxu0 0.0
    %3182 = vmatprep.subr.mxu0 0.0
    %3183 = vmatpush2.msra.mxu0 0.0
    %3184 = vmatprep.subr.mxu0 0.0
    %3185 = vmatpush2.msra.mxu0 0.0
    %3186 = vmatprep.subr.mxu0 0.0
    %3187 = vmatpush2.msra.mxu0 0.0
    %3188 = vmatprep.subr.mxu0 0.0
    %3189 = vmatpush2.msra.mxu0 0.0
    %3190 = vmatprep.mubr.f32.mxu0 0.0
    %3191 = vmatmul.mubr.f32.gmra.mxu0 %v2967
    %v3192 = vpop.f32.mrf.mxu0
    %v3193 = vadd.f32 0.0, %v3192
    %v3194 = vpop.f32.mrf.mxu0
    %v3195 = vadd.f32 0.0, %v3194
    %3196 = vdwg.mxu0
    %v3197 = vadd.f32 %v2058, %v3122
    %v3198 = vadd.f32 %v2060, %v3124
    %v3199 = vadd.f32 %v2171, %v3193
    %v3200 = vadd.f32 %v2173, %v3195
    %v3201 = vxor.u32 %v3197, 2147483648
    %v3202 = vxor.u32 %v3198, 2147483648
    %v3203 = vxor.u32 %v3199, 2147483648
    %v3204 = vxor.u32 %v3200, 2147483648
    %v3205 = vmul.f32 %v3201, 1.442695
    %v3206 = vpow.pop %v3205
    %v3207 = vmul.f32 %v3202, 1.442695
    %v3208 = vpow.pop %v3207
    %v3209 = vmul.f32 %v3203, 1.442695
    %v3210 = vpow.pop %v3209
    %v3211 = vmul.f32 %v3204, 1.442695
    %v3212 = vpow.pop %v3211
    %v3213 = vadd.f32 %v3206, 1.0
    %v3214 = vadd.f32 %v3208, 1.0
    %v3215 = vadd.f32 %v3210, 1.0
    %v3216 = vadd.f32 %v3212, 1.0
    %v3217 = vrcp.pop %v3213
    %v3218 = vmul.f32 1.0, %v3217
    %v3219 = vrcp.pop %v3214
    %v3220 = vmul.f32 1.0, %v3219
    %v3221 = vrcp.pop %v3215
    %v3222 = vmul.f32 1.0, %v3221
    %v3223 = vrcp.pop %v3216
    %v3224 = vmul.f32 1.0, %v3223
    %v3225 = vmul.f32 %v3224, 2.0
    %v3226 = vsub.f32 %v3225, 1.0
    %v3227 = vmul.f32 %v3220, %v2965
    %v3228 = vmul.f32 %v3218, %v3226
    %v3229 = vadd.f32 %v3227, %v3228
    %v3230 = vtanh.pop %v3229
    %v3231 = vmul.f32 %v3222, %v3230
    %v3232 = vld [vmem:[#allocation8 + $0x180] sm:$0xff]
    %v3233 = vld [vmem:[#allocation8 + $0x188] sm:$0xff]
    %v3234 = vld [vmem:[#allocation8 + $0x190] sm:$0xff]
    %v3235 = vld [vmem:[#allocation8 + $0x198] sm:$0xff]
    %v3236 = vld [vmem:[#allocation8 + $0x1a0] sm:$0xff]
    %v3237 = vld [vmem:[#allocation8 + $0x1a8] sm:$0xff]
    %v3238 = vld [vmem:[#allocation8 + $0x1b0] sm:$0xff]
    %v3239 = vld [vmem:[#allocation8 + $0x1b8] sm:$0xff]
    %v3240 = vld [vmem:[#allocation8 + $0x1c0] sm:$0xff]
    %v3241 = vld [vmem:[#allocation8 + $0x1c8] sm:$0xff]
    %v3242 = vld [vmem:[#allocation8 + $0x1d0] sm:$0xff]
    %v3243 = vld [vmem:[#allocation8 + $0x1d8] sm:$0xff]
    %v3244 = vld [vmem:[#allocation8 + $0x1e0] sm:$0xff]
    %v3245 = vld [vmem:[#allocation8 + $0x1e8] sm:$0xff]
    %v3246 = vld [vmem:[#allocation8 + $0x1f0] sm:$0xff]
    %v3247 = vld [vmem:[#allocation8 + $0x1f8] sm:$0xff]
    %3248 = vmatprep.subr.mxu0 0.0
    %3249 = vmatpush1.msra.mxu0 %v3247
    %3250 = vmatprep.subr.mxu0 0.0
    %3251 = vmatpush1.msra.mxu0 %v3246
    %3252 = vmatprep.subr.mxu0 0.0
    %3253 = vmatpush1.msra.mxu0 %v3245
    %3254 = vmatprep.subr.mxu0 0.0
    %3255 = vmatpush1.msra.mxu0 %v3244
    %3256 = vmatprep.subr.mxu0 0.0
    %3257 = vmatpush1.msra.mxu0 %v3243
    %3258 = vmatprep.subr.mxu0 0.0
    %3259 = vmatpush1.msra.mxu0 %v3242
    %3260 = vmatprep.subr.mxu0 0.0
    %3261 = vmatpush1.msra.mxu0 %v3241
    %3262 = vmatprep.subr.mxu0 0.0
    %3263 = vmatpush1.msra.mxu0 %v3240
    %3264 = vmatprep.subr.mxu0 0.0
    %3265 = vmatpush1.msra.mxu0 %v3239
    %3266 = vmatprep.subr.mxu0 0.0
    %3267 = vmatpush1.msra.mxu0 %v3238
    %3268 = vmatprep.subr.mxu0 0.0
    %3269 = vmatpush1.msra.mxu0 %v3237
    %3270 = vmatprep.subr.mxu0 0.0
    %3271 = vmatpush1.msra.mxu0 %v3236
    %3272 = vmatprep.subr.mxu0 0.0
    %3273 = vmatpush1.msra.mxu0 %v3235
    %3274 = vmatprep.subr.mxu0 0.0
    %3275 = vmatpush1.msra.mxu0 %v3234
    %3276 = vmatprep.subr.mxu0 0.0
    %3277 = vmatpush1.msra.mxu0 %v3233
    %3278 = vmatprep.subr.mxu0 0.0
    %3279 = vmatpush1.msra.mxu0 %v3232
    %3280 = vmatprep.subr.mxu0 0.0
    %3281 = vmatpush2.msra.mxu0 0.0
    %3282 = vmatprep.subr.mxu0 0.0
    %3283 = vmatpush2.msra.mxu0 0.0
    %3284 = vmatprep.subr.mxu0 0.0
    %3285 = vmatpush2.msra.mxu0 0.0
    %3286 = vmatprep.subr.mxu0 0.0
    %3287 = vmatpush2.msra.mxu0 0.0
    %3288 = vmatprep.subr.mxu0 0.0
    %3289 = vmatpush2.msra.mxu0 0.0
    %3290 = vmatprep.subr.mxu0 0.0
    %3291 = vmatpush2.msra.mxu0 0.0
    %3292 = vmatprep.subr.mxu0 0.0
    %3293 = vmatpush2.msra.mxu0 0.0
    %3294 = vmatprep.subr.mxu0 0.0
    %3295 = vmatpush2.msra.mxu0 0.0
    %3296 = vmatprep.subr.mxu0 0.0
    %3297 = vmatpush2.msra.mxu0 0.0
    %3298 = vmatprep.subr.mxu0 0.0
    %3299 = vmatpush2.msra.mxu0 0.0
    %3300 = vmatprep.subr.mxu0 0.0
    %3301 = vmatpush2.msra.mxu0 0.0
    %3302 = vmatprep.subr.mxu0 0.0
    %3303 = vmatpush2.msra.mxu0 0.0
    %3304 = vmatprep.subr.mxu0 0.0
    %3305 = vmatpush2.msra.mxu0 0.0
    %3306 = vmatprep.subr.mxu0 0.0
    %3307 = vmatpush2.msra.mxu0 0.0
    %3308 = vmatprep.subr.mxu0 0.0
    %3309 = vmatpush2.msra.mxu0 0.0
    %3310 = vmatprep.subr.mxu0 0.0
    %3311 = vmatpush2.msra.mxu0 0.0
    %3312 = vmatprep.mubr.f32.mxu0 0.0
    %3313 = vmatmul.mubr.f32.gmra.mxu0 %v3231
    %v3314 = vpop.f32.mrf.mxu0
    %v3315 = vadd.f32 0.0, %v3314
    %v3316 = vpop.f32.mrf.mxu0
    %3317 = vdwg.mxu0
    %v3318 = vadd.f32 %v3054, %v3315
    %3319 = vmatprep.subr.mxu0 %v2260
    %3320 = vmatpush1.msra.mxu0 %v2259
    %3321 = vmatprep.subr.mxu0 %v2256
    %3322 = vmatpush1.msra.mxu0 %v2255
    %3323 = vmatprep.subr.mxu0 %v2252
    %3324 = vmatpush1.msra.mxu0 %v2251
    %3325 = vmatprep.subr.mxu0 %v2248
    %3326 = vmatpush1.msra.mxu0 %v2247
    %3327 = vmatprep.subr.mxu0 %v2244
    %3328 = vmatpush1.msra.mxu0 %v2243
    %3329 = vmatprep.subr.mxu0 %v2240
    %3330 = vmatpush1.msra.mxu0 %v2239
    %3331 = vmatprep.subr.mxu0 %v2236
    %3332 = vmatpush1.msra.mxu0 %v2235
    %3333 = vmatprep.subr.mxu0 %v2232
    %3334 = vmatpush1.msra.mxu0 %v2231
    %3335 = vmatprep.subr.mxu0 %v2228
    %3336 = vmatpush1.msra.mxu0 %v2227
    %3337 = vmatprep.subr.mxu0 %v2224
    %3338 = vmatpush1.msra.mxu0 %v2223
    %3339 = vmatprep.subr.mxu0 %v2220
    %3340 = vmatpush1.msra.mxu0 %v2219
    %3341 = vmatprep.subr.mxu0 %v2216
    %3342 = vmatpush1.msra.mxu0 %v2215
    %3343 = vmatprep.subr.mxu0 %v2212
    %3344 = vmatpush1.msra.mxu0 %v2211
    %3345 = vmatprep.subr.mxu0 %v2208
    %3346 = vmatpush1.msra.mxu0 %v2207
    %3347 = vmatprep.subr.mxu0 %v2204
    %3348 = vmatpush1.msra.mxu0 %v2203
    %3349 = vmatprep.subr.mxu0 %v2200
    %3350 = vmatpush1.msra.mxu0 %v2199
    %3351 = vmatprep.subr.mxu0 0.0
    %3352 = vmatpush2.msra.mxu0 0.0
    %3353 = vmatprep.subr.mxu0 0.0
    %3354 = vmatpush2.msra.mxu0 0.0
    %3355 = vmatprep.subr.mxu0 0.0
    %3356 = vmatpush2.msra.mxu0 0.0
    %3357 = vmatprep.subr.mxu0 0.0
    %3358 = vmatpush2.msra.mxu0 0.0
    %3359 = vmatprep.subr.mxu0 0.0
    %3360 = vmatpush2.msra.mxu0 0.0
    %3361 = vmatprep.subr.mxu0 0.0
    %3362 = vmatpush2.msra.mxu0 0.0
    %3363 = vmatprep.subr.mxu0 0.0
    %3364 = vmatpush2.msra.mxu0 0.0
    %3365 = vmatprep.subr.mxu0 0.0
    %3366 = vmatpush2.msra.mxu0 0.0
    %3367 = vmatprep.subr.mxu0 0.0
    %3368 = vmatpush2.msra.mxu0 0.0
    %3369 = vmatprep.subr.mxu0 0.0
    %3370 = vmatpush2.msra.mxu0 0.0
    %3371 = vmatprep.subr.mxu0 0.0
    %3372 = vmatpush2.msra.mxu0 0.0
    %3373 = vmatprep.subr.mxu0 0.0
    %3374 = vmatpush2.msra.mxu0 0.0
    %3375 = vmatprep.subr.mxu0 0.0
    %3376 = vmatpush2.msra.mxu0 0.0
    %3377 = vmatprep.subr.mxu0 0.0
    %3378 = vmatpush2.msra.mxu0 0.0
    %3379 = vmatprep.subr.mxu0 0.0
    %3380 = vmatpush2.msra.mxu0 0.0
    %3381 = vmatprep.subr.mxu0 0.0
    %3382 = vmatpush2.msra.mxu0 0.0
    %3383 = vmatprep.mubr.f32.mxu0 0.0
    %3384 = vmatmul.mubr.f32.gmra.mxu0 %v3231
    %v3385 = vpop.f32.mrf.mxu0
    %v3386 = vadd.f32 0.0, %v3385
    %v3387 = vpop.f32.mrf.mxu0
    %v3388 = vadd.f32 0.0, %v3387
    %3389 = vdwg.mxu0
    %3390 = vmatprep.subr.mxu0 %v2262
    %3391 = vmatpush1.msra.mxu0 %v2261
    %3392 = vmatprep.subr.mxu0 %v2258
    %3393 = vmatpush1.msra.mxu0 %v2257
    %3394 = vmatprep.subr.mxu0 %v2254
    %3395 = vmatpush1.msra.mxu0 %v2253
    %3396 = vmatprep.subr.mxu0 %v2250
    %3397 = vmatpush1.msra.mxu0 %v2249
    %3398 = vmatprep.subr.mxu0 %v2246
    %3399 = vmatpush1.msra.mxu0 %v2245
    %3400 = vmatprep.subr.mxu0 %v2242
    %3401 = vmatpush1.msra.mxu0 %v2241
    %3402 = vmatprep.subr.mxu0 %v2238
    %3403 = vmatpush1.msra.mxu0 %v2237
    %3404 = vmatprep.subr.mxu0 %v2234
    %3405 = vmatpush1.msra.mxu0 %v2233
    %3406 = vmatprep.subr.mxu0 %v2230
    %3407 = vmatpush1.msra.mxu0 %v2229
    %3408 = vmatprep.subr.mxu0 %v2226
    %3409 = vmatpush1.msra.mxu0 %v2225
    %3410 = vmatprep.subr.mxu0 %v2222
    %3411 = vmatpush1.msra.mxu0 %v2221
    %3412 = vmatprep.subr.mxu0 %v2218
    %3413 = vmatpush1.msra.mxu0 %v2217
    %3414 = vmatprep.subr.mxu0 %v2214
    %3415 = vmatpush1.msra.mxu0 %v2213
    %3416 = vmatprep.subr.mxu0 %v2210
    %3417 = vmatpush1.msra.mxu0 %v2209
    %3418 = vmatprep.subr.mxu0 %v2206
    %3419 = vmatpush1.msra.mxu0 %v2205
    %3420 = vmatprep.subr.mxu0 %v2202
    %3421 = vmatpush1.msra.mxu0 %v2201
    %3422 = vmatprep.subr.mxu0 0.0
    %3423 = vmatpush2.msra.mxu0 0.0
    %3424 = vmatprep.subr.mxu0 0.0
    %3425 = vmatpush2.msra.mxu0 0.0
    %3426 = vmatprep.subr.mxu0 0.0
    %3427 = vmatpush2.msra.mxu0 0.0
    %3428 = vmatprep.subr.mxu0 0.0
    %3429 = vmatpush2.msra.mxu0 0.0
    %3430 = vmatprep.subr.mxu0 0.0
    %3431 = vmatpush2.msra.mxu0 0.0
    %3432 = vmatprep.subr.mxu0 0.0
    %3433 = vmatpush2.msra.mxu0 0.0
    %3434 = vmatprep.subr.mxu0 0.0
    %3435 = vmatpush2.msra.mxu0 0.0
    %3436 = vmatprep.subr.mxu0 0.0
    %3437 = vmatpush2.msra.mxu0 0.0
    %3438 = vmatprep.subr.mxu0 0.0
    %3439 = vmatpush2.msra.mxu0 0.0
    %3440 = vmatprep.subr.mxu0 0.0
    %3441 = vmatpush2.msra.mxu0 0.0
    %3442 = vmatprep.subr.mxu0 0.0
    %3443 = vmatpush2.msra.mxu0 0.0
    %3444 = vmatprep.subr.mxu0 0.0
    %3445 = vmatpush2.msra.mxu0 0.0
    %3446 = vmatprep.subr.mxu0 0.0
    %3447 = vmatpush2.msra.mxu0 0.0
    %3448 = vmatprep.subr.mxu0 0.0
    %3449 = vmatpush2.msra.mxu0 0.0
    %3450 = vmatprep.subr.mxu0 0.0
    %3451 = vmatpush2.msra.mxu0 0.0
    %3452 = vmatprep.subr.mxu0 0.0
    %3453 = vmatpush2.msra.mxu0 0.0
    %3454 = vmatprep.mubr.f32.mxu0 0.0
    %3455 = vmatmul.mubr.f32.gmra.mxu0 %v3231
    %v3456 = vpop.f32.mrf.mxu0
    %v3457 = vadd.f32 0.0, %v3456
    %v3458 = vpop.f32.mrf.mxu0
    %v3459 = vadd.f32 0.0, %v3458
    %3460 = vdwg.mxu0
    %v3461 = vadd.f32 %v2064, %v3386
    %v3462 = vadd.f32 %v2066, %v3388
    %v3463 = vadd.f32 %v2177, %v3457
    %v3464 = vadd.f32 %v2179, %v3459
    %v3465 = vxor.u32 %v3461, 2147483648
    %v3466 = vxor.u32 %v3462, 2147483648
    %v3467 = vxor.u32 %v3463, 2147483648
    %v3468 = vxor.u32 %v3464, 2147483648
    %v3469 = vmul.f32 %v3465, 1.442695
    %v3470 = vpow.pop %v3469
    %v3471 = vmul.f32 %v3466, 1.442695
    %v3472 = vpow.pop %v3471
    %v3473 = vmul.f32 %v3467, 1.442695
    %v3474 = vpow.pop %v3473
    %v3475 = vmul.f32 %v3468, 1.442695
    %v3476 = vpow.pop %v3475
    %v3477 = vadd.f32 %v3470, 1.0
    %v3478 = vadd.f32 %v3472, 1.0
    %v3479 = vadd.f32 %v3474, 1.0
    %v3480 = vadd.f32 %v3476, 1.0
    %v3481 = vrcp.pop %v3477
    %v3482 = vmul.f32 1.0, %v3481
    %v3483 = vrcp.pop %v3478
    %v3484 = vmul.f32 1.0, %v3483
    %v3485 = vrcp.pop %v3479
    %v3486 = vmul.f32 1.0, %v3485
    %v3487 = vrcp.pop %v3480
    %v3488 = vmul.f32 1.0, %v3487
    %v3489 = vmul.f32 %v3488, 2.0
    %v3490 = vsub.f32 %v3489, 1.0
    %v3491 = vmul.f32 %v3484, %v3229
    %v3492 = vmul.f32 %v3482, %v3490
    %v3493 = vadd.f32 %v3491, %v3492
    %v3494 = vtanh.pop %v3493
    %v3495 = vmul.f32 %v3486, %v3494
    %v3496 = vld [vmem:[#allocation8 + $0x200] sm:$0xff]
    %v3497 = vld [vmem:[#allocation8 + $0x208] sm:$0xff]
    %v3498 = vld [vmem:[#allocation8 + $0x210] sm:$0xff]
    %v3499 = vld [vmem:[#allocation8 + $0x218] sm:$0xff]
    %v3500 = vld [vmem:[#allocation8 + $0x220] sm:$0xff]
    %v3501 = vld [vmem:[#allocation8 + $0x228] sm:$0xff]
    %v3502 = vld [vmem:[#allocation8 + $0x230] sm:$0xff]
    %v3503 = vld [vmem:[#allocation8 + $0x238] sm:$0xff]
    %v3504 = vld [vmem:[#allocation8 + $0x240] sm:$0xff]
    %v3505 = vld [vmem:[#allocation8 + $0x248] sm:$0xff]
    %v3506 = vld [vmem:[#allocation8 + $0x250] sm:$0xff]
    %v3507 = vld [vmem:[#allocation8 + $0x258] sm:$0xff]
    %v3508 = vld [vmem:[#allocation8 + $0x260] sm:$0xff]
    %v3509 = vld [vmem:[#allocation8 + $0x268] sm:$0xff]
    %v3510 = vld [vmem:[#allocation8 + $0x270] sm:$0xff]
    %v3511 = vld [vmem:[#allocation8 + $0x278] sm:$0xff]
    %3512 = vmatprep.subr.mxu0 0.0
    %3513 = vmatpush1.msra.mxu0 %v3511
    %3514 = vmatprep.subr.mxu0 0.0
    %3515 = vmatpush1.msra.mxu0 %v3510
    %3516 = vmatprep.subr.mxu0 0.0
    %3517 = vmatpush1.msra.mxu0 %v3509
    %3518 = vmatprep.subr.mxu0 0.0
    %3519 = vmatpush1.msra.mxu0 %v3508
    %3520 = vmatprep.subr.mxu0 0.0
    %3521 = vmatpush1.msra.mxu0 %v3507
    %3522 = vmatprep.subr.mxu0 0.0
    %3523 = vmatpush1.msra.mxu0 %v3506
    %3524 = vmatprep.subr.mxu0 0.0
    %3525 = vmatpush1.msra.mxu0 %v3505
    %3526 = vmatprep.subr.mxu0 0.0
    %3527 = vmatpush1.msra.mxu0 %v3504
    %3528 = vmatprep.subr.mxu0 0.0
    %3529 = vmatpush1.msra.mxu0 %v3503
    %3530 = vmatprep.subr.mxu0 0.0
    %3531 = vmatpush1.msra.mxu0 %v3502
    %3532 = vmatprep.subr.mxu0 0.0
    %3533 = vmatpush1.msra.mxu0 %v3501
    %3534 = vmatprep.subr.mxu0 0.0
    %3535 = vmatpush1.msra.mxu0 %v3500
    %3536 = vmatprep.subr.mxu0 0.0
    %3537 = vmatpush1.msra.mxu0 %v3499
    %3538 = vmatprep.subr.mxu0 0.0
    %3539 = vmatpush1.msra.mxu0 %v3498
    %3540 = vmatprep.subr.mxu0 0.0
    %3541 = vmatpush1.msra.mxu0 %v3497
    %3542 = vmatprep.subr.mxu0 0.0
    %3543 = vmatpush1.msra.mxu0 %v3496
    %3544 = vmatprep.subr.mxu0 0.0
    %3545 = vmatpush2.msra.mxu0 0.0
    %3546 = vmatprep.subr.mxu0 0.0
    %3547 = vmatpush2.msra.mxu0 0.0
    %3548 = vmatprep.subr.mxu0 0.0
    %3549 = vmatpush2.msra.mxu0 0.0
    %3550 = vmatprep.subr.mxu0 0.0
    %3551 = vmatpush2.msra.mxu0 0.0
    %3552 = vmatprep.subr.mxu0 0.0
    %3553 = vmatpush2.msra.mxu0 0.0
    %3554 = vmatprep.subr.mxu0 0.0
    %3555 = vmatpush2.msra.mxu0 0.0
    %3556 = vmatprep.subr.mxu0 0.0
    %3557 = vmatpush2.msra.mxu0 0.0
    %3558 = vmatprep.subr.mxu0 0.0
    %3559 = vmatpush2.msra.mxu0 0.0
    %3560 = vmatprep.subr.mxu0 0.0
    %3561 = vmatpush2.msra.mxu0 0.0
    %3562 = vmatprep.subr.mxu0 0.0
    %3563 = vmatpush2.msra.mxu0 0.0
    %3564 = vmatprep.subr.mxu0 0.0
    %3565 = vmatpush2.msra.mxu0 0.0
    %3566 = vmatprep.subr.mxu0 0.0
    %3567 = vmatpush2.msra.mxu0 0.0
    %3568 = vmatprep.subr.mxu0 0.0
    %3569 = vmatpush2.msra.mxu0 0.0
    %3570 = vmatprep.subr.mxu0 0.0
    %3571 = vmatpush2.msra.mxu0 0.0
    %3572 = vmatprep.subr.mxu0 0.0
    %3573 = vmatpush2.msra.mxu0 0.0
    %3574 = vmatprep.subr.mxu0 0.0
    %3575 = vmatpush2.msra.mxu0 0.0
    %3576 = vmatprep.mubr.f32.mxu0 0.0
    %3577 = vmatmul.mubr.f32.gmra.mxu0 %v3495
    %v3578 = vpop.f32.mrf.mxu0
    %v3579 = vadd.f32 0.0, %v3578
    %v3580 = vpop.f32.mrf.mxu0
    %3581 = vdwg.mxu0
    %v3582 = vadd.f32 %v3318, %v3579
    %3583 = vmatprep.subr.mxu0 %v2260
    %3584 = vmatpush1.msra.mxu0 %v2259
    %3585 = vmatprep.subr.mxu0 %v2256
    %3586 = vmatpush1.msra.mxu0 %v2255
    %3587 = vmatprep.subr.mxu0 %v2252
    %3588 = vmatpush1.msra.mxu0 %v2251
    %3589 = vmatprep.subr.mxu0 %v2248
    %3590 = vmatpush1.msra.mxu0 %v2247
    %3591 = vmatprep.subr.mxu0 %v2244
    %3592 = vmatpush1.msra.mxu0 %v2243
    %3593 = vmatprep.subr.mxu0 %v2240
    %3594 = vmatpush1.msra.mxu0 %v2239
    %3595 = vmatprep.subr.mxu0 %v2236
    %3596 = vmatpush1.msra.mxu0 %v2235
    %3597 = vmatprep.subr.mxu0 %v2232
    %3598 = vmatpush1.msra.mxu0 %v2231
    %3599 = vmatprep.subr.mxu0 %v2228
    %3600 = vmatpush1.msra.mxu0 %v2227
    %3601 = vmatprep.subr.mxu0 %v2224
    %3602 = vmatpush1.msra.mxu0 %v2223
    %3603 = vmatprep.subr.mxu0 %v2220
    %3604 = vmatpush1.msra.mxu0 %v2219
    %3605 = vmatprep.subr.mxu0 %v2216
    %3606 = vmatpush1.msra.mxu0 %v2215
    %3607 = vmatprep.subr.mxu0 %v2212
    %3608 = vmatpush1.msra.mxu0 %v2211
    %3609 = vmatprep.subr.mxu0 %v2208
    %3610 = vmatpush1.msra.mxu0 %v2207
    %3611 = vmatprep.subr.mxu0 %v2204
    %3612 = vmatpush1.msra.mxu0 %v2203
    %3613 = vmatprep.subr.mxu0 %v2200
    %3614 = vmatpush1.msra.mxu0 %v2199
    %3615 = vmatprep.subr.mxu0 0.0
    %3616 = vmatpush2.msra.mxu0 0.0
    %3617 = vmatprep.subr.mxu0 0.0
    %3618 = vmatpush2.msra.mxu0 0.0
    %3619 = vmatprep.subr.mxu0 0.0
    %3620 = vmatpush2.msra.mxu0 0.0
    %3621 = vmatprep.subr.mxu0 0.0
    %3622 = vmatpush2.msra.mxu0 0.0
    %3623 = vmatprep.subr.mxu0 0.0
    %3624 = vmatpush2.msra.mxu0 0.0
    %3625 = vmatprep.subr.mxu0 0.0
    %3626 = vmatpush2.msra.mxu0 0.0
    %3627 = vmatprep.subr.mxu0 0.0
    %3628 = vmatpush2.msra.mxu0 0.0
    %3629 = vmatprep.subr.mxu0 0.0
    %3630 = vmatpush2.msra.mxu0 0.0
    %3631 = vmatprep.subr.mxu0 0.0
    %3632 = vmatpush2.msra.mxu0 0.0
    %3633 = vmatprep.subr.mxu0 0.0
    %3634 = vmatpush2.msra.mxu0 0.0
    %3635 = vmatprep.subr.mxu0 0.0
    %3636 = vmatpush2.msra.mxu0 0.0
    %3637 = vmatprep.subr.mxu0 0.0
    %3638 = vmatpush2.msra.mxu0 0.0
    %3639 = vmatprep.subr.mxu0 0.0
    %3640 = vmatpush2.msra.mxu0 0.0
    %3641 = vmatprep.subr.mxu0 0.0
    %3642 = vmatpush2.msra.mxu0 0.0
    %3643 = vmatprep.subr.mxu0 0.0
    %3644 = vmatpush2.msra.mxu0 0.0
    %3645 = vmatprep.subr.mxu0 0.0
    %3646 = vmatpush2.msra.mxu0 0.0
    %3647 = vmatprep.mubr.f32.mxu0 0.0
    %3648 = vmatmul.mubr.f32.gmra.mxu0 %v3495
    %v3649 = vpop.f32.mrf.mxu0
    %v3650 = vadd.f32 0.0, %v3649
    %v3651 = vpop.f32.mrf.mxu0
    %v3652 = vadd.f32 0.0, %v3651
    %3653 = vdwg.mxu0
    %3654 = vmatprep.subr.mxu0 %v2262
    %3655 = vmatpush1.msra.mxu0 %v2261
    %3656 = vmatprep.subr.mxu0 %v2258
    %3657 = vmatpush1.msra.mxu0 %v2257
    %3658 = vmatprep.subr.mxu0 %v2254
    %3659 = vmatpush1.msra.mxu0 %v2253
    %3660 = vmatprep.subr.mxu0 %v2250
    %3661 = vmatpush1.msra.mxu0 %v2249
    %3662 = vmatprep.subr.mxu0 %v2246
    %3663 = vmatpush1.msra.mxu0 %v2245
    %3664 = vmatprep.subr.mxu0 %v2242
    %3665 = vmatpush1.msra.mxu0 %v2241
    %3666 = vmatprep.subr.mxu0 %v2238
    %3667 = vmatpush1.msra.mxu0 %v2237
    %3668 = vmatprep.subr.mxu0 %v2234
    %3669 = vmatpush1.msra.mxu0 %v2233
    %3670 = vmatprep.subr.mxu0 %v2230
    %3671 = vmatpush1.msra.mxu0 %v2229
    %3672 = vmatprep.subr.mxu0 %v2226
    %3673 = vmatpush1.msra.mxu0 %v2225
    %3674 = vmatprep.subr.mxu0 %v2222
    %3675 = vmatpush1.msra.mxu0 %v2221
    %3676 = vmatprep.subr.mxu0 %v2218
    %3677 = vmatpush1.msra.mxu0 %v2217
    %3678 = vmatprep.subr.mxu0 %v2214
    %3679 = vmatpush1.msra.mxu0 %v2213
    %3680 = vmatprep.subr.mxu0 %v2210
    %3681 = vmatpush1.msra.mxu0 %v2209
    %3682 = vmatprep.subr.mxu0 %v2206
    %3683 = vmatpush1.msra.mxu0 %v2205
    %3684 = vmatprep.subr.mxu0 %v2202
    %3685 = vmatpush1.msra.mxu0 %v2201
    %3686 = vmatprep.subr.mxu0 0.0
    %3687 = vmatpush2.msra.mxu0 0.0
    %3688 = vmatprep.subr.mxu0 0.0
    %3689 = vmatpush2.msra.mxu0 0.0
    %3690 = vmatprep.subr.mxu0 0.0
    %3691 = vmatpush2.msra.mxu0 0.0
    %3692 = vmatprep.subr.mxu0 0.0
    %3693 = vmatpush2.msra.mxu0 0.0
    %3694 = vmatprep.subr.mxu0 0.0
    %3695 = vmatpush2.msra.mxu0 0.0
    %3696 = vmatprep.subr.mxu0 0.0
    %3697 = vmatpush2.msra.mxu0 0.0
    %3698 = vmatprep.subr.mxu0 0.0
    %3699 = vmatpush2.msra.mxu0 0.0
    %3700 = vmatprep.subr.mxu0 0.0
    %3701 = vmatpush2.msra.mxu0 0.0
    %3702 = vmatprep.subr.mxu0 0.0
    %3703 = vmatpush2.msra.mxu0 0.0
    %3704 = vmatprep.subr.mxu0 0.0
    %3705 = vmatpush2.msra.mxu0 0.0
    %3706 = vmatprep.subr.mxu0 0.0
    %3707 = vmatpush2.msra.mxu0 0.0
    %3708 = vmatprep.subr.mxu0 0.0
    %3709 = vmatpush2.msra.mxu0 0.0
    %3710 = vmatprep.subr.mxu0 0.0
    %3711 = vmatpush2.msra.mxu0 0.0
    %3712 = vmatprep.subr.mxu0 0.0
    %3713 = vmatpush2.msra.mxu0 0.0
    %3714 = vmatprep.subr.mxu0 0.0
    %3715 = vmatpush2.msra.mxu0 0.0
    %3716 = vmatprep.subr.mxu0 0.0
    %3717 = vmatpush2.msra.mxu0 0.0
    %3718 = vmatprep.mubr.f32.mxu0 0.0
    %3719 = vmatmul.mubr.f32.gmra.mxu0 %v3495
    %v3720 = vpop.f32.mrf.mxu0
    %v3721 = vadd.f32 0.0, %v3720
    %v3722 = vpop.f32.mrf.mxu0
    %v3723 = vadd.f32 0.0, %v3722
    %3724 = vdwg.mxu0
    %v3725 = vadd.f32 %v2070, %v3650
    %v3726 = vadd.f32 %v2072, %v3652
    %v3727 = vadd.f32 %v2183, %v3721
    %v3728 = vadd.f32 %v2185, %v3723
    %v3729 = vxor.u32 %v3725, 2147483648
    %v3730 = vxor.u32 %v3726, 2147483648
    %v3731 = vxor.u32 %v3727, 2147483648
    %v3732 = vxor.u32 %v3728, 2147483648
    %v3733 = vmul.f32 %v3729, 1.442695
    %v3734 = vpow.pop %v3733
    %v3735 = vmul.f32 %v3730, 1.442695
    %v3736 = vpow.pop %v3735
    %v3737 = vmul.f32 %v3731, 1.442695
    %v3738 = vpow.pop %v3737
    %v3739 = vmul.f32 %v3732, 1.442695
    %v3740 = vpow.pop %v3739
    %v3741 = vadd.f32 %v3734, 1.0
    %v3742 = vadd.f32 %v3736, 1.0
    %v3743 = vadd.f32 %v3738, 1.0
    %v3744 = vadd.f32 %v3740, 1.0
    %v3745 = vrcp.pop %v3741
    %v3746 = vmul.f32 1.0, %v3745
    %v3747 = vrcp.pop %v3742
    %v3748 = vmul.f32 1.0, %v3747
    %v3749 = vrcp.pop %v3743
    %v3750 = vmul.f32 1.0, %v3749
    %v3751 = vrcp.pop %v3744
    %v3752 = vmul.f32 1.0, %v3751
    %v3753 = vmul.f32 %v3752, 2.0
    %v3754 = vsub.f32 %v3753, 1.0
    %v3755 = vmul.f32 %v3748, %v3493
    %v3756 = vmul.f32 %v3746, %v3754
    %v3757 = vadd.f32 %v3755, %v3756
    %v3758 = vtanh.pop %v3757
    %v3759 = vmul.f32 %v3750, %v3758
    %v3760 = vld [vmem:[#allocation8 + $0x280] sm:$0xff]
    %v3761 = vld [vmem:[#allocation8 + $0x288] sm:$0xff]
    %v3762 = vld [vmem:[#allocation8 + $0x290] sm:$0xff]
    %v3763 = vld [vmem:[#allocation8 + $0x298] sm:$0xff]
    %v3764 = vld [vmem:[#allocation8 + $0x2a0] sm:$0xff]
    %v3765 = vld [vmem:[#allocation8 + $0x2a8] sm:$0xff]
    %v3766 = vld [vmem:[#allocation8 + $0x2b0] sm:$0xff]
    %v3767 = vld [vmem:[#allocation8 + $0x2b8] sm:$0xff]
    %v3768 = vld [vmem:[#allocation8 + $0x2c0] sm:$0xff]
    %v3769 = vld [vmem:[#allocation8 + $0x2c8] sm:$0xff]
    %v3770 = vld [vmem:[#allocation8 + $0x2d0] sm:$0xff]
    %v3771 = vld [vmem:[#allocation8 + $0x2d8] sm:$0xff]
    %v3772 = vld [vmem:[#allocation8 + $0x2e0] sm:$0xff]
    %v3773 = vld [vmem:[#allocation8 + $0x2e8] sm:$0xff]
    %v3774 = vld [vmem:[#allocation8 + $0x2f0] sm:$0xff]
    %v3775 = vld [vmem:[#allocation8 + $0x2f8] sm:$0xff]
    %3776 = vmatprep.subr.mxu0 0.0
    %3777 = vmatpush1.msra.mxu0 %v3775
    %3778 = vmatprep.subr.mxu0 0.0
    %3779 = vmatpush1.msra.mxu0 %v3774
    %3780 = vmatprep.subr.mxu0 0.0
    %3781 = vmatpush1.msra.mxu0 %v3773
    %3782 = vmatprep.subr.mxu0 0.0
    %3783 = vmatpush1.msra.mxu0 %v3772
    %3784 = vmatprep.subr.mxu0 0.0
    %3785 = vmatpush1.msra.mxu0 %v3771
    %3786 = vmatprep.subr.mxu0 0.0
    %3787 = vmatpush1.msra.mxu0 %v3770
    %3788 = vmatprep.subr.mxu0 0.0
    %3789 = vmatpush1.msra.mxu0 %v3769
    %3790 = vmatprep.subr.mxu0 0.0
    %3791 = vmatpush1.msra.mxu0 %v3768
    %3792 = vmatprep.subr.mxu0 0.0
    %3793 = vmatpush1.msra.mxu0 %v3767
    %3794 = vmatprep.subr.mxu0 0.0
    %3795 = vmatpush1.msra.mxu0 %v3766
    %3796 = vmatprep.subr.mxu0 0.0
    %3797 = vmatpush1.msra.mxu0 %v3765
    %3798 = vmatprep.subr.mxu0 0.0
    %3799 = vmatpush1.msra.mxu0 %v3764
    %3800 = vmatprep.subr.mxu0 0.0
    %3801 = vmatpush1.msra.mxu0 %v3763
    %3802 = vmatprep.subr.mxu0 0.0
    %3803 = vmatpush1.msra.mxu0 %v3762
    %3804 = vmatprep.subr.mxu0 0.0
    %3805 = vmatpush1.msra.mxu0 %v3761
    %3806 = vmatprep.subr.mxu0 0.0
    %3807 = vmatpush1.msra.mxu0 %v3760
    %3808 = vmatprep.subr.mxu0 0.0
    %3809 = vmatpush2.msra.mxu0 0.0
    %3810 = vmatprep.subr.mxu0 0.0
    %3811 = vmatpush2.msra.mxu0 0.0
    %3812 = vmatprep.subr.mxu0 0.0
    %3813 = vmatpush2.msra.mxu0 0.0
    %3814 = vmatprep.subr.mxu0 0.0
    %3815 = vmatpush2.msra.mxu0 0.0
    %3816 = vmatprep.subr.mxu0 0.0
    %3817 = vmatpush2.msra.mxu0 0.0
    %3818 = vmatprep.subr.mxu0 0.0
    %3819 = vmatpush2.msra.mxu0 0.0
    %3820 = vmatprep.subr.mxu0 0.0
    %3821 = vmatpush2.msra.mxu0 0.0
    %3822 = vmatprep.subr.mxu0 0.0
    %3823 = vmatpush2.msra.mxu0 0.0
    %3824 = vmatprep.subr.mxu0 0.0
    %3825 = vmatpush2.msra.mxu0 0.0
    %3826 = vmatprep.subr.mxu0 0.0
    %3827 = vmatpush2.msra.mxu0 0.0
    %3828 = vmatprep.subr.mxu0 0.0
    %3829 = vmatpush2.msra.mxu0 0.0
    %3830 = vmatprep.subr.mxu0 0.0
    %3831 = vmatpush2.msra.mxu0 0.0
    %3832 = vmatprep.subr.mxu0 0.0
    %3833 = vmatpush2.msra.mxu0 0.0
    %3834 = vmatprep.subr.mxu0 0.0
    %3835 = vmatpush2.msra.mxu0 0.0
    %3836 = vmatprep.subr.mxu0 0.0
    %3837 = vmatpush2.msra.mxu0 0.0
    %3838 = vmatprep.subr.mxu0 0.0
    %3839 = vmatpush2.msra.mxu0 0.0
    %3840 = vmatprep.mubr.f32.mxu0 0.0
    %3841 = vmatmul.mubr.f32.gmra.mxu0 %v3759
    %v3842 = vpop.f32.mrf.mxu0
    %v3843 = vadd.f32 0.0, %v3842
    %v3844 = vpop.f32.mrf.mxu0
    %3845 = vdwg.mxu0
    %v3846 = vadd.f32 %v3582, %v3843
    %3847 = vmatprep.subr.mxu0 %v2260
    %3848 = vmatpush1.msra.mxu0 %v2259
    %3849 = vmatprep.subr.mxu0 %v2256
    %3850 = vmatpush1.msra.mxu0 %v2255
    %3851 = vmatprep.subr.mxu0 %v2252
    %3852 = vmatpush1.msra.mxu0 %v2251
    %3853 = vmatprep.subr.mxu0 %v2248
    %3854 = vmatpush1.msra.mxu0 %v2247
    %3855 = vmatprep.subr.mxu0 %v2244
    %3856 = vmatpush1.msra.mxu0 %v2243
    %3857 = vmatprep.subr.mxu0 %v2240
    %3858 = vmatpush1.msra.mxu0 %v2239
    %3859 = vmatprep.subr.mxu0 %v2236
    %3860 = vmatpush1.msra.mxu0 %v2235
    %3861 = vmatprep.subr.mxu0 %v2232
    %3862 = vmatpush1.msra.mxu0 %v2231
    %3863 = vmatprep.subr.mxu0 %v2228
    %3864 = vmatpush1.msra.mxu0 %v2227
    %3865 = vmatprep.subr.mxu0 %v2224
    %3866 = vmatpush1.msra.mxu0 %v2223
    %3867 = vmatprep.subr.mxu0 %v2220
    %3868 = vmatpush1.msra.mxu0 %v2219
    %3869 = vmatprep.subr.mxu0 %v2216
    %3870 = vmatpush1.msra.mxu0 %v2215
    %3871 = vmatprep.subr.mxu0 %v2212
    %3872 = vmatpush1.msra.mxu0 %v2211
    %3873 = vmatprep.subr.mxu0 %v2208
    %3874 = vmatpush1.msra.mxu0 %v2207
    %3875 = vmatprep.subr.mxu0 %v2204
    %3876 = vmatpush1.msra.mxu0 %v2203
    %3877 = vmatprep.subr.mxu0 %v2200
    %3878 = vmatpush1.msra.mxu0 %v2199
    %3879 = vmatprep.subr.mxu0 0.0
    %3880 = vmatpush2.msra.mxu0 0.0
    %3881 = vmatprep.subr.mxu0 0.0
    %3882 = vmatpush2.msra.mxu0 0.0
    %3883 = vmatprep.subr.mxu0 0.0
    %3884 = vmatpush2.msra.mxu0 0.0
    %3885 = vmatprep.subr.mxu0 0.0
    %3886 = vmatpush2.msra.mxu0 0.0
    %3887 = vmatprep.subr.mxu0 0.0
    %3888 = vmatpush2.msra.mxu0 0.0
    %3889 = vmatprep.subr.mxu0 0.0
    %3890 = vmatpush2.msra.mxu0 0.0
    %3891 = vmatprep.subr.mxu0 0.0
    %3892 = vmatpush2.msra.mxu0 0.0
    %3893 = vmatprep.subr.mxu0 0.0
    %3894 = vmatpush2.msra.mxu0 0.0
    %3895 = vmatprep.subr.mxu0 0.0
    %3896 = vmatpush2.msra.mxu0 0.0
    %3897 = vmatprep.subr.mxu0 0.0
    %3898 = vmatpush2.msra.mxu0 0.0
    %3899 = vmatprep.subr.mxu0 0.0
    %3900 = vmatpush2.msra.mxu0 0.0
    %3901 = vmatprep.subr.mxu0 0.0
    %3902 = vmatpush2.msra.mxu0 0.0
    %3903 = vmatprep.subr.mxu0 0.0
    %3904 = vmatpush2.msra.mxu0 0.0
    %3905 = vmatprep.subr.mxu0 0.0
    %3906 = vmatpush2.msra.mxu0 0.0
    %3907 = vmatprep.subr.mxu0 0.0
    %3908 = vmatpush2.msra.mxu0 0.0
    %3909 = vmatprep.subr.mxu0 0.0
    %3910 = vmatpush2.msra.mxu0 0.0
    %3911 = vmatprep.mubr.f32.mxu0 0.0
    %3912 = vmatmul.mubr.f32.gmra.mxu0 %v3759
    %v3913 = vpop.f32.mrf.mxu0
    %v3914 = vadd.f32 0.0, %v3913
    %v3915 = vpop.f32.mrf.mxu0
    %v3916 = vadd.f32 0.0, %v3915
    %3917 = vdwg.mxu0
    %3918 = vmatprep.subr.mxu0 %v2262
    %3919 = vmatpush1.msra.mxu0 %v2261
    %3920 = vmatprep.subr.mxu0 %v2258
    %3921 = vmatpush1.msra.mxu0 %v2257
    %3922 = vmatprep.subr.mxu0 %v2254
    %3923 = vmatpush1.msra.mxu0 %v2253
    %3924 = vmatprep.subr.mxu0 %v2250
    %3925 = vmatpush1.msra.mxu0 %v2249
    %3926 = vmatprep.subr.mxu0 %v2246
    %3927 = vmatpush1.msra.mxu0 %v2245
    %3928 = vmatprep.subr.mxu0 %v2242
    %3929 = vmatpush1.msra.mxu0 %v2241
    %3930 = vmatprep.subr.mxu0 %v2238
    %3931 = vmatpush1.msra.mxu0 %v2237
    %3932 = vmatprep.subr.mxu0 %v2234
    %3933 = vmatpush1.msra.mxu0 %v2233
    %3934 = vmatprep.subr.mxu0 %v2230
    %3935 = vmatpush1.msra.mxu0 %v2229
    %3936 = vmatprep.subr.mxu0 %v2226
    %3937 = vmatpush1.msra.mxu0 %v2225
    %3938 = vmatprep.subr.mxu0 %v2222
    %3939 = vmatpush1.msra.mxu0 %v2221
    %3940 = vmatprep.subr.mxu0 %v2218
    %3941 = vmatpush1.msra.mxu0 %v2217
    %3942 = vmatprep.subr.mxu0 %v2214
    %3943 = vmatpush1.msra.mxu0 %v2213
    %3944 = vmatprep.subr.mxu0 %v2210
    %3945 = vmatpush1.msra.mxu0 %v2209
    %3946 = vmatprep.subr.mxu0 %v2206
    %3947 = vmatpush1.msra.mxu0 %v2205
    %3948 = vmatprep.subr.mxu0 %v2202
    %3949 = vmatpush1.msra.mxu0 %v2201
    %3950 = vmatprep.subr.mxu0 0.0
    %3951 = vmatpush2.msra.mxu0 0.0
    %3952 = vmatprep.subr.mxu0 0.0
    %3953 = vmatpush2.msra.mxu0 0.0
    %3954 = vmatprep.subr.mxu0 0.0
    %3955 = vmatpush2.msra.mxu0 0.0
    %3956 = vmatprep.subr.mxu0 0.0
    %3957 = vmatpush2.msra.mxu0 0.0
    %3958 = vmatprep.subr.mxu0 0.0
    %3959 = vmatpush2.msra.mxu0 0.0
    %3960 = vmatprep.subr.mxu0 0.0
    %3961 = vmatpush2.msra.mxu0 0.0
    %3962 = vmatprep.subr.mxu0 0.0
    %3963 = vmatpush2.msra.mxu0 0.0
    %3964 = vmatprep.subr.mxu0 0.0
    %3965 = vmatpush2.msra.mxu0 0.0
    %3966 = vmatprep.subr.mxu0 0.0
    %3967 = vmatpush2.msra.mxu0 0.0
    %3968 = vmatprep.subr.mxu0 0.0
    %3969 = vmatpush2.msra.mxu0 0.0
    %3970 = vmatprep.subr.mxu0 0.0
    %3971 = vmatpush2.msra.mxu0 0.0
    %3972 = vmatprep.subr.mxu0 0.0
    %3973 = vmatpush2.msra.mxu0 0.0
    %3974 = vmatprep.subr.mxu0 0.0
    %3975 = vmatpush2.msra.mxu0 0.0
    %3976 = vmatprep.subr.mxu0 0.0
    %3977 = vmatpush2.msra.mxu0 0.0
    %3978 = vmatprep.subr.mxu0 0.0
    %3979 = vmatpush2.msra.mxu0 0.0
    %3980 = vmatprep.subr.mxu0 0.0
    %3981 = vmatpush2.msra.mxu0 0.0
    %3982 = vmatprep.mubr.f32.mxu0 0.0
    %3983 = vmatmul.mubr.f32.gmra.mxu0 %v3759
    %v3984 = vpop.f32.mrf.mxu0
    %v3985 = vadd.f32 0.0, %v3984
    %v3986 = vpop.f32.mrf.mxu0
    %v3987 = vadd.f32 0.0, %v3986
    %3988 = vdwg.mxu0
    %v3989 = vadd.f32 %v2076, %v3914
    %v3990 = vadd.f32 %v2078, %v3916
    %v3991 = vadd.f32 %v2189, %v3985
    %v3992 = vadd.f32 %v2191, %v3987
    %v3993 = vxor.u32 %v3989, 2147483648
    %v3994 = vxor.u32 %v3990, 2147483648
    %v3995 = vxor.u32 %v3991, 2147483648
    %v3996 = vxor.u32 %v3992, 2147483648
    %v3997 = vmul.f32 %v3993, 1.442695
    %v3998 = vpow.pop %v3997
    %v3999 = vmul.f32 %v3994, 1.442695
    %v4000 = vpow.pop %v3999
    %v4001 = vmul.f32 %v3995, 1.442695
    %v4002 = vpow.pop %v4001
    %v4003 = vmul.f32 %v3996, 1.442695
    %v4004 = vpow.pop %v4003
    %v4005 = vadd.f32 %v3998, 1.0
    %v4006 = vadd.f32 %v4000, 1.0
    %v4007 = vadd.f32 %v4002, 1.0
    %v4008 = vadd.f32 %v4004, 1.0
    %v4009 = vrcp.pop %v4005
    %v4010 = vmul.f32 1.0, %v4009
    %v4011 = vrcp.pop %v4006
    %v4012 = vmul.f32 1.0, %v4011
    %v4013 = vrcp.pop %v4007
    %v4014 = vmul.f32 1.0, %v4013
    %v4015 = vrcp.pop %v4008
    %v4016 = vmul.f32 1.0, %v4015
    %v4017 = vmul.f32 %v4016, 2.0
    %v4018 = vsub.f32 %v4017, 1.0
    %v4019 = vmul.f32 %v4012, %v3757
    %v4020 = vmul.f32 %v4010, %v4018
    %v4021 = vadd.f32 %v4019, %v4020
    %v4022 = vtanh.pop %v4021
    %v4023 = vmul.f32 %v4014, %v4022
    %v4024 = vld [vmem:[#allocation8 + $0x300] sm:$0xff]
    %v4025 = vld [vmem:[#allocation8 + $0x308] sm:$0xff]
    %v4026 = vld [vmem:[#allocation8 + $0x310] sm:$0xff]
    %v4027 = vld [vmem:[#allocation8 + $0x318] sm:$0xff]
    %v4028 = vld [vmem:[#allocation8 + $0x320] sm:$0xff]
    %v4029 = vld [vmem:[#allocation8 + $0x328] sm:$0xff]
    %v4030 = vld [vmem:[#allocation8 + $0x330] sm:$0xff]
    %v4031 = vld [vmem:[#allocation8 + $0x338] sm:$0xff]
    %v4032 = vld [vmem:[#allocation8 + $0x340] sm:$0xff]
    %v4033 = vld [vmem:[#allocation8 + $0x348] sm:$0xff]
    %v4034 = vld [vmem:[#allocation8 + $0x350] sm:$0xff]
    %v4035 = vld [vmem:[#allocation8 + $0x358] sm:$0xff]
    %v4036 = vld [vmem:[#allocation8 + $0x360] sm:$0xff]
    %v4037 = vld [vmem:[#allocation8 + $0x368] sm:$0xff]
    %v4038 = vld [vmem:[#allocation8 + $0x370] sm:$0xff]
    %v4039 = vld [vmem:[#allocation8 + $0x378] sm:$0xff]
    %4040 = vmatprep.subr.mxu0 0.0
    %4041 = vmatpush1.msra.mxu0 %v4039
    %4042 = vmatprep.subr.mxu0 0.0
    %4043 = vmatpush1.msra.mxu0 %v4038
    %4044 = vmatprep.subr.mxu0 0.0
    %4045 = vmatpush1.msra.mxu0 %v4037
    %4046 = vmatprep.subr.mxu0 0.0
    %4047 = vmatpush1.msra.mxu0 %v4036
    %4048 = vmatprep.subr.mxu0 0.0
    %4049 = vmatpush1.msra.mxu0 %v4035
    %4050 = vmatprep.subr.mxu0 0.0
    %4051 = vmatpush1.msra.mxu0 %v4034
    %4052 = vmatprep.subr.mxu0 0.0
    %4053 = vmatpush1.msra.mxu0 %v4033
    %4054 = vmatprep.subr.mxu0 0.0
    %4055 = vmatpush1.msra.mxu0 %v4032
    %4056 = vmatprep.subr.mxu0 0.0
    %4057 = vmatpush1.msra.mxu0 %v4031
    %4058 = vmatprep.subr.mxu0 0.0
    %4059 = vmatpush1.msra.mxu0 %v4030
    %4060 = vmatprep.subr.mxu0 0.0
    %4061 = vmatpush1.msra.mxu0 %v4029
    %4062 = vmatprep.subr.mxu0 0.0
    %4063 = vmatpush1.msra.mxu0 %v4028
    %4064 = vmatprep.subr.mxu0 0.0
    %4065 = vmatpush1.msra.mxu0 %v4027
    %4066 = vmatprep.subr.mxu0 0.0
    %4067 = vmatpush1.msra.mxu0 %v4026
    %4068 = vmatprep.subr.mxu0 0.0
    %4069 = vmatpush1.msra.mxu0 %v4025
    %4070 = vmatprep.subr.mxu0 0.0
    %4071 = vmatpush1.msra.mxu0 %v4024
    %4072 = vmatprep.subr.mxu0 0.0
    %4073 = vmatpush2.msra.mxu0 0.0
    %4074 = vmatprep.subr.mxu0 0.0
    %4075 = vmatpush2.msra.mxu0 0.0
    %4076 = vmatprep.subr.mxu0 0.0
    %4077 = vmatpush2.msra.mxu0 0.0
    %4078 = vmatprep.subr.mxu0 0.0
    %4079 = vmatpush2.msra.mxu0 0.0
    %4080 = vmatprep.subr.mxu0 0.0
    %4081 = vmatpush2.msra.mxu0 0.0
    %4082 = vmatprep.subr.mxu0 0.0
    %4083 = vmatpush2.msra.mxu0 0.0
    %4084 = vmatprep.subr.mxu0 0.0
    %4085 = vmatpush2.msra.mxu0 0.0
    %4086 = vmatprep.subr.mxu0 0.0
    %4087 = vmatpush2.msra.mxu0 0.0
    %4088 = vmatprep.subr.mxu0 0.0
    %4089 = vmatpush2.msra.mxu0 0.0
    %4090 = vmatprep.subr.mxu0 0.0
    %4091 = vmatpush2.msra.mxu0 0.0
    %4092 = vmatprep.subr.mxu0 0.0
    %4093 = vmatpush2.msra.mxu0 0.0
    %4094 = vmatprep.subr.mxu0 0.0
    %4095 = vmatpush2.msra.mxu0 0.0
    %4096 = vmatprep.subr.mxu0 0.0
    %4097 = vmatpush2.msra.mxu0 0.0
    %4098 = vmatprep.subr.mxu0 0.0
    %4099 = vmatpush2.msra.mxu0 0.0
    %4100 = vmatprep.subr.mxu0 0.0
    %4101 = vmatpush2.msra.mxu0 0.0
    %4102 = vmatprep.subr.mxu0 0.0
    %4103 = vmatpush2.msra.mxu0 0.0
    %4104 = vmatprep.mubr.f32.mxu0 0.0
    %4105 = vmatmul.mubr.f32.gmra.mxu0 %v4023
    %v4106 = vpop.f32.mrf.mxu0
    %v4107 = vadd.f32 0.0, %v4106
    %v4108 = vpop.f32.mrf.mxu0
    %4109 = vdwg.mxu0
    %v4110 = vadd.f32 %v3846, %v4107
    %4111 = vmatprep.subr.mxu0 %v2260
    %4112 = vmatpush1.msra.mxu0 %v2259
    %4113 = vmatprep.subr.mxu0 %v2256
    %4114 = vmatpush1.msra.mxu0 %v2255
    %4115 = vmatprep.subr.mxu0 %v2252
    %4116 = vmatpush1.msra.mxu0 %v2251
    %4117 = vmatprep.subr.mxu0 %v2248
    %4118 = vmatpush1.msra.mxu0 %v2247
    %4119 = vmatprep.subr.mxu0 %v2244
    %4120 = vmatpush1.msra.mxu0 %v2243
    %4121 = vmatprep.subr.mxu0 %v2240
    %4122 = vmatpush1.msra.mxu0 %v2239
    %4123 = vmatprep.subr.mxu0 %v2236
    %4124 = vmatpush1.msra.mxu0 %v2235
    %4125 = vmatprep.subr.mxu0 %v2232
    %4126 = vmatpush1.msra.mxu0 %v2231
    %4127 = vmatprep.subr.mxu0 %v2228
    %4128 = vmatpush1.msra.mxu0 %v2227
    %4129 = vmatprep.subr.mxu0 %v2224
    %4130 = vmatpush1.msra.mxu0 %v2223
    %4131 = vmatprep.subr.mxu0 %v2220
    %4132 = vmatpush1.msra.mxu0 %v2219
    %4133 = vmatprep.subr.mxu0 %v2216
    %4134 = vmatpush1.msra.mxu0 %v2215
    %4135 = vmatprep.subr.mxu0 %v2212
    %4136 = vmatpush1.msra.mxu0 %v2211
    %4137 = vmatprep.subr.mxu0 %v2208
    %4138 = vmatpush1.msra.mxu0 %v2207
    %4139 = vmatprep.subr.mxu0 %v2204
    %4140 = vmatpush1.msra.mxu0 %v2203
    %4141 = vmatprep.subr.mxu0 %v2200
    %4142 = vmatpush1.msra.mxu0 %v2199
    %4143 = vmatprep.subr.mxu0 0.0
    %4144 = vmatpush2.msra.mxu0 0.0
    %4145 = vmatprep.subr.mxu0 0.0
    %4146 = vmatpush2.msra.mxu0 0.0
    %4147 = vmatprep.subr.mxu0 0.0
    %4148 = vmatpush2.msra.mxu0 0.0
    %4149 = vmatprep.subr.mxu0 0.0
    %4150 = vmatpush2.msra.mxu0 0.0
    %4151 = vmatprep.subr.mxu0 0.0
    %4152 = vmatpush2.msra.mxu0 0.0
    %4153 = vmatprep.subr.mxu0 0.0
    %4154 = vmatpush2.msra.mxu0 0.0
    %4155 = vmatprep.subr.mxu0 0.0
    %4156 = vmatpush2.msra.mxu0 0.0
    %4157 = vmatprep.subr.mxu0 0.0
    %4158 = vmatpush2.msra.mxu0 0.0
    %4159 = vmatprep.subr.mxu0 0.0
    %4160 = vmatpush2.msra.mxu0 0.0
    %4161 = vmatprep.subr.mxu0 0.0
    %4162 = vmatpush2.msra.mxu0 0.0
    %4163 = vmatprep.subr.mxu0 0.0
    %4164 = vmatpush2.msra.mxu0 0.0
    %4165 = vmatprep.subr.mxu0 0.0
    %4166 = vmatpush2.msra.mxu0 0.0
    %4167 = vmatprep.subr.mxu0 0.0
    %4168 = vmatpush2.msra.mxu0 0.0
    %4169 = vmatprep.subr.mxu0 0.0
    %4170 = vmatpush2.msra.mxu0 0.0
    %4171 = vmatprep.subr.mxu0 0.0
    %4172 = vmatpush2.msra.mxu0 0.0
    %4173 = vmatprep.subr.mxu0 0.0
    %4174 = vmatpush2.msra.mxu0 0.0
    %4175 = vmatprep.mubr.f32.mxu0 0.0
    %4176 = vmatmul.mubr.f32.gmra.mxu0 %v4023
    %v4177 = vpop.f32.mrf.mxu0
    %v4178 = vadd.f32 0.0, %v4177
    %v4179 = vpop.f32.mrf.mxu0
    %v4180 = vadd.f32 0.0, %v4179
    %4181 = vdwg.mxu0
    %4182 = vmatprep.subr.mxu0 %v2262
    %4183 = vmatpush1.msra.mxu0 %v2261
    %4184 = vmatprep.subr.mxu0 %v2258
    %4185 = vmatpush1.msra.mxu0 %v2257
    %4186 = vmatprep.subr.mxu0 %v2254
    %4187 = vmatpush1.msra.mxu0 %v2253
    %4188 = vmatprep.subr.mxu0 %v2250
    %4189 = vmatpush1.msra.mxu0 %v2249
    %4190 = vmatprep.subr.mxu0 %v2246
    %4191 = vmatpush1.msra.mxu0 %v2245
    %4192 = vmatprep.subr.mxu0 %v2242
    %4193 = vmatpush1.msra.mxu0 %v2241
    %4194 = vmatprep.subr.mxu0 %v2238
    %4195 = vmatpush1.msra.mxu0 %v2237
    %4196 = vmatprep.subr.mxu0 %v2234
    %4197 = vmatpush1.msra.mxu0 %v2233
    %4198 = vmatprep.subr.mxu0 %v2230
    %4199 = vmatpush1.msra.mxu0 %v2229
    %4200 = vmatprep.subr.mxu0 %v2226
    %4201 = vmatpush1.msra.mxu0 %v2225
    %4202 = vmatprep.subr.mxu0 %v2222
    %4203 = vmatpush1.msra.mxu0 %v2221
    %4204 = vmatprep.subr.mxu0 %v2218
    %4205 = vmatpush1.msra.mxu0 %v2217
    %4206 = vmatprep.subr.mxu0 %v2214
    %4207 = vmatpush1.msra.mxu0 %v2213
    %4208 = vmatprep.subr.mxu0 %v2210
    %4209 = vmatpush1.msra.mxu0 %v2209
    %4210 = vmatprep.subr.mxu0 %v2206
    %4211 = vmatpush1.msra.mxu0 %v2205
    %4212 = vmatprep.subr.mxu0 %v2202
    %4213 = vmatpush1.msra.mxu0 %v2201
    %4214 = vmatprep.subr.mxu0 0.0
    %4215 = vmatpush2.msra.mxu0 0.0
    %4216 = vmatprep.subr.mxu0 0.0
    %4217 = vmatpush2.msra.mxu0 0.0
    %4218 = vmatprep.subr.mxu0 0.0
    %4219 = vmatpush2.msra.mxu0 0.0
    %4220 = vmatprep.subr.mxu0 0.0
    %4221 = vmatpush2.msra.mxu0 0.0
    %4222 = vmatprep.subr.mxu0 0.0
    %4223 = vmatpush2.msra.mxu0 0.0
    %4224 = vmatprep.subr.mxu0 0.0
    %4225 = vmatpush2.msra.mxu0 0.0
    %4226 = vmatprep.subr.mxu0 0.0
    %4227 = vmatpush2.msra.mxu0 0.0
    %4228 = vmatprep.subr.mxu0 0.0
    %4229 = vmatpush2.msra.mxu0 0.0
    %4230 = vmatprep.subr.mxu0 0.0
    %4231 = vmatpush2.msra.mxu0 0.0
    %4232 = vmatprep.subr.mxu0 0.0
    %4233 = vmatpush2.msra.mxu0 0.0
    %4234 = vmatprep.subr.mxu0 0.0
    %4235 = vmatpush2.msra.mxu0 0.0
    %4236 = vmatprep.subr.mxu0 0.0
    %4237 = vmatpush2.msra.mxu0 0.0
    %4238 = vmatprep.subr.mxu0 0.0
    %4239 = vmatpush2.msra.mxu0 0.0
    %4240 = vmatprep.subr.mxu0 0.0
    %4241 = vmatpush2.msra.mxu0 0.0
    %4242 = vmatprep.subr.mxu0 0.0
    %4243 = vmatpush2.msra.mxu0 0.0
    %4244 = vmatprep.subr.mxu0 0.0
    %4245 = vmatpush2.msra.mxu0 0.0
    %4246 = vmatprep.mubr.f32.mxu0 0.0
    %4247 = vmatmul.mubr.f32.gmra.mxu0 %v4023
    %v4248 = vpop.f32.mrf.mxu0
    %v4249 = vadd.f32 0.0, %v4248
    %v4250 = vpop.f32.mrf.mxu0
    %v4251 = vadd.f32 0.0, %v4250
    %4252 = vdwg.mxu0
    %v4253 = vadd.f32 %v2082, %v4178
    %v4254 = vadd.f32 %v2084, %v4180
    %v4255 = vadd.f32 %v2195, %v4249
    %v4256 = vadd.f32 %v2197, %v4251
    %v4257 = vxor.u32 %v4253, 2147483648
    %v4258 = vxor.u32 %v4254, 2147483648
    %v4259 = vxor.u32 %v4255, 2147483648
    %v4260 = vxor.u32 %v4256, 2147483648
    %v4261 = vmul.f32 %v4257, 1.442695
    %v4262 = vpow.pop %v4261
    %v4263 = vmul.f32 %v4258, 1.442695
    %v4264 = vpow.pop %v4263
    %v4265 = vmul.f32 %v4259, 1.442695
    %v4266 = vpow.pop %v4265
    %v4267 = vmul.f32 %v4260, 1.442695
    %v4268 = vpow.pop %v4267
    %v4269 = vadd.f32 %v4262, 1.0
    %v4270 = vadd.f32 %v4264, 1.0
    %v4271 = vadd.f32 %v4266, 1.0
    %v4272 = vadd.f32 %v4268, 1.0
    %v4273 = vrcp.pop %v4269
    %v4274 = vmul.f32 1.0, %v4273
    %v4275 = vrcp.pop %v4270
    %v4276 = vmul.f32 1.0, %v4275
    %v4277 = vrcp.pop %v4271
    %v4278 = vmul.f32 1.0, %v4277
    %v4279 = vrcp.pop %v4272
    %v4280 = vmul.f32 1.0, %v4279
    %v4281 = vmul.f32 %v4280, 2.0
    %v4282 = vsub.f32 %v4281, 1.0
    %v4283 = vmul.f32 %v4276, %v4021
    %v4284 = vmul.f32 %v4274, %v4282
    %v4285 = vadd.f32 %v4283, %v4284
    %v4286 = vtanh.pop %v4285
    %v4287 = vmul.f32 %v4278, %v4286
    %v4288 = vld [vmem:[#allocation8 + $0x380] sm:$0xff]
    %v4289 = vld [vmem:[#allocation8 + $0x388] sm:$0xff]
    %v4290 = vld [vmem:[#allocation8 + $0x390] sm:$0xff]
    %v4291 = vld [vmem:[#allocation8 + $0x398] sm:$0xff]
    %v4292 = vld [vmem:[#allocation8 + $0x3a0] sm:$0xff]
    %v4293 = vld [vmem:[#allocation8 + $0x3a8] sm:$0xff]
    %v4294 = vld [vmem:[#allocation8 + $0x3b0] sm:$0xff]
    %v4295 = vld [vmem:[#allocation8 + $0x3b8] sm:$0xff]
    %v4296 = vld [vmem:[#allocation8 + $0x3c0] sm:$0xff]
    %v4297 = vld [vmem:[#allocation8 + $0x3c8] sm:$0xff]
    %v4298 = vld [vmem:[#allocation8 + $0x3d0] sm:$0xff]
    %v4299 = vld [vmem:[#allocation8 + $0x3d8] sm:$0xff]
    %v4300 = vld [vmem:[#allocation8 + $0x3e0] sm:$0xff]
    %v4301 = vld [vmem:[#allocation8 + $0x3e8] sm:$0xff]
    %v4302 = vld [vmem:[#allocation8 + $0x3f0] sm:$0xff]
    %v4303 = vld [vmem:[#allocation8 + $0x3f8] sm:$0xff]
    %4304 = vmatprep.subr.mxu0 0.0
    %4305 = vmatpush1.msra.mxu0 %v4303
    %4306 = vmatprep.subr.mxu0 0.0
    %4307 = vmatpush1.msra.mxu0 %v4302
    %4308 = vmatprep.subr.mxu0 0.0
    %4309 = vmatpush1.msra.mxu0 %v4301
    %4310 = vmatprep.subr.mxu0 0.0
    %4311 = vmatpush1.msra.mxu0 %v4300
    %4312 = vmatprep.subr.mxu0 0.0
    %4313 = vmatpush1.msra.mxu0 %v4299
    %4314 = vmatprep.subr.mxu0 0.0
    %4315 = vmatpush1.msra.mxu0 %v4298
    %4316 = vmatprep.subr.mxu0 0.0
    %4317 = vmatpush1.msra.mxu0 %v4297
    %4318 = vmatprep.subr.mxu0 0.0
    %4319 = vmatpush1.msra.mxu0 %v4296
    %4320 = vmatprep.subr.mxu0 0.0
    %4321 = vmatpush1.msra.mxu0 %v4295
    %4322 = vmatprep.subr.mxu0 0.0
    %4323 = vmatpush1.msra.mxu0 %v4294
    %4324 = vmatprep.subr.mxu0 0.0
    %4325 = vmatpush1.msra.mxu0 %v4293
    %4326 = vmatprep.subr.mxu0 0.0
    %4327 = vmatpush1.msra.mxu0 %v4292
    %4328 = vmatprep.subr.mxu0 0.0
    %4329 = vmatpush1.msra.mxu0 %v4291
    %4330 = vmatprep.subr.mxu0 0.0
    %4331 = vmatpush1.msra.mxu0 %v4290
    %4332 = vmatprep.subr.mxu0 0.0
    %4333 = vmatpush1.msra.mxu0 %v4289
    %4334 = vmatprep.subr.mxu0 0.0
    %4335 = vmatpush1.msra.mxu0 %v4288
    %4336 = vmatprep.subr.mxu0 0.0
    %4337 = vmatpush2.msra.mxu0 0.0
    %4338 = vmatprep.subr.mxu0 0.0
    %4339 = vmatpush2.msra.mxu0 0.0
    %4340 = vmatprep.subr.mxu0 0.0
    %4341 = vmatpush2.msra.mxu0 0.0
    %4342 = vmatprep.subr.mxu0 0.0
    %4343 = vmatpush2.msra.mxu0 0.0
    %4344 = vmatprep.subr.mxu0 0.0
    %4345 = vmatpush2.msra.mxu0 0.0
    %4346 = vmatprep.subr.mxu0 0.0
    %4347 = vmatpush2.msra.mxu0 0.0
    %4348 = vmatprep.subr.mxu0 0.0
    %4349 = vmatpush2.msra.mxu0 0.0
    %4350 = vmatprep.subr.mxu0 0.0
    %4351 = vmatpush2.msra.mxu0 0.0
    %4352 = vmatprep.subr.mxu0 0.0
    %4353 = vmatpush2.msra.mxu0 0.0
    %4354 = vmatprep.subr.mxu0 0.0
    %4355 = vmatpush2.msra.mxu0 0.0
    %4356 = vmatprep.subr.mxu0 0.0
    %4357 = vmatpush2.msra.mxu0 0.0
    %4358 = vmatprep.subr.mxu0 0.0
    %4359 = vmatpush2.msra.mxu0 0.0
    %4360 = vmatprep.subr.mxu0 0.0
    %4361 = vmatpush2.msra.mxu0 0.0
    %4362 = vmatprep.subr.mxu0 0.0
    %4363 = vmatpush2.msra.mxu0 0.0
    %4364 = vmatprep.subr.mxu0 0.0
    %4365 = vmatpush2.msra.mxu0 0.0
    %4366 = vmatprep.subr.mxu0 0.0
    %4367 = vmatpush2.msra.mxu0 0.0
    %4368 = vmatprep.mubr.f32.mxu0 0.0
    %4369 = vmatmul.mubr.f32.gmra.mxu0 %v4287
    %v4370 = vpop.f32.mrf.mxu0
    %v4371 = vadd.f32 0.0, %v4370
    %v4372 = vpop.f32.mrf.mxu0
    %4373 = vdwg.mxu0
    %v4374 = vadd.f32 %v4110, %v4371
    %4375 = vst [vmem:[%s9] sm:$0xff] %v4374
    // Predicated region
    $region54: #{normal_lstm_forward.1} parent=1 // pred_check
      _
    $region55: #{normal_lstm_forward.1} parent=1 // pred_check_branch
      %4377 = sbr.rel (0) target = $region57
    $region56: #{normal_lstm_forward.1} parent=1 // pred_region
      _
    $region57: #{normal_lstm_forward.1} parent=1 // pred_fallthru
      _
    // Predicated region
    $region58: #{normal_lstm_forward.1} parent=1 // pred_check
      _
    $region59: #{normal_lstm_forward.1} parent=1 // pred_check_branch
      %4379 = sbr.rel (0) target = $region61
    $region60: #{normal_lstm_forward.1} parent=1 // pred_region
      _
    $region61: #{normal_lstm_forward.1} parent=1 // pred_fallthru
      _
    %4380 = vsyncpa [#allocation4], 1
    %4381 = vsyncpa [#allocation6], 1
    %4382 = vsyncpa [#allocation9], 1

</llo_original>
